<compile_context>
chip_gen: v5e
topology: v5e:2x2
jax: 0.10.0
libtpu: 0.0.40
codegen_flags: <defaults>
</compile_context>

<pallas_src>
import functools

import jax
import jax.numpy as jnp
from jax import lax
from jax.experimental import pallas as pl
from jax.experimental.pallas import tpu as pltpu


def _norm_f32(x, alpha, beta, n, eps):
    # PyTorch Norm: mean / std over last dim, std uses Bessel correction (N-1),
    # eps added to std (not to the variance). Exact divide (matches torch beyond bf16 noise).
    mean = jnp.mean(x, axis=-1, keepdims=True)
    centered = x - mean
    var = jnp.sum(centered * centered, axis=-1, keepdims=True) * (1.0 / (n - 1))
    std = jnp.sqrt(var)
    return alpha * centered / (std + eps) + beta


def _encoder_layer_kernel(
    x_ref, xb_ref, mbias_ref,
    wq_ref, bq_ref, wk_ref, bk_ref, wv_ref, bv_ref, wo_ref, bo_ref,
    a1_ref, g1_ref, a2_ref, g2_ref,
    w1_ref, c1_ref, w2_ref, c2_ref,
    o_ref,
    k_scr, v_scr,
    *, heads, d_k, d_model, d_ff, tq, ff_chunk, eps,
):
    qi = pl.program_id(1)

    # ---- K/V projection: computed once per batch element, cached in VMEM scratch ---------
    # Per-head weight-column slices (contraction = full D) rather than lane-slicing the
    # projected activations; scratch layout (heads, S, d_k) makes per-step reads a cheap
    # leading-axis index. (When d_k < 128 the scratch last dim is lane-padded — acceptable
    # at these sizes; for d_k >= 128 the padding disappears.)
    @pl.when(qi == 0)
    def _():
        xb_full = xb_ref[0]                                      # (S, D) bf16
        for h in range(heads):
            lo = h * d_k
            kh = jnp.dot(xb_full, wk_ref[:, lo:lo + d_k],
                         preferred_element_type=jnp.float32) + bk_ref[:, lo:lo + d_k]
            vh = jnp.dot(xb_full, wv_ref[:, lo:lo + d_k],
                         preferred_element_type=jnp.float32) + bv_ref[:, lo:lo + d_k]
            k_scr[h] = kh.astype(jnp.bfloat16)
            v_scr[h] = vh.astype(jnp.bfloat16)

    # ---- per-query-tile inputs -----------------------------------------------------------
    q_start = pl.multiple_of(qi * tq, tq)
    x_q = x_ref[0]                                               # (tq, D) f32 residual
    xb_q = xb_ref[0, pl.ds(q_start, tq), :]                      # (tq, D) bf16
    mbias = mbias_ref[0]                                         # (1, S) additive mask bias

    # ---- attention: per-head scores + fused per-head output projection --------------------
    # 1/sqrt(d_k) is already folded into wq/bq in the wrapper.
    attn = jnp.zeros((tq, d_model), jnp.float32)
    for h in range(heads):                                       # heads is small & static
        lo = h * d_k
        qh = (jnp.dot(xb_q, wq_ref[:, lo:lo + d_k],
                      preferred_element_type=jnp.float32)
              + bq_ref[:, lo:lo + d_k]).astype(jnp.bfloat16)     # (tq, d_k)
        s = lax.dot_general(qh, k_scr[h], (((1,), (1,)), ((), ())),
                            preferred_element_type=jnp.float32)  # (tq, S)
        s = s + mbias                                            # broadcast (1, S)
        s = s - jnp.max(s, axis=-1, keepdims=True)               # stable softmax, f32
        e = jnp.exp(s)
        # Approx reciprocal (EUP slot) in softmax only; Norm uses exact divide.
        p = (e * pl.reciprocal(jnp.sum(e, axis=-1, keepdims=True),
                               approx=True)).astype(jnp.bfloat16)
        head = jnp.dot(p, v_scr[h], preferred_element_type=jnp.float32)   # (tq, d_k)
        # Fused output projection per head: no concat, output stays D-wide (lane-dense).
        attn = attn + jnp.dot(head.astype(jnp.bfloat16), wo_ref[lo:lo + d_k, :],
                              preferred_element_type=jnp.float32)
    attn = attn + bo_ref[...]
    # TODO(synk): dropout_1 / attention dropout / dropout_2 are eval-mode identity (omitted).

    # ---- residual + Norm1 ------------------------------------------------------------------
    x1 = x_q + attn
    x1n = _norm_f32(x1, a1_ref[...], g1_ref[...], d_model, eps)
    x1nb = x1n.astype(jnp.bfloat16)

    # ---- FFN chunked over d_ff (visible loop bounds vreg live ranges; no (tq, d_ff) live) --
    n_chunks = d_ff // ff_chunk

    def ffn_chunk(c, acc):
        c0 = pl.multiple_of(c * ff_chunk, ff_chunk)
        hid = jnp.dot(x1nb, w1_ref[:, pl.ds(c0, ff_chunk)],
                      preferred_element_type=jnp.float32)
        hid = jnp.maximum(hid + c1_ref[:, pl.ds(c0, ff_chunk)], 0.0)      # ReLU
        return acc + jnp.dot(hid.astype(jnp.bfloat16),
                             w2_ref[pl.ds(c0, ff_chunk), :],
                             preferred_element_type=jnp.float32)

    ff = lax.fori_loop(0, n_chunks, ffn_chunk,
                       jnp.zeros((tq, d_model), jnp.float32), unroll=True)
    ff = ff + c2_ref[...]

    # ---- residual + Norm2 -------------------------------------------------------------------
    x2 = x1n + ff
    o_ref[0] = _norm_f32(x2, a2_ref[...], g2_ref[...], d_model, eps).astype(o_ref.dtype)


def _vmem_limit_bytes():
    cap = 128 * 1024 * 1024
    try:
        info = pltpu.get_tpu_info()
        cap = int(getattr(info, "vmem_capacity_bytes", cap))
    except Exception:
        pass
    # ~75% of physical VMEM, capped at 100 MiB: ~96 MiB on v5e/v6e, ~48 MiB on v7x.
    return min((cap * 3) // 4, 100 * 1024 * 1024)


def encoder_layer(x, params, mask=None, *, heads, eps=1e-6, tq=None, ff_chunk=None):
    B, S, D = x.shape
    d_k = D // heads
    d_ff = params["w1"].shape[1]

    if tq is None:
        tq = min(S, 128)
    assert S % tq == 0 and tq % 8 == 0, "query tile must divide S and be sublane-aligned"
    if ff_chunk is None:
        ff_chunk = min(d_ff, 256)
    assert d_ff % ff_chunk == 0

    if mask is None:
        mask = jnp.ones((B, 1, S), jnp.float32)
    # Additive mask bias precomputed once in the wrapper (masked_fill(mask==0, -1e9)
    # is numerically equivalent to adding -1e9 before the row-max subtraction).
    mbias = jnp.where(mask == 0, jnp.float32(-1e9), jnp.float32(0.0)).astype(jnp.float32)

    # bf16 copy of x fed to the kernel as the K/V-projection source (halves the big block).
    x_bf16 = x.astype(jnp.bfloat16)

    # Fold 1/sqrt(d_k) into the Q projection (one-time weight scale).
    inv_sqrt_dk = 1.0 / float(d_k) ** 0.5
    bf = lambda a: a.astype(jnp.bfloat16)
    weight_list = [
        bf(params["wq"] * inv_sqrt_dk), params["bq"] * inv_sqrt_dk,
        bf(params["wk"]), params["bk"],
        bf(params["wv"]), params["bv"],
        bf(params["wo"]), params["bo"],
        params["alpha1"], params["bias1"], params["alpha2"], params["bias2"],
        bf(params["w1"]), params["c1"], bf(params["w2"]), params["c2"],
    ]

    # Weights: whole-array single-copy VMEM residents — no per-grid-step double buffering.
    weight_spec = pl.BlockSpec(memory_space=pltpu.MemorySpace.VMEM)

    in_specs = (
        [pl.BlockSpec((1, tq, D), lambda b, qi: (b, qi, 0)),   # f32 residual tile
         pl.BlockSpec((1, S, D), lambda b, qi: (b, 0, 0)),     # bf16 full seq (K/V source)
         pl.BlockSpec((1, 1, S), lambda b, qi: (b, 0, 0))]     # additive mask bias
        + [weight_spec] * len(weight_list)
    )

    kernel = functools.partial(
        _encoder_layer_kernel, heads=heads, d_k=d_k, d_model=D, d_ff=d_ff,
        tq=tq, ff_chunk=ff_chunk, eps=eps)

    return pl.pallas_call(
        kernel,
        out_shape=jax.ShapeDtypeStruct((B, S, D), x.dtype),
        grid_spec=pltpu.PrefetchScalarGridSpec(
            num_scalar_prefetch=0,
            grid=(B, S // tq),
            in_specs=in_specs,
            out_specs=pl.BlockSpec((1, tq, D), lambda b, qi: (b, qi, 0)),
            scratch_shapes=[
                pltpu.VMEM((heads, S, d_k), jnp.bfloat16),     # cached K per batch element
                pltpu.VMEM((heads, S, d_k), jnp.bfloat16),     # cached V per batch element
            ]),
        compiler_params=pltpu.CompilerParams(
            # qi axis carries the K/V cache in scratch -> must stay "arbitrary";
            # batch axis is independent -> "parallel" (dual-TC sharding on v7x).
            dimension_semantics=("parallel", "arbitrary"),
            vmem_limit_bytes=_vmem_limit_bytes()),
    )(x, x_bf16, mbias, *weight_list)


def init_params(key, d_model, d_ff):
    ks = jax.random.split(key, 12)
    sc = 0.05

    def lin(k, fan_in, fan_out):
        kw, kb = jax.random.split(k)
        w = jax.random.normal(kw, (fan_in, fan_out), jnp.float32) * sc  # (in, out) = W.T
        b = jax.random.normal(kb, (1, fan_out), jnp.float32) * sc
        return w, b

    wq, bq = lin(ks[0], d_model, d_model)
    wk, bk = lin(ks[1], d_model, d_model)
    wv, bv = lin(ks[2], d_model, d_model)
    wo, bo = lin(ks[3], d_model, d_model)
    w1, c1 = lin(ks[4], d_model, d_ff)
    w2, c2 = lin(ks[5], d_ff, d_model)
    return dict(
        wq=wq, bq=bq, wk=wk, bk=bk, wv=wv, bv=bv, wo=wo, bo=bo,
        w1=w1, c1=c1, w2=w2, c2=c2,
        alpha1=jnp.ones((1, d_model), jnp.float32),
        bias1=jnp.zeros((1, d_model), jnp.float32),
        alpha2=jnp.ones((1, d_model), jnp.float32),
        bias2=jnp.zeros((1, d_model), jnp.float32),
    )


def encoder_layer_ref(x, params, mask=None, *, heads, eps=1e-6):
    """Pure-JAX f32 reference (mirrors the PyTorch forward) for validation."""
    B, S, D = x.shape
    d_k = D // heads

    def linear(h, w, b):
        return h @ w + b

    q = linear(x, params["wq"], params["bq"]).reshape(B, S, heads, d_k).transpose(0, 2, 1, 3)
    k = linear(x, params["wk"], params["bk"]).reshape(B, S, heads, d_k).transpose(0, 2, 1, 3)
    v = linear(x, params["wv"], params["bv"]).reshape(B, S, heads, d_k).transpose(0, 2, 1, 3)
    scores = jnp.einsum("bhqd,bhkd->bhqk", q, k) / jnp.sqrt(jnp.float32(d_k))
    if mask is not None:
        scores = jnp.where(mask[:, None, :, :] == 0, -1e9, scores)
    p = jax.nn.softmax(scores, axis=-1)
    attn = jnp.einsum("bhqk,bhkd->bhqd", p, v).transpose(0, 2, 1, 3).reshape(B, S, D)
    attn = linear(attn, params["wo"], params["bo"])

    def norm(h, alpha, beta):
        mean = h.mean(-1, keepdims=True)
        std = jnp.sqrt(((h - mean) ** 2).sum(-1, keepdims=True) / (D - 1))
        return alpha * (h - mean) / (std + eps) + beta

    x1 = norm(x + attn, params["alpha1"], params["bias1"])
    ff = linear(jnp.maximum(linear(x1, params["w1"], params["c1"]), 0.0),
                params["w2"], params["c2"])
    return norm(x1 + ff, params["alpha2"], params["bias2"])


if __name__ == "__main__":
    # Small but lane-dense shapes (S, D multiples of 128) so stores are unmasked vst.
    B, S, D, H, D_FF = 2, 128, 128, 4, 256
    key = jax.random.PRNGKey(0)
    kx, kp = jax.random.split(key)
    x = jax.random.normal(kx, (B, S, D), jnp.float32)
    params = init_params(kp, D, D_FF)

    # Mask: batch 0 attends everywhere; batch 1 has its last 32 key positions padded out.
    mask = jnp.ones((B, 1, S), jnp.float32)
    mask = mask.at[1, 0, S - 32:].set(0.0)

    # tq=64 / ff_chunk=128 exercise the K/V-cache carry across query tiles and the d_ff loop.
    out = encoder_layer(x, params, mask=mask, heads=H, tq=64, ff_chunk=128)
    out = jax.block_until_ready(out)

    ref = encoder_layer_ref(x, params, mask=mask, heads=H)
    assert out.shape == (B, S, D)
    max_err = float(jnp.max(jnp.abs(out - ref)))
    assert jnp.allclose(out, ref, atol=5e-2, rtol=5e-2), f"mismatch vs ref, max|d|={max_err}"
    print("KERNEL_OK")
</pallas_src>

<mosaic_0001>
module attributes {stable_mosaic.version = 11 : i64} {
  func.func @_encoder_layer_kernel(%arg0: i32, %arg1: i32, %arg2: memref<1x64x128xf32, #tpu.memory_space<vmem>>, %arg3: memref<1x128x128xbf16, #tpu.memory_space<vmem>>, %arg4: memref<1x1x128xf32, #tpu.memory_space<vmem>>, %arg5: memref<128x128xbf16, #tpu.memory_space<vmem>>, %arg6: memref<1x128xf32, #tpu.memory_space<vmem>>, %arg7: memref<128x128xbf16, #tpu.memory_space<vmem>>, %arg8: memref<1x128xf32, #tpu.memory_space<vmem>>, %arg9: memref<128x128xbf16, #tpu.memory_space<vmem>>, %arg10: memref<1x128xf32, #tpu.memory_space<vmem>>, %arg11: memref<128x128xbf16, #tpu.memory_space<vmem>>, %arg12: memref<1x128xf32, #tpu.memory_space<vmem>>, %arg13: memref<1x128xf32, #tpu.memory_space<vmem>>, %arg14: memref<1x128xf32, #tpu.memory_space<vmem>>, %arg15: memref<1x128xf32, #tpu.memory_space<vmem>>, %arg16: memref<1x128xf32, #tpu.memory_space<vmem>>, %arg17: memref<128x256xbf16, #tpu.memory_space<vmem>>, %arg18: memref<1x256xf32, #tpu.memory_space<vmem>>, %arg19: memref<256x128xbf16, #tpu.memory_space<vmem>>, %arg20: memref<1x128xf32, #tpu.memory_space<vmem>>, %arg21: memref<1x64x128xf32, #tpu.memory_space<vmem>>, %arg22: memref<4x128x32xbf16, #tpu.memory_space<vmem>>, %arg23: memref<4x128x32xbf16, #tpu.memory_space<vmem>>) attributes {dimension_semantics = [#tpu.dimension_semantics<parallel>, #tpu.dimension_semantics<arbitrary>], iteration_bounds = array<i64: 2, 2>, scalar_prefetch = 0 : i64, scratch_operands = 2 : i64, tpu.core_type = #tpu.core_type<tc>, window_params = [{transform_indices = @transform_0, window_bounds = array<i64: 1, 64, 128>}, {transform_indices = @transform_1, window_bounds = array<i64: 1, 128, 128>}, {transform_indices = @transform_2, window_bounds = array<i64: 1, 1, 128>}, {pipeline_mode = #tpu.pipeline_mode<synchronous>, transform_indices = @transform_3, window_bounds = array<i64: 128, 128>}, {pipeline_mode = #tpu.pipeline_mode<synchronous>, transform_indices = @transform_4, window_bounds = array<i64: 1, 128>}, {pipeline_mode = #tpu.pipeline_mode<synchronous>, transform_indices = @transform_5, window_bounds = array<i64: 128, 128>}, {pipeline_mode = #tpu.pipeline_mode<synchronous>, transform_indices = @transform_6, window_bounds = array<i64: 1, 128>}, {pipeline_mode = #tpu.pipeline_mode<synchronous>, transform_indices = @transform_7, window_bounds = array<i64: 128, 128>}, {pipeline_mode = #tpu.pipeline_mode<synchronous>, transform_indices = @transform_8, window_bounds = array<i64: 1, 128>}, {pipeline_mode = #tpu.pipeline_mode<synchronous>, transform_indices = @transform_9, window_bounds = array<i64: 128, 128>}, {pipeline_mode = #tpu.pipeline_mode<synchronous>, transform_indices = @transform_10, window_bounds = array<i64: 1, 128>}, {pipeline_mode = #tpu.pipeline_mode<synchronous>, transform_indices = @transform_11, window_bounds = array<i64: 1, 128>}, {pipeline_mode = #tpu.pipeline_mode<synchronous>, transform_indices = @transform_12, window_bounds = array<i64: 1, 128>}, {pipeline_mode = #tpu.pipeline_mode<synchronous>, transform_indices = @transform_13, window_bounds = array<i64: 1, 128>}, {pipeline_mode = #tpu.pipeline_mode<synchronous>, transform_indices = @transform_14, window_bounds = array<i64: 1, 128>}, {pipeline_mode = #tpu.pipeline_mode<synchronous>, transform_indices = @transform_15, window_bounds = array<i64: 128, 256>}, {pipeline_mode = #tpu.pipeline_mode<synchronous>, transform_indices = @transform_16, window_bounds = array<i64: 1, 256>}, {pipeline_mode = #tpu.pipeline_mode<synchronous>, transform_indices = @transform_17, window_bounds = array<i64: 256, 128>}, {pipeline_mode = #tpu.pipeline_mode<synchronous>, transform_indices = @transform_18, window_bounds = array<i64: 1, 128>}, {transform_indices = @transform_19, window_bounds = array<i64: 1, 64, 128>}]} {
    %c0_i32 = arith.constant 0 : i32
    %0 = arith.cmpi eq, %arg1, %c0_i32 : i32
    %1 = arith.extui %0 : i1 to i32
    %c0_i32_0 = arith.constant 0 : i32
    %2 = arith.cmpi ne, %1, %c0_i32_0 : i32
    scf.if %2 {
      %c0_114 = arith.constant 0 : index
      %c0_115 = arith.constant 0 : index
      %c0_116 = arith.constant 0 : index
      %218 = vector.load %arg3[%c0_114, %c0_115, %c0_116] : memref<1x128x128xbf16, #tpu.memory_space<vmem>>, vector<1x128x128xbf16>
      %219 = vector.shape_cast %218 : vector<1x128x128xbf16> to vector<128x128xbf16>
      %c0_117 = arith.constant 0 : index
      %c0_118 = arith.constant 0 : index
      %220 = vector.load %arg7[%c0_117, %c0_118] : memref<128x128xbf16, #tpu.memory_space<vmem>>, vector<128x32xbf16>
      %cst_119 = arith.constant dense<0.000000e+00> : vector<128x32xf32>
      %221 = tpu.matmul %219, %220, %cst_119 {dimension_numbers = #tpu.dot_dimension_numbers<[1], [0], [0], [1], [0, 0, 1, 1], [], []>} : vector<128x128xbf16>, vector<128x32xbf16>, vector<128x32xf32> -> vector<128x32xf32>
      %c0_120 = arith.constant 0 : index
      %c0_121 = arith.constant 0 : index
      %222 = vector.load %arg8[%c0_120, %c0_121] : memref<1x128xf32, #tpu.memory_space<vmem>>, vector<1x32xf32>
      %223 = vector.broadcast %222 : vector<1x32xf32> to vector<128x32xf32>
      %224 = arith.addf %221, %223 : vector<128x32xf32>
      %c0_122 = arith.constant 0 : index
      %c0_123 = arith.constant 0 : index
      %225 = vector.load %arg9[%c0_122, %c0_123] : memref<128x128xbf16, #tpu.memory_space<vmem>>, vector<128x32xbf16>
      %cst_124 = arith.constant dense<0.000000e+00> : vector<128x32xf32>
      %226 = tpu.matmul %219, %225, %cst_124 {dimension_numbers = #tpu.dot_dimension_numbers<[1], [0], [0], [1], [0, 0, 1, 1], [], []>} : vector<128x128xbf16>, vector<128x32xbf16>, vector<128x32xf32> -> vector<128x32xf32>
      %c0_125 = arith.constant 0 : index
      %c0_126 = arith.constant 0 : index
      %227 = vector.load %arg10[%c0_125, %c0_126] : memref<1x128xf32, #tpu.memory_space<vmem>>, vector<1x32xf32>
      %228 = vector.broadcast %227 : vector<1x32xf32> to vector<128x32xf32>
      %229 = arith.addf %226, %228 : vector<128x32xf32>
      %230 = arith.truncf %224 : vector<128x32xf32> to vector<128x32xbf16>
      %c0_127 = arith.constant 0 : index
      %c0_128 = arith.constant 0 : index
      %c0_129 = arith.constant 0 : index
      %231 = vector.load %arg22[%c0_127, %c0_128, %c0_129] : memref<4x128x32xbf16, #tpu.memory_space<vmem>>, vector<1x128x32xbf16>
      %232 = vector.shape_cast %231 : vector<1x128x32xbf16> to vector<128x32xbf16>
      %233 = vector.shape_cast %230 : vector<128x32xbf16> to vector<1x128x32xbf16>
      tpu.vector_store %arg22[%c0_127, %c0_128, %c0_129], %233 {strides = array<i32>} : memref<4x128x32xbf16, #tpu.memory_space<vmem>>, vector<1x128x32xbf16>,
      %234 = arith.truncf %229 : vector<128x32xf32> to vector<128x32xbf16>
      %c0_130 = arith.constant 0 : index
      %c0_131 = arith.constant 0 : index
      %c0_132 = arith.constant 0 : index
      %235 = vector.load %arg23[%c0_130, %c0_131, %c0_132] : memref<4x128x32xbf16, #tpu.memory_space<vmem>>, vector<1x128x32xbf16>
      %236 = vector.shape_cast %235 : vector<1x128x32xbf16> to vector<128x32xbf16>
      %237 = vector.shape_cast %234 : vector<128x32xbf16> to vector<1x128x32xbf16>
      tpu.vector_store %arg23[%c0_130, %c0_131, %c0_132], %237 {strides = array<i32>} : memref<4x128x32xbf16, #tpu.memory_space<vmem>>, vector<1x128x32xbf16>,
      %c0_133 = arith.constant 0 : index
      %c32_134 = arith.constant 32 : index
      %238 = vector.load %arg7[%c0_133, %c32_134] : memref<128x128xbf16, #tpu.memory_space<vmem>>, vector<128x32xbf16>
      %cst_135 = arith.constant dense<0.000000e+00> : vector<128x32xf32>
      %239 = tpu.matmul %219, %238, %cst_135 {dimension_numbers = #tpu.dot_dimension_numbers<[1], [0], [0], [1], [0, 0, 1, 1], [], []>} : vector<128x128xbf16>, vector<128x32xbf16>, vector<128x32xf32> -> vector<128x32xf32>
      %c0_136 = arith.constant 0 : index
      %c32_137 = arith.constant 32 : index
      %240 = vector.load %arg8[%c0_136, %c32_137] : memref<1x128xf32, #tpu.memory_space<vmem>>, vector<1x32xf32>
      %241 = vector.broadcast %240 : vector<1x32xf32> to vector<128x32xf32>
      %242 = arith.addf %239, %241 : vector<128x32xf32>
      %c0_138 = arith.constant 0 : index
      %c32_139 = arith.constant 32 : index
      %243 = vector.load %arg9[%c0_138, %c32_139] : memref<128x128xbf16, #tpu.memory_space<vmem>>, vector<128x32xbf16>
      %cst_140 = arith.constant dense<0.000000e+00> : vector<128x32xf32>
      %244 = tpu.matmul %219, %243, %cst_140 {dimension_numbers = #tpu.dot_dimension_numbers<[1], [0], [0], [1], [0, 0, 1, 1], [], []>} : vector<128x128xbf16>, vector<128x32xbf16>, vector<128x32xf32> -> vector<128x32xf32>
      %c0_141 = arith.constant 0 : index
      %c32_142 = arith.constant 32 : index
      %245 = vector.load %arg10[%c0_141, %c32_142] : memref<1x128xf32, #tpu.memory_space<vmem>>, vector<1x32xf32>
      %246 = vector.broadcast %245 : vector<1x32xf32> to vector<128x32xf32>
      %247 = arith.addf %244, %246 : vector<128x32xf32>
      %248 = arith.truncf %242 : vector<128x32xf32> to vector<128x32xbf16>
      %c1_143 = arith.constant 1 : index
      %c0_144 = arith.constant 0 : index
      %c0_145 = arith.constant 0 : index
      %249 = vector.load %arg22[%c1_143, %c0_144, %c0_145] : memref<4x128x32xbf16, #tpu.memory_space<vmem>>, vector<1x128x32xbf16>
      %250 = vector.shape_cast %249 : vector<1x128x32xbf16> to vector<128x32xbf16>
      %251 = vector.shape_cast %248 : vector<128x32xbf16> to vector<1x128x32xbf16>
      tpu.vector_store %arg22[%c1_143, %c0_144, %c0_145], %251 {strides = array<i32>} : memref<4x128x32xbf16, #tpu.memory_space<vmem>>, vector<1x128x32xbf16>,
      %252 = arith.truncf %247 : vector<128x32xf32> to vector<128x32xbf16>
      %c1_146 = arith.constant 1 : index
      %c0_147 = arith.constant 0 : index
      %c0_148 = arith.constant 0 : index
      %253 = vector.load %arg23[%c1_146, %c0_147, %c0_148] : memref<4x128x32xbf16, #tpu.memory_space<vmem>>, vector<1x128x32xbf16>
      %254 = vector.shape_cast %253 : vector<1x128x32xbf16> to vector<128x32xbf16>
      %255 = vector.shape_cast %252 : vector<128x32xbf16> to vector<1x128x32xbf16>
      tpu.vector_store %arg23[%c1_146, %c0_147, %c0_148], %255 {strides = array<i32>} : memref<4x128x32xbf16, #tpu.memory_space<vmem>>, vector<1x128x32xbf16>,
      %c0_149 = arith.constant 0 : index
      %c64_150 = arith.constant 64 : index
      %256 = vector.load %arg7[%c0_149, %c64_150] : memref<128x128xbf16, #tpu.memory_space<vmem>>, vector<128x32xbf16>
      %cst_151 = arith.constant dense<0.000000e+00> : vector<128x32xf32>
      %257 = tpu.matmul %219, %256, %cst_151 {dimension_numbers = #tpu.dot_dimension_numbers<[1], [0], [0], [1], [0, 0, 1, 1], [], []>} : vector<128x128xbf16>, vector<128x32xbf16>, vector<128x32xf32> -> vector<128x32xf32>
      %c0_152 = arith.constant 0 : index
      %c64_153 = arith.constant 64 : index
      %258 = vector.load %arg8[%c0_152, %c64_153] : memref<1x128xf32, #tpu.memory_space<vmem>>, vector<1x32xf32>
      %259 = vector.broadcast %258 : vector<1x32xf32> to vector<128x32xf32>
      %260 = arith.addf %257, %259 : vector<128x32xf32>
      %c0_154 = arith.constant 0 : index
      %c64_155 = arith.constant 64 : index
      %261 = vector.load %arg9[%c0_154, %c64_155] : memref<128x128xbf16, #tpu.memory_space<vmem>>, vector<128x32xbf16>
      %cst_156 = arith.constant dense<0.000000e+00> : vector<128x32xf32>
      %262 = tpu.matmul %219, %261, %cst_156 {dimension_numbers = #tpu.dot_dimension_numbers<[1], [0], [0], [1], [0, 0, 1, 1], [], []>} : vector<128x128xbf16>, vector<128x32xbf16>, vector<128x32xf32> -> vector<128x32xf32>
      %c0_157 = arith.constant 0 : index
      %c64_158 = arith.constant 64 : index
      %263 = vector.load %arg10[%c0_157, %c64_158] : memref<1x128xf32, #tpu.memory_space<vmem>>, vector<1x32xf32>
      %264 = vector.broadcast %263 : vector<1x32xf32> to vector<128x32xf32>
      %265 = arith.addf %262, %264 : vector<128x32xf32>
      %266 = arith.truncf %260 : vector<128x32xf32> to vector<128x32xbf16>
      %c2_159 = arith.constant 2 : index
      %c0_160 = arith.constant 0 : index
      %c0_161 = arith.constant 0 : index
      %267 = vector.load %arg22[%c2_159, %c0_160, %c0_161] : memref<4x128x32xbf16, #tpu.memory_space<vmem>>, vector<1x128x32xbf16>
      %268 = vector.shape_cast %267 : vector<1x128x32xbf16> to vector<128x32xbf16>
      %269 = vector.shape_cast %266 : vector<128x32xbf16> to vector<1x128x32xbf16>
      tpu.vector_store %arg22[%c2_159, %c0_160, %c0_161], %269 {strides = array<i32>} : memref<4x128x32xbf16, #tpu.memory_space<vmem>>, vector<1x128x32xbf16>,
      %270 = arith.truncf %265 : vector<128x32xf32> to vector<128x32xbf16>
      %c2_162 = arith.constant 2 : index
      %c0_163 = arith.constant 0 : index
      %c0_164 = arith.constant 0 : index
      %271 = vector.load %arg23[%c2_162, %c0_163, %c0_164] : memref<4x128x32xbf16, #tpu.memory_space<vmem>>, vector<1x128x32xbf16>
      %272 = vector.shape_cast %271 : vector<1x128x32xbf16> to vector<128x32xbf16>
      %273 = vector.shape_cast %270 : vector<128x32xbf16> to vector<1x128x32xbf16>
      tpu.vector_store %arg23[%c2_162, %c0_163, %c0_164], %273 {strides = array<i32>} : memref<4x128x32xbf16, #tpu.memory_space<vmem>>, vector<1x128x32xbf16>,
      %c0_165 = arith.constant 0 : index
      %c96_166 = arith.constant 96 : index
      %274 = vector.load %arg7[%c0_165, %c96_166] : memref<128x128xbf16, #tpu.memory_space<vmem>>, vector<128x32xbf16>
      %cst_167 = arith.constant dense<0.000000e+00> : vector<128x32xf32>
      %275 = tpu.matmul %219, %274, %cst_167 {dimension_numbers = #tpu.dot_dimension_numbers<[1], [0], [0], [1], [0, 0, 1, 1], [], []>} : vector<128x128xbf16>, vector<128x32xbf16>, vector<128x32xf32> -> vector<128x32xf32>
      %c0_168 = arith.constant 0 : index
      %c96_169 = arith.constant 96 : index
      %276 = vector.load %arg8[%c0_168, %c96_169] : memref<1x128xf32, #tpu.memory_space<vmem>>, vector<1x32xf32>
      %277 = vector.broadcast %276 : vector<1x32xf32> to vector<128x32xf32>
      %278 = arith.addf %275, %277 : vector<128x32xf32>
      %c0_170 = arith.constant 0 : index
      %c96_171 = arith.constant 96 : index
      %279 = vector.load %arg9[%c0_170, %c96_171] : memref<128x128xbf16, #tpu.memory_space<vmem>>, vector<128x32xbf16>
      %cst_172 = arith.constant dense<0.000000e+00> : vector<128x32xf32>
      %280 = tpu.matmul %219, %279, %cst_172 {dimension_numbers = #tpu.dot_dimension_numbers<[1], [0], [0], [1], [0, 0, 1, 1], [], []>} : vector<128x128xbf16>, vector<128x32xbf16>, vector<128x32xf32> -> vector<128x32xf32>
      %c0_173 = arith.constant 0 : index
      %c96_174 = arith.constant 96 : index
      %281 = vector.load %arg10[%c0_173, %c96_174] : memref<1x128xf32, #tpu.memory_space<vmem>>, vector<1x32xf32>
      %282 = vector.broadcast %281 : vector<1x32xf32> to vector<128x32xf32>
      %283 = arith.addf %280, %282 : vector<128x32xf32>
      %284 = arith.truncf %278 : vector<128x32xf32> to vector<128x32xbf16>
      %c3_175 = arith.constant 3 : index
      %c0_176 = arith.constant 0 : index
      %c0_177 = arith.constant 0 : index
      %285 = vector.load %arg22[%c3_175, %c0_176, %c0_177] : memref<4x128x32xbf16, #tpu.memory_space<vmem>>, vector<1x128x32xbf16>
      %286 = vector.shape_cast %285 : vector<1x128x32xbf16> to vector<128x32xbf16>
      %287 = vector.shape_cast %284 : vector<128x32xbf16> to vector<1x128x32xbf16>
      tpu.vector_store %arg22[%c3_175, %c0_176, %c0_177], %287 {strides = array<i32>} : memref<4x128x32xbf16, #tpu.memory_space<vmem>>, vector<1x128x32xbf16>,
      %288 = arith.truncf %283 : vector<128x32xf32> to vector<128x32xbf16>
      %c3_178 = arith.constant 3 : index
      %c0_179 = arith.constant 0 : index
      %c0_180 = arith.constant 0 : index
      %289 = vector.load %arg23[%c3_178, %c0_179, %c0_180] : memref<4x128x32xbf16, #tpu.memory_space<vmem>>, vector<1x128x32xbf16>
      %290 = vector.shape_cast %289 : vector<1x128x32xbf16> to vector<128x32xbf16>
      %291 = vector.shape_cast %288 : vector<128x32xbf16> to vector<1x128x32xbf16>
      tpu.vector_store %arg23[%c3_178, %c0_179, %c0_180], %291 {strides = array<i32>} : memref<4x128x32xbf16, #tpu.memory_space<vmem>>, vector<1x128x32xbf16>,
    } else {
    }
    %c64_i32 = arith.constant 64 : i32
    %3 = arith.muli %arg1, %c64_i32 : i32
    %4 = tpu.assume_multiple %3, 64 : i32
    %c0 = arith.constant 0 : index
    %c0_1 = arith.constant 0 : index
    %c0_2 = arith.constant 0 : index
    %5 = vector.load %arg2[%c0, %c0_1, %c0_2] : memref<1x64x128xf32, #tpu.memory_space<vmem>>, vector<1x64x128xf32>
    %6 = vector.shape_cast %5 : vector<1x64x128xf32> to vector<64x128xf32>
    %c0_3 = arith.constant 0 : index
    %7 = arith.index_cast %4 : i32 to index
    %c0_4 = arith.constant 0 : index
    %8 = vector.load %arg3[%c0_3, %7, %c0_4] : memref<1x128x128xbf16, #tpu.memory_space<vmem>>, vector<1x64x128xbf16>
    %9 = vector.shape_cast %8 : vector<1x64x128xbf16> to vector<64x128xbf16>
    %c0_5 = arith.constant 0 : index
    %c0_6 = arith.constant 0 : index
    %c0_7 = arith.constant 0 : index
    %10 = vector.load %arg4[%c0_5, %c0_6, %c0_7] : memref<1x1x128xf32, #tpu.memory_space<vmem>>, vector<1x1x128xf32>
    %11 = vector.shape_cast %10 : vector<1x1x128xf32> to vector<1x128xf32>
    %cst = arith.constant 0.000000e+00 : f32
    %12 = vector.broadcast %cst : f32 to vector<64x128xf32>
    %c0_8 = arith.constant 0 : index
    %c0_9 = arith.constant 0 : index
    %13 = vector.load %arg5[%c0_8, %c0_9] : memref<128x128xbf16, #tpu.memory_space<vmem>>, vector<128x32xbf16>
    %cst_10 = arith.constant dense<0.000000e+00> : vector<64x32xf32>
    %14 = tpu.matmul %9, %13, %cst_10 {dimension_numbers = #tpu.dot_dimension_numbers<[1], [0], [0], [1], [0, 0, 1, 1], [], []>} : vector<64x128xbf16>, vector<128x32xbf16>, vector<64x32xf32> -> vector<64x32xf32>
    %c0_11 = arith.constant 0 : index
    %c0_12 = arith.constant 0 : index
    %15 = vector.load %arg6[%c0_11, %c0_12] : memref<1x128xf32, #tpu.memory_space<vmem>>, vector<1x32xf32>
    %16 = vector.broadcast %15 : vector<1x32xf32> to vector<64x32xf32>
    %17 = arith.addf %14, %16 : vector<64x32xf32>
    %18 = arith.truncf %17 : vector<64x32xf32> to vector<64x32xbf16>
    %c0_13 = arith.constant 0 : index
    %c0_14 = arith.constant 0 : index
    %c0_15 = arith.constant 0 : index
    %19 = vector.load %arg22[%c0_13, %c0_14, %c0_15] : memref<4x128x32xbf16, #tpu.memory_space<vmem>>, vector<1x128x32xbf16>
    %20 = vector.shape_cast %19 : vector<1x128x32xbf16> to vector<128x32xbf16>
    %cst_16 = arith.constant dense<0.000000e+00> : vector<64x128xf32>
    %21 = tpu.matmul %18, %20, %cst_16 {dimension_numbers = #tpu.dot_dimension_numbers<[1], [1], [0], [0], [0, 0, 1, 0], [], []>} : vector<64x32xbf16>, vector<128x32xbf16>, vector<64x128xf32> -> vector<64x128xf32>
    %22 = vector.broadcast %11 : vector<1x128xf32> to vector<64x128xf32>
    %23 = arith.addf %21, %22 : vector<64x128xf32>
    %cst_17 = arith.constant dense<0xFF800000> : vector<64xf32>
    %24 = vector.multi_reduction <maximumf>, %23, %cst_17 [1] : vector<64x128xf32> to vector<64xf32>
    %25 = vector.shape_cast %24 : vector<64xf32> to vector<64x1xf32>
    %26 = vector.broadcast %25 : vector<64x1xf32> to vector<64x128xf32>
    %27 = arith.subf %23, %26 : vector<64x128xf32>
    %28 = math.exp %27 : vector<64x128xf32>
    %cst_18 = arith.constant dense<0.000000e+00> : vector<64xf32>
    %29 = vector.multi_reduction <add>, %28, %cst_18 [1] : vector<64x128xf32> to vector<64xf32>
    %30 = vector.shape_cast %29 : vector<64xf32> to vector<64x1xf32>
    %31 = tpu.reciprocal %30 {approx = true} : vector<64x1xf32> -> vector<64x1xf32>
    %32 = vector.broadcast %31 : vector<64x1xf32> to vector<64x128xf32>
    %33 = arith.mulf %28, %32 : vector<64x128xf32>
    %34 = arith.truncf %33 : vector<64x128xf32> to vector<64x128xbf16>
    %c0_19 = arith.constant 0 : index
    %c0_20 = arith.constant 0 : index
    %c0_21 = arith.constant 0 : index
    %35 = vector.load %arg23[%c0_19, %c0_20, %c0_21] : memref<4x128x32xbf16, #tpu.memory_space<vmem>>, vector<1x128x32xbf16>
    %36 = vector.shape_cast %35 : vector<1x128x32xbf16> to vector<128x32xbf16>
    %cst_22 = arith.constant dense<0.000000e+00> : vector<64x32xf32>
    %37 = tpu.matmul %34, %36, %cst_22 {dimension_numbers = #tpu.dot_dimension_numbers<[1], [0], [0], [1], [0, 0, 1, 1], [], []>} : vector<64x128xbf16>, vector<128x32xbf16>, vector<64x32xf32> -> vector<64x32xf32>
    %38 = arith.truncf %37 : vector<64x32xf32> to vector<64x32xbf16>
    %c0_23 = arith.constant 0 : index
    %c0_24 = arith.constant 0 : index
    %39 = vector.load %arg11[%c0_23, %c0_24] : memref<128x128xbf16, #tpu.memory_space<vmem>>, vector<32x128xbf16>
    %cst_25 = arith.constant dense<0.000000e+00> : vector<64x128xf32>
    %40 = tpu.matmul %38, %39, %cst_25 {dimension_numbers = #tpu.dot_dimension_numbers<[1], [0], [0], [1], [0, 0, 1, 1], [], []>} : vector<64x32xbf16>, vector<32x128xbf16>, vector<64x128xf32> -> vector<64x128xf32>
    %41 = arith.addf %12, %40 : vector<64x128xf32>
    %c0_26 = arith.constant 0 : index
    %c32 = arith.constant 32 : index
    %42 = vector.load %arg5[%c0_26, %c32] : memref<128x128xbf16, #tpu.memory_space<vmem>>, vector<128x32xbf16>
    %cst_27 = arith.constant dense<0.000000e+00> : vector<64x32xf32>
    %43 = tpu.matmul %9, %42, %cst_27 {dimension_numbers = #tpu.dot_dimension_numbers<[1], [0], [0], [1], [0, 0, 1, 1], [], []>} : vector<64x128xbf16>, vector<128x32xbf16>, vector<64x32xf32> -> vector<64x32xf32>
    %c0_28 = arith.constant 0 : index
    %c32_29 = arith.constant 32 : index
    %44 = vector.load %arg6[%c0_28, %c32_29] : memref<1x128xf32, #tpu.memory_space<vmem>>, vector<1x32xf32>
    %45 = vector.broadcast %44 : vector<1x32xf32> to vector<64x32xf32>
    %46 = arith.addf %43, %45 : vector<64x32xf32>
    %47 = arith.truncf %46 : vector<64x32xf32> to vector<64x32xbf16>
    %c1 = arith.constant 1 : index
    %c0_30 = arith.constant 0 : index
    %c0_31 = arith.constant 0 : index
    %48 = vector.load %arg22[%c1, %c0_30, %c0_31] : memref<4x128x32xbf16, #tpu.memory_space<vmem>>, vector<1x128x32xbf16>
    %49 = vector.shape_cast %48 : vector<1x128x32xbf16> to vector<128x32xbf16>
    %cst_32 = arith.constant dense<0.000000e+00> : vector<64x128xf32>
    %50 = tpu.matmul %47, %49, %cst_32 {dimension_numbers = #tpu.dot_dimension_numbers<[1], [1], [0], [0], [0, 0, 1, 0], [], []>} : vector<64x32xbf16>, vector<128x32xbf16>, vector<64x128xf32> -> vector<64x128xf32>
    %51 = vector.broadcast %11 : vector<1x128xf32> to vector<64x128xf32>
    %52 = arith.addf %50, %51 : vector<64x128xf32>
    %cst_33 = arith.constant dense<0xFF800000> : vector<64xf32>
    %53 = vector.multi_reduction <maximumf>, %52, %cst_33 [1] : vector<64x128xf32> to vector<64xf32>
    %54 = vector.shape_cast %53 : vector<64xf32> to vector<64x1xf32>
    %55 = vector.broadcast %54 : vector<64x1xf32> to vector<64x128xf32>
    %56 = arith.subf %52, %55 : vector<64x128xf32>
    %57 = math.exp %56 : vector<64x128xf32>
    %cst_34 = arith.constant dense<0.000000e+00> : vector<64xf32>
    %58 = vector.multi_reduction <add>, %57, %cst_34 [1] : vector<64x128xf32> to vector<64xf32>
    %59 = vector.shape_cast %58 : vector<64xf32> to vector<64x1xf32>
    %60 = tpu.reciprocal %59 {approx = true} : vector<64x1xf32> -> vector<64x1xf32>
    %61 = vector.broadcast %60 : vector<64x1xf32> to vector<64x128xf32>
    %62 = arith.mulf %57, %61 : vector<64x128xf32>
    %63 = arith.truncf %62 : vector<64x128xf32> to vector<64x128xbf16>
    %c1_35 = arith.constant 1 : index
    %c0_36 = arith.constant 0 : index
    %c0_37 = arith.constant 0 : index
    %64 = vector.load %arg23[%c1_35, %c0_36, %c0_37] : memref<4x128x32xbf16, #tpu.memory_space<vmem>>, vector<1x128x32xbf16>
    %65 = vector.shape_cast %64 : vector<1x128x32xbf16> to vector<128x32xbf16>
    %cst_38 = arith.constant dense<0.000000e+00> : vector<64x32xf32>
    %66 = tpu.matmul %63, %65, %cst_38 {dimension_numbers = #tpu.dot_dimension_numbers<[1], [0], [0], [1], [0, 0, 1, 1], [], []>} : vector<64x128xbf16>, vector<128x32xbf16>, vector<64x32xf32> -> vector<64x32xf32>
    %67 = arith.truncf %66 : vector<64x32xf32> to vector<64x32xbf16>
    %c32_39 = arith.constant 32 : index
    %c0_40 = arith.constant 0 : index
    %68 = vector.load %arg11[%c32_39, %c0_40] : memref<128x128xbf16, #tpu.memory_space<vmem>>, vector<32x128xbf16>
    %cst_41 = arith.constant dense<0.000000e+00> : vector<64x128xf32>
    %69 = tpu.matmul %67, %68, %cst_41 {dimension_numbers = #tpu.dot_dimension_numbers<[1], [0], [0], [1], [0, 0, 1, 1], [], []>} : vector<64x32xbf16>, vector<32x128xbf16>, vector<64x128xf32> -> vector<64x128xf32>
    %70 = arith.addf %41, %69 : vector<64x128xf32>
    %c0_42 = arith.constant 0 : index
    %c64 = arith.constant 64 : index
    %71 = vector.load %arg5[%c0_42, %c64] : memref<128x128xbf16, #tpu.memory_space<vmem>>, vector<128x32xbf16>
    %cst_43 = arith.constant dense<0.000000e+00> : vector<64x32xf32>
    %72 = tpu.matmul %9, %71, %cst_43 {dimension_numbers = #tpu.dot_dimension_numbers<[1], [0], [0], [1], [0, 0, 1, 1], [], []>} : vector<64x128xbf16>, vector<128x32xbf16>, vector<64x32xf32> -> vector<64x32xf32>
    %c0_44 = arith.constant 0 : index
    %c64_45 = arith.constant 64 : index
    %73 = vector.load %arg6[%c0_44, %c64_45] : memref<1x128xf32, #tpu.memory_space<vmem>>, vector<1x32xf32>
    %74 = vector.broadcast %73 : vector<1x32xf32> to vector<64x32xf32>
    %75 = arith.addf %72, %74 : vector<64x32xf32>
    %76 = arith.truncf %75 : vector<64x32xf32> to vector<64x32xbf16>
    %c2 = arith.constant 2 : index
    %c0_46 = arith.constant 0 : index
    %c0_47 = arith.constant 0 : index
    %77 = vector.load %arg22[%c2, %c0_46, %c0_47] : memref<4x128x32xbf16, #tpu.memory_space<vmem>>, vector<1x128x32xbf16>
    %78 = vector.shape_cast %77 : vector<1x128x32xbf16> to vector<128x32xbf16>
    %cst_48 = arith.constant dense<0.000000e+00> : vector<64x128xf32>
    %79 = tpu.matmul %76, %78, %cst_48 {dimension_numbers = #tpu.dot_dimension_numbers<[1], [1], [0], [0], [0, 0, 1, 0], [], []>} : vector<64x32xbf16>, vector<128x32xbf16>, vector<64x128xf32> -> vector<64x128xf32>
    %80 = vector.broadcast %11 : vector<1x128xf32> to vector<64x128xf32>
    %81 = arith.addf %79, %80 : vector<64x128xf32>
    %cst_49 = arith.constant dense<0xFF800000> : vector<64xf32>
    %82 = vector.multi_reduction <maximumf>, %81, %cst_49 [1] : vector<64x128xf32> to vector<64xf32>
    %83 = vector.shape_cast %82 : vector<64xf32> to vector<64x1xf32>
    %84 = vector.broadcast %83 : vector<64x1xf32> to vector<64x128xf32>
    %85 = arith.subf %81, %84 : vector<64x128xf32>
    %86 = math.exp %85 : vector<64x128xf32>
    %cst_50 = arith.constant dense<0.000000e+00> : vector<64xf32>
    %87 = vector.multi_reduction <add>, %86, %cst_50 [1] : vector<64x128xf32> to vector<64xf32>
    %88 = vector.shape_cast %87 : vector<64xf32> to vector<64x1xf32>
    %89 = tpu.reciprocal %88 {approx = true} : vector<64x1xf32> -> vector<64x1xf32>
    %90 = vector.broadcast %89 : vector<64x1xf32> to vector<64x128xf32>
    %91 = arith.mulf %86, %90 : vector<64x128xf32>
    %92 = arith.truncf %91 : vector<64x128xf32> to vector<64x128xbf16>
    %c2_51 = arith.constant 2 : index
    %c0_52 = arith.constant 0 : index
    %c0_53 = arith.constant 0 : index
    %93 = vector.load %arg23[%c2_51, %c0_52, %c0_53] : memref<4x128x32xbf16, #tpu.memory_space<vmem>>, vector<1x128x32xbf16>
    %94 = vector.shape_cast %93 : vector<1x128x32xbf16> to vector<128x32xbf16>
    %cst_54 = arith.constant dense<0.000000e+00> : vector<64x32xf32>
    %95 = tpu.matmul %92, %94, %cst_54 {dimension_numbers = #tpu.dot_dimension_numbers<[1], [0], [0], [1], [0, 0, 1, 1], [], []>} : vector<64x128xbf16>, vector<128x32xbf16>, vector<64x32xf32> -> vector<64x32xf32>
    %96 = arith.truncf %95 : vector<64x32xf32> to vector<64x32xbf16>
    %c64_55 = arith.constant 64 : index
    %c0_56 = arith.constant 0 : index
    %97 = vector.load %arg11[%c64_55, %c0_56] : memref<128x128xbf16, #tpu.memory_space<vmem>>, vector<32x128xbf16>
    %cst_57 = arith.constant dense<0.000000e+00> : vector<64x128xf32>
    %98 = tpu.matmul %96, %97, %cst_57 {dimension_numbers = #tpu.dot_dimension_numbers<[1], [0], [0], [1], [0, 0, 1, 1], [], []>} : vector<64x32xbf16>, vector<32x128xbf16>, vector<64x128xf32> -> vector<64x128xf32>
    %99 = arith.addf %70, %98 : vector<64x128xf32>
    %c0_58 = arith.constant 0 : index
    %c96 = arith.constant 96 : index
    %100 = vector.load %arg5[%c0_58, %c96] : memref<128x128xbf16, #tpu.memory_space<vmem>>, vector<128x32xbf16>
    %cst_59 = arith.constant dense<0.000000e+00> : vector<64x32xf32>
    %101 = tpu.matmul %9, %100, %cst_59 {dimension_numbers = #tpu.dot_dimension_numbers<[1], [0], [0], [1], [0, 0, 1, 1], [], []>} : vector<64x128xbf16>, vector<128x32xbf16>, vector<64x32xf32> -> vector<64x32xf32>
    %c0_60 = arith.constant 0 : index
    %c96_61 = arith.constant 96 : index
    %102 = vector.load %arg6[%c0_60, %c96_61] : memref<1x128xf32, #tpu.memory_space<vmem>>, vector<1x32xf32>
    %103 = vector.broadcast %102 : vector<1x32xf32> to vector<64x32xf32>
    %104 = arith.addf %101, %103 : vector<64x32xf32>
    %105 = arith.truncf %104 : vector<64x32xf32> to vector<64x32xbf16>
    %c3 = arith.constant 3 : index
    %c0_62 = arith.constant 0 : index
    %c0_63 = arith.constant 0 : index
    %106 = vector.load %arg22[%c3, %c0_62, %c0_63] : memref<4x128x32xbf16, #tpu.memory_space<vmem>>, vector<1x128x32xbf16>
    %107 = vector.shape_cast %106 : vector<1x128x32xbf16> to vector<128x32xbf16>
    %cst_64 = arith.constant dense<0.000000e+00> : vector<64x128xf32>
    %108 = tpu.matmul %105, %107, %cst_64 {dimension_numbers = #tpu.dot_dimension_numbers<[1], [1], [0], [0], [0, 0, 1, 0], [], []>} : vector<64x32xbf16>, vector<128x32xbf16>, vector<64x128xf32> -> vector<64x128xf32>
    %109 = vector.broadcast %11 : vector<1x128xf32> to vector<64x128xf32>
    %110 = arith.addf %108, %109 : vector<64x128xf32>
    %cst_65 = arith.constant dense<0xFF800000> : vector<64xf32>
    %111 = vector.multi_reduction <maximumf>, %110, %cst_65 [1] : vector<64x128xf32> to vector<64xf32>
    %112 = vector.shape_cast %111 : vector<64xf32> to vector<64x1xf32>
    %113 = vector.broadcast %112 : vector<64x1xf32> to vector<64x128xf32>
    %114 = arith.subf %110, %113 : vector<64x128xf32>
    %115 = math.exp %114 : vector<64x128xf32>
    %cst_66 = arith.constant dense<0.000000e+00> : vector<64xf32>
    %116 = vector.multi_reduction <add>, %115, %cst_66 [1] : vector<64x128xf32> to vector<64xf32>
    %117 = vector.shape_cast %116 : vector<64xf32> to vector<64x1xf32>
    %118 = tpu.reciprocal %117 {approx = true} : vector<64x1xf32> -> vector<64x1xf32>
    %119 = vector.broadcast %118 : vector<64x1xf32> to vector<64x128xf32>
    %120 = arith.mulf %115, %119 : vector<64x128xf32>
    %121 = arith.truncf %120 : vector<64x128xf32> to vector<64x128xbf16>
    %c3_67 = arith.constant 3 : index
    %c0_68 = arith.constant 0 : index
    %c0_69 = arith.constant 0 : index
    %122 = vector.load %arg23[%c3_67, %c0_68, %c0_69] : memref<4x128x32xbf16, #tpu.memory_space<vmem>>, vector<1x128x32xbf16>
    %123 = vector.shape_cast %122 : vector<1x128x32xbf16> to vector<128x32xbf16>
    %cst_70 = arith.constant dense<0.000000e+00> : vector<64x32xf32>
    %124 = tpu.matmul %121, %123, %cst_70 {dimension_numbers = #tpu.dot_dimension_numbers<[1], [0], [0], [1], [0, 0, 1, 1], [], []>} : vector<64x128xbf16>, vector<128x32xbf16>, vector<64x32xf32> -> vector<64x32xf32>
    %125 = arith.truncf %124 : vector<64x32xf32> to vector<64x32xbf16>
    %c96_71 = arith.constant 96 : index
    %c0_72 = arith.constant 0 : index
    %126 = vector.load %arg11[%c96_71, %c0_72] : memref<128x128xbf16, #tpu.memory_space<vmem>>, vector<32x128xbf16>
    %cst_73 = arith.constant dense<0.000000e+00> : vector<64x128xf32>
    %127 = tpu.matmul %125, %126, %cst_73 {dimension_numbers = #tpu.dot_dimension_numbers<[1], [0], [0], [1], [0, 0, 1, 1], [], []>} : vector<64x32xbf16>, vector<32x128xbf16>, vector<64x128xf32> -> vector<64x128xf32>
    %128 = arith.addf %99, %127 : vector<64x128xf32>
    %c0_74 = arith.constant 0 : index
    %c0_75 = arith.constant 0 : index
    %129 = vector.load %arg12[%c0_74, %c0_75] : memref<1x128xf32, #tpu.memory_space<vmem>>, vector<1x128xf32>
    %130 = vector.broadcast %129 : vector<1x128xf32> to vector<64x128xf32>
    %131 = arith.addf %128, %130 : vector<64x128xf32>
    %132 = arith.addf %6, %131 : vector<64x128xf32>
    %c0_76 = arith.constant 0 : index
    %c0_77 = arith.constant 0 : index
    %133 = vector.load %arg13[%c0_76, %c0_77] : memref<1x128xf32, #tpu.memory_space<vmem>>, vector<1x128xf32>
    %c0_78 = arith.constant 0 : index
    %c0_79 = arith.constant 0 : index
    %134 = vector.load %arg14[%c0_78, %c0_79] : memref<1x128xf32, #tpu.memory_space<vmem>>, vector<1x128xf32>
    %cst_80 = arith.constant dense<0.000000e+00> : vector<64xf32>
    %135 = vector.multi_reduction <add>, %132, %cst_80 [1] : vector<64x128xf32> to vector<64xf32>
    %136 = vector.shape_cast %135 : vector<64xf32> to vector<64x1xf32>
    %cst_81 = arith.constant 1.280000e+02 : f32
    %137 = vector.broadcast %cst_81 : f32 to vector<64x1xf32>
    %138 = arith.divf %136, %137 : vector<64x1xf32>
    %139 = vector.broadcast %138 : vector<64x1xf32> to vector<64x128xf32>
    %140 = arith.subf %132, %139 : vector<64x128xf32>
    %141 = arith.mulf %140, %140 : vector<64x128xf32>
    %cst_82 = arith.constant dense<0.000000e+00> : vector<64xf32>
    %142 = vector.multi_reduction <add>, %141, %cst_82 [1] : vector<64x128xf32> to vector<64xf32>
    %143 = vector.shape_cast %142 : vector<64xf32> to vector<64x1xf32>
    %cst_83 = arith.constant 0.00787401571 : f32
    %144 = vector.broadcast %cst_83 : f32 to vector<64x1xf32>
    %145 = arith.mulf %143, %144 : vector<64x1xf32>
    %146 = math.sqrt %145 : vector<64x1xf32>
    %147 = vector.broadcast %133 : vector<1x128xf32> to vector<64x128xf32>
    %148 = arith.mulf %147, %140 : vector<64x128xf32>
    %cst_84 = arith.constant 9.99999997E-7 : f32
    %149 = vector.broadcast %cst_84 : f32 to vector<64x1xf32>
    %150 = arith.addf %146, %149 : vector<64x1xf32>
    %151 = vector.broadcast %150 : vector<64x1xf32> to vector<64x128xf32>
    %152 = arith.divf %148, %151 : vector<64x128xf32>
    %153 = vector.broadcast %134 : vector<1x128xf32> to vector<64x128xf32>
    %154 = arith.addf %152, %153 : vector<64x128xf32>
    %155 = arith.truncf %154 : vector<64x128xf32> to vector<64x128xbf16>
    %cst_85 = arith.constant 0.000000e+00 : f32
    %156 = vector.broadcast %cst_85 : f32 to vector<64x128xf32>
    %c0_i32_86 = arith.constant 0 : i32
    %c128_i32 = arith.constant 128 : i32
    %157 = arith.muli %c0_i32_86, %c128_i32 : i32
    %158 = tpu.assume_multiple %157, 128 : i32
    %c0_87 = arith.constant 0 : index
    %159 = arith.index_cast %158 : i32 to index
    %160 = vector.load %arg17[%c0_87, %159] : memref<128x256xbf16, #tpu.memory_space<vmem>>, vector<128x128xbf16>
    %cst_88 = arith.constant dense<0.000000e+00> : vector<64x128xf32>
    %161 = tpu.matmul %155, %160, %cst_88 {dimension_numbers = #tpu.dot_dimension_numbers<[1], [0], [0], [1], [0, 0, 1, 1], [], []>} : vector<64x128xbf16>, vector<128x128xbf16>, vector<64x128xf32> -> vector<64x128xf32>
    %c0_89 = arith.constant 0 : index
    %162 = arith.index_cast %158 : i32 to index
    %163 = vector.load %arg18[%c0_89, %162] : memref<1x256xf32, #tpu.memory_space<vmem>>, vector<1x128xf32>
    %164 = vector.broadcast %163 : vector<1x128xf32> to vector<64x128xf32>
    %165 = arith.addf %161, %164 : vector<64x128xf32>
    %cst_90 = arith.constant 0.000000e+00 : f32
    %166 = vector.broadcast %cst_90 : f32 to vector<64x128xf32>
    %167 = arith.maximumf %165, %166 : vector<64x128xf32>
    %168 = arith.truncf %167 : vector<64x128xf32> to vector<64x128xbf16>
    %169 = arith.index_cast %158 : i32 to index
    %c0_91 = arith.constant 0 : index
    %170 = vector.load %arg19[%169, %c0_91] : memref<256x128xbf16, #tpu.memory_space<vmem>>, vector<128x128xbf16>
    %cst_92 = arith.constant dense<0.000000e+00> : vector<64x128xf32>
    %171 = tpu.matmul %168, %170, %cst_92 {dimension_numbers = #tpu.dot_dimension_numbers<[1], [0], [0], [1], [0, 0, 1, 1], [], []>} : vector<64x128xbf16>, vector<128x128xbf16>, vector<64x128xf32> -> vector<64x128xf32>
    %172 = arith.addf %156, %171 : vector<64x128xf32>
    %c1_i32 = arith.constant 1 : i32
    %c128_i32_93 = arith.constant 128 : i32
    %173 = arith.muli %c1_i32, %c128_i32_93 : i32
    %174 = tpu.assume_multiple %173, 128 : i32
    %c0_94 = arith.constant 0 : index
    %175 = arith.index_cast %174 : i32 to index
    %176 = vector.load %arg17[%c0_94, %175] : memref<128x256xbf16, #tpu.memory_space<vmem>>, vector<128x128xbf16>
    %cst_95 = arith.constant dense<0.000000e+00> : vector<64x128xf32>
    %177 = tpu.matmul %155, %176, %cst_95 {dimension_numbers = #tpu.dot_dimension_numbers<[1], [0], [0], [1], [0, 0, 1, 1], [], []>} : vector<64x128xbf16>, vector<128x128xbf16>, vector<64x128xf32> -> vector<64x128xf32>
    %c0_96 = arith.constant 0 : index
    %178 = arith.index_cast %174 : i32 to index
    %179 = vector.load %arg18[%c0_96, %178] : memref<1x256xf32, #tpu.memory_space<vmem>>, vector<1x128xf32>
    %180 = vector.broadcast %179 : vector<1x128xf32> to vector<64x128xf32>
    %181 = arith.addf %177, %180 : vector<64x128xf32>
    %cst_97 = arith.constant 0.000000e+00 : f32
    %182 = vector.broadcast %cst_97 : f32 to vector<64x128xf32>
    %183 = arith.maximumf %181, %182 : vector<64x128xf32>
    %184 = arith.truncf %183 : vector<64x128xf32> to vector<64x128xbf16>
    %185 = arith.index_cast %174 : i32 to index
    %c0_98 = arith.constant 0 : index
    %186 = vector.load %arg19[%185, %c0_98] : memref<256x128xbf16, #tpu.memory_space<vmem>>, vector<128x128xbf16>
    %cst_99 = arith.constant dense<0.000000e+00> : vector<64x128xf32>
    %187 = tpu.matmul %184, %186, %cst_99 {dimension_numbers = #tpu.dot_dimension_numbers<[1], [0], [0], [1], [0, 0, 1, 1], [], []>} : vector<64x128xbf16>, vector<128x128xbf16>, vector<64x128xf32> -> vector<64x128xf32>
    %188 = arith.addf %172, %187 : vector<64x128xf32>
    %c2_i32 = arith.constant 2 : i32
    %c0_100 = arith.constant 0 : index
    %c0_101 = arith.constant 0 : index
    %189 = vector.load %arg20[%c0_100, %c0_101] : memref<1x128xf32, #tpu.memory_space<vmem>>, vector<1x128xf32>
    %190 = vector.broadcast %189 : vector<1x128xf32> to vector<64x128xf32>
    %191 = arith.addf %188, %190 : vector<64x128xf32>
    %192 = arith.addf %154, %191 : vector<64x128xf32>
    %c0_102 = arith.constant 0 : index
    %c0_103 = arith.constant 0 : index
    %193 = vector.load %arg15[%c0_102, %c0_103] : memref<1x128xf32, #tpu.memory_space<vmem>>, vector<1x128xf32>
    %c0_104 = arith.constant 0 : index
    %c0_105 = arith.constant 0 : index
    %194 = vector.load %arg16[%c0_104, %c0_105] : memref<1x128xf32, #tpu.memory_space<vmem>>, vector<1x128xf32>
    %cst_106 = arith.constant dense<0.000000e+00> : vector<64xf32>
    %195 = vector.multi_reduction <add>, %192, %cst_106 [1] : vector<64x128xf32> to vector<64xf32>
    %196 = vector.shape_cast %195 : vector<64xf32> to vector<64x1xf32>
    %cst_107 = arith.constant 1.280000e+02 : f32
    %197 = vector.broadcast %cst_107 : f32 to vector<64x1xf32>
    %198 = arith.divf %196, %197 : vector<64x1xf32>
    %199 = vector.broadcast %198 : vector<64x1xf32> to vector<64x128xf32>
    %200 = arith.subf %192, %199 : vector<64x128xf32>
    %201 = arith.mulf %200, %200 : vector<64x128xf32>
    %cst_108 = arith.constant dense<0.000000e+00> : vector<64xf32>
    %202 = vector.multi_reduction <add>, %201, %cst_108 [1] : vector<64x128xf32> to vector<64xf32>
    %203 = vector.shape_cast %202 : vector<64xf32> to vector<64x1xf32>
    %cst_109 = arith.constant 0.00787401571 : f32
    %204 = vector.broadcast %cst_109 : f32 to vector<64x1xf32>
    %205 = arith.mulf %203, %204 : vector<64x1xf32>
    %206 = math.sqrt %205 : vector<64x1xf32>
    %207 = vector.broadcast %193 : vector<1x128xf32> to vector<64x128xf32>
    %208 = arith.mulf %207, %200 : vector<64x128xf32>
    %cst_110 = arith.constant 9.99999997E-7 : f32
    %209 = vector.broadcast %cst_110 : f32 to vector<64x1xf32>
    %210 = arith.addf %206, %209 : vector<64x1xf32>
    %211 = vector.broadcast %210 : vector<64x1xf32> to vector<64x128xf32>
    %212 = arith.divf %208, %211 : vector<64x128xf32>
    %213 = vector.broadcast %194 : vector<1x128xf32> to vector<64x128xf32>
    %214 = arith.addf %212, %213 : vector<64x128xf32>
    %c0_111 = arith.constant 0 : index
    %c0_112 = arith.constant 0 : index
    %c0_113 = arith.constant 0 : index
    %215 = vector.load %arg21[%c0_111, %c0_112, %c0_113] : memref<1x64x128xf32, #tpu.memory_space<vmem>>, vector<1x64x128xf32>
    %216 = vector.shape_cast %215 : vector<1x64x128xf32> to vector<64x128xf32>
    %217 = vector.shape_cast %214 : vector<64x128xf32> to vector<1x64x128xf32>
    tpu.vector_store %arg21[%c0_111, %c0_112, %c0_113], %217 {strides = array<i32>} : memref<1x64x128xf32, #tpu.memory_space<vmem>>, vector<1x64x128xf32>,
    return
  }
  func.func @transform_0(%arg0: i32, %arg1: i32) -> (i32, i32, i32) {
    %c0_i32 = arith.constant 0 : i32
    %c0_i32_0 = arith.constant 0 : i32
    return %arg0, %arg1, %c0_i32 : i32, i32, i32
  }
  func.func @transform_1(%arg0: i32, %arg1: i32) -> (i32, i32, i32) {
    %c0_i32 = arith.constant 0 : i32
    %c0_i32_0 = arith.constant 0 : i32
    %c0_i32_1 = arith.constant 0 : i32
    return %arg0, %c0_i32, %c0_i32_0 : i32, i32, i32
  }
  func.func @transform_2(%arg0: i32, %arg1: i32) -> (i32, i32, i32) {
    %c0_i32 = arith.constant 0 : i32
    %c0_i32_0 = arith.constant 0 : i32
    %c0_i32_1 = arith.constant 0 : i32
    return %arg0, %c0_i32, %c0_i32_0 : i32, i32, i32
  }
  func.func @transform_3(%arg0: i32, %arg1: i32) -> (i32, i32) {
    %c0_i32 = arith.constant 0 : i32
    %c0_i32_0 = arith.constant 0 : i32
    %c0_i32_1 = arith.constant 0 : i32
    return %c0_i32, %c0_i32_0 : i32, i32
  }
  func.func @transform_4(%arg0: i32, %arg1: i32) -> (i32, i32) {
    %c0_i32 = arith.constant 0 : i32
    %c0_i32_0 = arith.constant 0 : i32
    %c0_i32_1 = arith.constant 0 : i32
    return %c0_i32, %c0_i32_0 : i32, i32
  }
  func.func @transform_5(%arg0: i32, %arg1: i32) -> (i32, i32) {
    %c0_i32 = arith.constant 0 : i32
    %c0_i32_0 = arith.constant 0 : i32
    %c0_i32_1 = arith.constant 0 : i32
    return %c0_i32, %c0_i32_0 : i32, i32
  }
  func.func @transform_6(%arg0: i32, %arg1: i32) -> (i32, i32) {
    %c0_i32 = arith.constant 0 : i32
    %c0_i32_0 = arith.constant 0 : i32
    %c0_i32_1 = arith.constant 0 : i32
    return %c0_i32, %c0_i32_0 : i32, i32
  }
  func.func @transform_7(%arg0: i32, %arg1: i32) -> (i32, i32) {
    %c0_i32 = arith.constant 0 : i32
    %c0_i32_0 = arith.constant 0 : i32
    %c0_i32_1 = arith.constant 0 : i32
    return %c0_i32, %c0_i32_0 : i32, i32
  }
  func.func @transform_8(%arg0: i32, %arg1: i32) -> (i32, i32) {
    %c0_i32 = arith.constant 0 : i32
    %c0_i32_0 = arith.constant 0 : i32
    %c0_i32_1 = arith.constant 0 : i32
    return %c0_i32, %c0_i32_0 : i32, i32
  }
  func.func @transform_9(%arg0: i32, %arg1: i32) -> (i32, i32) {
    %c0_i32 = arith.constant 0 : i32
    %c0_i32_0 = arith.constant 0 : i32
    %c0_i32_1 = arith.constant 0 : i32
    return %c0_i32, %c0_i32_0 : i32, i32
  }
  func.func @transform_10(%arg0: i32, %arg1: i32) -> (i32, i32) {
    %c0_i32 = arith.constant 0 : i32
    %c0_i32_0 = arith.constant 0 : i32
    %c0_i32_1 = arith.constant 0 : i32
    return %c0_i32, %c0_i32_0 : i32, i32
  }
  func.func @transform_11(%arg0: i32, %arg1: i32) -> (i32, i32) {
    %c0_i32 = arith.constant 0 : i32
    %c0_i32_0 = arith.constant 0 : i32
    %c0_i32_1 = arith.constant 0 : i32
    return %c0_i32, %c0_i32_0 : i32, i32
  }
  func.func @transform_12(%arg0: i32, %arg1: i32) -> (i32, i32) {
    %c0_i32 = arith.constant 0 : i32
    %c0_i32_0 = arith.constant 0 : i32
    %c0_i32_1 = arith.constant 0 : i32
    return %c0_i32, %c0_i32_0 : i32, i32
  }
  func.func @transform_13(%arg0: i32, %arg1: i32) -> (i32, i32) {
    %c0_i32 = arith.constant 0 : i32
    %c0_i32_0 = arith.constant 0 : i32
    %c0_i32_1 = arith.constant 0 : i32
    return %c0_i32, %c0_i32_0 : i32, i32
  }
  func.func @transform_14(%arg0: i32, %arg1: i32) -> (i32, i32) {
    %c0_i32 = arith.constant 0 : i32
    %c0_i32_0 = arith.constant 0 : i32
    %c0_i32_1 = arith.constant 0 : i32
    return %c0_i32, %c0_i32_0 : i32, i32
  }
  func.func @transform_15(%arg0: i32, %arg1: i32) -> (i32, i32) {
    %c0_i32 = arith.constant 0 : i32
    %c0_i32_0 = arith.constant 0 : i32
    %c0_i32_1 = arith.constant 0 : i32
    return %c0_i32, %c0_i32_0 : i32, i32
  }
  func.func @transform_16(%arg0: i32, %arg1: i32) -> (i32, i32) {
    %c0_i32 = arith.constant 0 : i32
    %c0_i32_0 = arith.constant 0 : i32
    %c0_i32_1 = arith.constant 0 : i32
    return %c0_i32, %c0_i32_0 : i32, i32
  }
  func.func @transform_17(%arg0: i32, %arg1: i32) -> (i32, i32) {
    %c0_i32 = arith.constant 0 : i32
    %c0_i32_0 = arith.constant 0 : i32
    %c0_i32_1 = arith.constant 0 : i32
    return %c0_i32, %c0_i32_0 : i32, i32
  }
  func.func @transform_18(%arg0: i32, %arg1: i32) -> (i32, i32) {
    %c0_i32 = arith.constant 0 : i32
    %c0_i32_0 = arith.constant 0 : i32
    %c0_i32_1 = arith.constant 0 : i32
    return %c0_i32, %c0_i32_0 : i32, i32
  }
  func.func @transform_19(%arg0: i32, %arg1: i32) -> (i32, i32, i32) {
    %c0_i32 = arith.constant 0 : i32
    %c0_i32_0 = arith.constant 0 : i32
    return %arg0, %arg1, %c0_i32 : i32, i32, i32
  }
}

</mosaic_0001>

<llo_original>
// kernel: tpu_custom_call.1
$region0: #{tpu_custom_call.1}
  #allocation0 [shape = 'u32[]', space=smem, size = 0x4, offset = 0x4, fixed_abs, tag = 'smem constant byte address 0x4 - core index']
  #allocation1 [shape = 'u32[72,128]{1,0:T(1,128)}', space=vmem, size = 0x9000, scoped, tag = 'internal scratch']
  #allocation2 [shape = 'bf16[4,128,32]{2,1,0:T(8,128)(2,1)}', space=vmem, size = 0x20000, scoped, tag = 'scratch operand']
  #allocation3 [shape = 'bf16[4,128,32]{2,1,0:T(8,128)(2,1)}', space=vmem, size = 0x20000, scoped, tag = 'scratch operand']
  %s0 = inlined_call_operand.hbm [shape: f32[2,128,128], index: 0, kind: input, shape index: {}]
  %s1 = inlined_call_operand.hbm [shape: bf16[2,128,128], index: 1, kind: input, shape index: {}]
  %s2 = inlined_call_operand.hbm [shape: f32[2,1,128], index: 2, kind: input, shape index: {}]
  %s3 = inlined_call_operand.hbm [shape: bf16[128,128], index: 3, kind: input, shape index: {}]
  %s4 = inlined_call_operand.vmem [shape: f32[1,128], index: 4, kind: input, shape index: {}]
  %s5 = inlined_call_operand.hbm [shape: bf16[128,128], index: 5, kind: input, shape index: {}]
  %s6 = inlined_call_operand.vmem [shape: f32[1,128], index: 6, kind: input, shape index: {}]
  %s7 = inlined_call_operand.hbm [shape: bf16[128,128], index: 7, kind: input, shape index: {}]
  %s8 = inlined_call_operand.vmem [shape: f32[1,128], index: 8, kind: input, shape index: {}]
  %s9 = inlined_call_operand.hbm [shape: bf16[128,128], index: 9, kind: input, shape index: {}]
  %s10 = inlined_call_operand.vmem [shape: f32[1,128], index: 10, kind: input, shape index: {}]
  %s11 = inlined_call_operand.vmem [shape: f32[1,128], index: 11, kind: input, shape index: {}]
  %s12 = inlined_call_operand.vmem [shape: f32[1,128], index: 12, kind: input, shape index: {}]
  %s13 = inlined_call_operand.vmem [shape: f32[1,128], index: 13, kind: input, shape index: {}]
  %s14 = inlined_call_operand.vmem [shape: f32[1,128], index: 14, kind: input, shape index: {}]
  %s15 = inlined_call_operand.hbm [shape: bf16[128,256], index: 15, kind: input, shape index: {}]
  %s16 = inlined_call_operand.vmem [shape: f32[1,256], index: 16, kind: input, shape index: {}]
  %s17 = inlined_call_operand.hbm [shape: bf16[256,128], index: 17, kind: input, shape index: {}]
  %s18 = inlined_call_operand.vmem [shape: f32[1,128], index: 18, kind: input, shape index: {}]
  %s19 = inlined_call_operand.hbm [shape: f32[2,128,128], index: 19, kind: output, shape index: {}]
  %s20 = sld [smem:[#allocation0]]
  $region149: #{tpu_custom_call.1} parent=0
    _
  %s22 = ssub.s32 1, %s20
  %s23 = scalar_select 0, %s22, %s20
  $region1: #{tpu_custom_call.1} parent=0
    #allocation4 [shape = 'u8[65536]{0}', space=vmem, size = 0x10000, scoped, tag = 'input window, operand 0']
    #allocation5 [shape = 's32[2]{0}', space=sflag, size = 0x8, scoped, tag = 'scoped memory for tpu_custom_call.1']
    #allocation6 [shape = 's32[2]{0}', space=sflag, size = 0x8, scoped, tag = 'scoped memory for tpu_custom_call.1']
    #allocation7 [shape = 'u8[65536]{0}', space=vmem, size = 0x10000, scoped, tag = 'input window, operand 1']
    #allocation8 [shape = 's32[2]{0}', space=sflag, size = 0x8, scoped, tag = 'scoped memory for tpu_custom_call.1']
    #allocation9 [shape = 'u8[1024]{0}', space=vmem, size = 0x400, scoped, tag = 'input window, operand 2']
    #allocation10 [shape = 'u8[32768]{0}', space=vmem, size = 0x8000, scoped, tag = 'input window, operand 3, single buffered']
    #allocation11 [shape = 's32[1]{0}', space=sflag, size = 0x4, scoped, tag = 'scoped memory for tpu_custom_call.1']
    #allocation12 [shape = 'u8[32768]{0}', space=vmem, size = 0x8000, scoped, tag = 'input window, operand 5, single buffered']
    #allocation13 [shape = 'u8[32768]{0}', space=vmem, size = 0x8000, scoped, tag = 'input window, operand 7, single buffered']
    #allocation14 [shape = 's32[1]{0}', space=sflag, size = 0x4, scoped, tag = 'scoped memory for tpu_custom_call.1']
    #allocation15 [shape = 'u8[32768]{0}', space=vmem, size = 0x8000, scoped, tag = 'input window, operand 9, single buffered']
    #allocation16 [shape = 'u8[65536]{0}', space=vmem, size = 0x10000, scoped, tag = 'input window, operand 15, single buffered']
    #allocation17 [shape = 's32[1]{0}', space=sflag, size = 0x4, scoped, tag = 'scoped memory for tpu_custom_call.1']
    #allocation18 [shape = 'u8[65536]{0}', space=vmem, size = 0x10000, scoped, tag = 'input window, operand 17, single buffered']
    #allocation19 [shape = 'u8[65536]{0}', space=vmem, size = 0x10000, scoped, tag = 'output window, operand 0']
    %24 = vsyncpa [#allocation5], 0
    %s25 = scalar_lea.sflag [#allocation5], 1
    %26 = vsyncpa %s25, 0
    %27 = vsyncpa [#allocation8], 0
    %s28 = scalar_lea.sflag [#allocation8], 1
    %29 = vsyncpa %s28, 0
    %30 = vsyncpa [#allocation11], 0
    %31 = vsyncpa [#allocation14], 0
    %32 = vsyncpa [#allocation17], 0
    %33 = vsyncpa [#allocation6], 0
    %s34 = scalar_lea.sflag [#allocation6], 1
    %35 = vsyncpa %s34, 0
    loop: start=0, step=1, limit=6
    $region2: #{tpu_custom_call.1} parent=1 // loop_pre_header
      _
    $region3: #{tpu_custom_call.1} parent=1 // loop_header
      %s37 = sphi 0, %s41
      %p38 = scmp.ge.s32.totalorder %s37, 6
      %s44 = sphi 0, %s56
      %s45 = sphi 0, %s52
      %s46 = sphi 0, %s44
      %s47 = sphi 0, %s45
      %s48 = sphi 0, %s46
      %s49 = sphi 0, %s47
      %s61 = sphi 0, %s63
      %s64 = sphi 0, %s61
      %s65 = sphi 0, %s64
      %s81 = sphi 0, %s65
      %s87 = sphi 0, %s89
      %s90 = sphi 0, %s87
      %s91 = sphi 0, %s90
      %s107 = sphi 0, %s91
      %s113 = sphi 0, %s115
      %s116 = sphi 0, %s113
      %s117 = sphi 0, %s116
      %s133 = sphi 0, %s117
      %s137 = sphi 0, %s137
      %s139 = sphi 0, %s137
      %s140 = sphi 0, %s139
      %s154 = sphi 0, %s140
      %s158 = sphi 0, %s158
      %s160 = sphi 0, %s158
      %s161 = sphi 0, %s160
      %s175 = sphi 0, %s161
      %s179 = sphi 0, %s179
      %s181 = sphi 0, %s179
      %s182 = sphi 0, %s181
      %s196 = sphi 0, %s182
      %s200 = sphi 0, %s200
      %s202 = sphi 0, %s200
      %s203 = sphi 0, %s202
      %s217 = sphi 0, %s203
      %s221 = sphi 0, %s221
      %s223 = sphi 0, %s221
      %s224 = sphi 0, %s223
      %s238 = sphi 0, %s224
      %s242 = sphi 0, %s242
      %s244 = sphi 0, %s242
      %s245 = sphi 0, %s244
      %s259 = sphi 0, %s245
      %s263 = sphi 0, %s263
      %s265 = sphi 0, %s263
      %s266 = sphi 0, %s265
      %s280 = sphi 0, %s266
      %s284 = sphi 0, %s284
      %s286 = sphi 0, %s284
      %s287 = sphi 0, %s286
      %s301 = sphi 0, %s287
      %s305 = sphi 0, %s305
      %s307 = sphi 0, %s305
      %s308 = sphi 0, %s307
      %s322 = sphi 0, %s308
      %s326 = sphi 0, %s326
      %s328 = sphi 0, %s326
      %s329 = sphi 0, %s328
      %s343 = sphi 0, %s329
      %s347 = sphi 0, %s347
      %s349 = sphi 0, %s347
      %s350 = sphi 0, %s349
      %s364 = sphi 0, %s350
      %s368 = sphi 0, %s368
      %s370 = sphi 0, %s368
      %s371 = sphi 0, %s370
      %s385 = sphi 0, %s371
      %s389 = sphi 0, %s389
      %s391 = sphi 0, %s389
      %s392 = sphi 0, %s391
      %s406 = sphi 0, %s392
      %s410 = sphi 0, %s410
      %s412 = sphi 0, %s410
      %s413 = sphi 0, %s412
      %s427 = sphi 0, %s413
      %s431 = sphi 0, %s431
      %s433 = sphi 0, %s431
      %s434 = sphi 0, %s433
      %s448 = sphi 0, %s434
      %s452 = sphi 0, %s452
      %s454 = sphi 0, %s452
      %s455 = sphi 0, %s454
      %s469 = sphi 0, %s455
      %s477 = sphi 0, %s479
      %s480 = sphi 0, %s477
      %s481 = sphi 0, %s480
      %s497 = sphi 0, %s481
    $region4: #{tpu_custom_call.1} parent=1 // loop_header_branch
      %40 = sbr.rel (%p38) target = $region8
    $region5: #{tpu_custom_call.1} parent=1 // loop_body
      %s42 = ssub.s32 %s37, 1
      %s43 = ssub.s32 %s37, 2
      %s50 = sadd.s32 1, %s45
      %p51 = scmp.ge.s32.totalorder %s50, 2
      %s52 = scalar_select %p51, 0, %s50
      %s53 = sadd.s32 1, %s44
      %s54 = scalar_select %p51, %s53, %s44
      %p55 = scmp.ge.s32.totalorder %s54, 2
      %s56 = scalar_select %p55, 0, %s54
      %s57 = ssub.s32 %s44, %s56
      %s58 = ssub.s32 %s45, %s52
      %s59 = sor.u32 %s57, %s58
      %p60 = scmp.eq.s32.totalorder %s59, 0
      %s62 = sadd.s32 %s61, 1
      %s63 = scalar_select %p60, %s61, %s62
      %p66 = pneg %p60
      %p67 = scmp.eq.s32.totalorder %s37, 3
      %p68 = por %p66, %p67
      %p69 = scmp.ne.s32.totalorder %s61, %s64
      %p70 = scmp.eq.s32.totalorder %s37, 0
      %p71 = por %p69, %p70
      %p72 = scmp.ne.s32.totalorder %s61, %s64
      %p73 = scmp.eq.s32.totalorder %s42, 3
      %p74 = por %p72, %p73
      %p75 = scmp.ne.s32.totalorder %s64, %s65
      %p76 = scmp.eq.s32.totalorder %s42, 0
      %p77 = por %p75, %p76
      %p78 = scmp.ne.s32.totalorder %s64, %s65
      %p79 = scmp.eq.s32.totalorder %s43, 3
      %p80 = por %p78, %p79
      %p82 = scmp.ne.s32.totalorder %s65, %s81
      %p83 = scmp.eq.s32.totalorder %s43, 0
      %p84 = por %p82, %p83
      %s85 = ssub.s32 %s44, %s56
      %p86 = scmp.eq.s32.totalorder %s85, 0
      %s88 = sadd.s32 %s87, 1
      %s89 = scalar_select %p86, %s87, %s88
      %p92 = pneg %p86
      %p93 = scmp.eq.s32.totalorder %s37, 3
      %p94 = por %p92, %p93
      %p95 = scmp.ne.s32.totalorder %s87, %s90
      %p96 = scmp.eq.s32.totalorder %s37, 0
      %p97 = por %p95, %p96
      %p98 = scmp.ne.s32.totalorder %s87, %s90
      %p99 = scmp.eq.s32.totalorder %s42, 3
      %p100 = por %p98, %p99
      %p101 = scmp.ne.s32.totalorder %s90, %s91
      %p102 = scmp.eq.s32.totalorder %s42, 0
      %p103 = por %p101, %p102
      %p104 = scmp.ne.s32.totalorder %s90, %s91
      %p105 = scmp.eq.s32.totalorder %s43, 3
      %p106 = por %p104, %p105
      %p108 = scmp.ne.s32.totalorder %s91, %s107
      %p109 = scmp.eq.s32.totalorder %s43, 0
      %p110 = por %p108, %p109
      %s111 = ssub.s32 %s44, %s56
      %p112 = scmp.eq.s32.totalorder %s111, 0
      %s114 = sadd.s32 %s113, 1
      %s115 = scalar_select %p112, %s113, %s114
      %p118 = pneg %p112
      %p119 = scmp.eq.s32.totalorder %s37, 3
      %p120 = por %p118, %p119
      %p121 = scmp.ne.s32.totalorder %s113, %s116
      %p122 = scmp.eq.s32.totalorder %s37, 0
      %p123 = por %p121, %p122
      %p124 = scmp.ne.s32.totalorder %s113, %s116
      %p125 = scmp.eq.s32.totalorder %s42, 3
      %p126 = por %p124, %p125
      %p127 = scmp.ne.s32.totalorder %s116, %s117
      %p128 = scmp.eq.s32.totalorder %s42, 0
      %p129 = por %p127, %p128
      %p130 = scmp.ne.s32.totalorder %s116, %s117
      %p131 = scmp.eq.s32.totalorder %s43, 3
      %p132 = por %p130, %p131
      %p134 = scmp.ne.s32.totalorder %s117, %s133
      %p135 = scmp.eq.s32.totalorder %s43, 0
      %p136 = por %p134, %p135
      %s138 = sadd.s32 %s137, 1
      %p141 = scmp.eq.s32.totalorder %s37, 3
      %p142 = scmp.ne.s32.totalorder %s137, %s139
      %p143 = scmp.eq.s32.totalorder %s37, 0
      %p144 = por %p142, %p143
      %p145 = scmp.ne.s32.totalorder %s137, %s139
      %p146 = scmp.eq.s32.totalorder %s42, 3
      %p147 = por %p145, %p146
      %p148 = scmp.ne.s32.totalorder %s139, %s140
      %p149 = scmp.eq.s32.totalorder %s42, 0
      %p150 = por %p148, %p149
      %p151 = scmp.ne.s32.totalorder %s139, %s140
      %p152 = scmp.eq.s32.totalorder %s43, 3
      %p153 = por %p151, %p152
      %p155 = scmp.ne.s32.totalorder %s140, %s154
      %p156 = scmp.eq.s32.totalorder %s43, 0
      %p157 = por %p155, %p156
      %s159 = sadd.s32 %s158, 1
      %p162 = scmp.eq.s32.totalorder %s37, 3
      %p163 = scmp.ne.s32.totalorder %s158, %s160
      %p164 = scmp.eq.s32.totalorder %s37, 0
      %p165 = por %p163, %p164
      %p166 = scmp.ne.s32.totalorder %s158, %s160
      %p167 = scmp.eq.s32.totalorder %s42, 3
      %p168 = por %p166, %p167
      %p169 = scmp.ne.s32.totalorder %s160, %s161
      %p170 = scmp.eq.s32.totalorder %s42, 0
      %p171 = por %p169, %p170
      %p172 = scmp.ne.s32.totalorder %s160, %s161
      %p173 = scmp.eq.s32.totalorder %s43, 3
      %p174 = por %p172, %p173
      %p176 = scmp.ne.s32.totalorder %s161, %s175
      %p177 = scmp.eq.s32.totalorder %s43, 0
      %p178 = por %p176, %p177
      %s180 = sadd.s32 %s179, 1
      %p183 = scmp.eq.s32.totalorder %s37, 3
      %p184 = scmp.ne.s32.totalorder %s179, %s181
      %p185 = scmp.eq.s32.totalorder %s37, 0
      %p186 = por %p184, %p185
      %p187 = scmp.ne.s32.totalorder %s179, %s181
      %p188 = scmp.eq.s32.totalorder %s42, 3
      %p189 = por %p187, %p188
      %p190 = scmp.ne.s32.totalorder %s181, %s182
      %p191 = scmp.eq.s32.totalorder %s42, 0
      %p192 = por %p190, %p191
      %p193 = scmp.ne.s32.totalorder %s181, %s182
      %p194 = scmp.eq.s32.totalorder %s43, 3
      %p195 = por %p193, %p194
      %p197 = scmp.ne.s32.totalorder %s182, %s196
      %p198 = scmp.eq.s32.totalorder %s43, 0
      %p199 = por %p197, %p198
      %s201 = sadd.s32 %s200, 1
      %p204 = scmp.eq.s32.totalorder %s37, 3
      %p205 = scmp.ne.s32.totalorder %s200, %s202
      %p206 = scmp.eq.s32.totalorder %s37, 0
      %p207 = por %p205, %p206
      %p208 = scmp.ne.s32.totalorder %s200, %s202
      %p209 = scmp.eq.s32.totalorder %s42, 3
      %p210 = por %p208, %p209
      %p211 = scmp.ne.s32.totalorder %s202, %s203
      %p212 = scmp.eq.s32.totalorder %s42, 0
      %p213 = por %p211, %p212
      %p214 = scmp.ne.s32.totalorder %s202, %s203
      %p215 = scmp.eq.s32.totalorder %s43, 3
      %p216 = por %p214, %p215
      %p218 = scmp.ne.s32.totalorder %s203, %s217
      %p219 = scmp.eq.s32.totalorder %s43, 0
      %p220 = por %p218, %p219
      %s222 = sadd.s32 %s221, 1
      %p225 = scmp.eq.s32.totalorder %s37, 3
      %p226 = scmp.ne.s32.totalorder %s221, %s223
      %p227 = scmp.eq.s32.totalorder %s37, 0
      %p228 = por %p226, %p227
      %p229 = scmp.ne.s32.totalorder %s221, %s223
      %p230 = scmp.eq.s32.totalorder %s42, 3
      %p231 = por %p229, %p230
      %p232 = scmp.ne.s32.totalorder %s223, %s224
      %p233 = scmp.eq.s32.totalorder %s42, 0
      %p234 = por %p232, %p233
      %p235 = scmp.ne.s32.totalorder %s223, %s224
      %p236 = scmp.eq.s32.totalorder %s43, 3
      %p237 = por %p235, %p236
      %p239 = scmp.ne.s32.totalorder %s224, %s238
      %p240 = scmp.eq.s32.totalorder %s43, 0
      %p241 = por %p239, %p240
      %s243 = sadd.s32 %s242, 1
      %p246 = scmp.eq.s32.totalorder %s37, 3
      %p247 = scmp.ne.s32.totalorder %s242, %s244
      %p248 = scmp.eq.s32.totalorder %s37, 0
      %p249 = por %p247, %p248
      %p250 = scmp.ne.s32.totalorder %s242, %s244
      %p251 = scmp.eq.s32.totalorder %s42, 3
      %p252 = por %p250, %p251
      %p253 = scmp.ne.s32.totalorder %s244, %s245
      %p254 = scmp.eq.s32.totalorder %s42, 0
      %p255 = por %p253, %p254
      %p256 = scmp.ne.s32.totalorder %s244, %s245
      %p257 = scmp.eq.s32.totalorder %s43, 3
      %p258 = por %p256, %p257
      %p260 = scmp.ne.s32.totalorder %s245, %s259
      %p261 = scmp.eq.s32.totalorder %s43, 0
      %p262 = por %p260, %p261
      %s264 = sadd.s32 %s263, 1
      %p267 = scmp.eq.s32.totalorder %s37, 3
      %p268 = scmp.ne.s32.totalorder %s263, %s265
      %p269 = scmp.eq.s32.totalorder %s37, 0
      %p270 = por %p268, %p269
      %p271 = scmp.ne.s32.totalorder %s263, %s265
      %p272 = scmp.eq.s32.totalorder %s42, 3
      %p273 = por %p271, %p272
      %p274 = scmp.ne.s32.totalorder %s265, %s266
      %p275 = scmp.eq.s32.totalorder %s42, 0
      %p276 = por %p274, %p275
      %p277 = scmp.ne.s32.totalorder %s265, %s266
      %p278 = scmp.eq.s32.totalorder %s43, 3
      %p279 = por %p277, %p278
      %p281 = scmp.ne.s32.totalorder %s266, %s280
      %p282 = scmp.eq.s32.totalorder %s43, 0
      %p283 = por %p281, %p282
      %s285 = sadd.s32 %s284, 1
      %p288 = scmp.eq.s32.totalorder %s37, 3
      %p289 = scmp.ne.s32.totalorder %s284, %s286
      %p290 = scmp.eq.s32.totalorder %s37, 0
      %p291 = por %p289, %p290
      %p292 = scmp.ne.s32.totalorder %s284, %s286
      %p293 = scmp.eq.s32.totalorder %s42, 3
      %p294 = por %p292, %p293
      %p295 = scmp.ne.s32.totalorder %s286, %s287
      %p296 = scmp.eq.s32.totalorder %s42, 0
      %p297 = por %p295, %p296
      %p298 = scmp.ne.s32.totalorder %s286, %s287
      %p299 = scmp.eq.s32.totalorder %s43, 3
      %p300 = por %p298, %p299
      %p302 = scmp.ne.s32.totalorder %s287, %s301
      %p303 = scmp.eq.s32.totalorder %s43, 0
      %p304 = por %p302, %p303
      %s306 = sadd.s32 %s305, 1
      %p309 = scmp.eq.s32.totalorder %s37, 3
      %p310 = scmp.ne.s32.totalorder %s305, %s307
      %p311 = scmp.eq.s32.totalorder %s37, 0
      %p312 = por %p310, %p311
      %p313 = scmp.ne.s32.totalorder %s305, %s307
      %p314 = scmp.eq.s32.totalorder %s42, 3
      %p315 = por %p313, %p314
      %p316 = scmp.ne.s32.totalorder %s307, %s308
      %p317 = scmp.eq.s32.totalorder %s42, 0
      %p318 = por %p316, %p317
      %p319 = scmp.ne.s32.totalorder %s307, %s308
      %p320 = scmp.eq.s32.totalorder %s43, 3
      %p321 = por %p319, %p320
      %p323 = scmp.ne.s32.totalorder %s308, %s322
      %p324 = scmp.eq.s32.totalorder %s43, 0
      %p325 = por %p323, %p324
      %s327 = sadd.s32 %s326, 1
      %p330 = scmp.eq.s32.totalorder %s37, 3
      %p331 = scmp.ne.s32.totalorder %s326, %s328
      %p332 = scmp.eq.s32.totalorder %s37, 0
      %p333 = por %p331, %p332
      %p334 = scmp.ne.s32.totalorder %s326, %s328
      %p335 = scmp.eq.s32.totalorder %s42, 3
      %p336 = por %p334, %p335
      %p337 = scmp.ne.s32.totalorder %s328, %s329
      %p338 = scmp.eq.s32.totalorder %s42, 0
      %p339 = por %p337, %p338
      %p340 = scmp.ne.s32.totalorder %s328, %s329
      %p341 = scmp.eq.s32.totalorder %s43, 3
      %p342 = por %p340, %p341
      %p344 = scmp.ne.s32.totalorder %s329, %s343
      %p345 = scmp.eq.s32.totalorder %s43, 0
      %p346 = por %p344, %p345
      %s348 = sadd.s32 %s347, 1
      %p351 = scmp.eq.s32.totalorder %s37, 3
      %p352 = scmp.ne.s32.totalorder %s347, %s349
      %p353 = scmp.eq.s32.totalorder %s37, 0
      %p354 = por %p352, %p353
      %p355 = scmp.ne.s32.totalorder %s347, %s349
      %p356 = scmp.eq.s32.totalorder %s42, 3
      %p357 = por %p355, %p356
      %p358 = scmp.ne.s32.totalorder %s349, %s350
      %p359 = scmp.eq.s32.totalorder %s42, 0
      %p360 = por %p358, %p359
      %p361 = scmp.ne.s32.totalorder %s349, %s350
      %p362 = scmp.eq.s32.totalorder %s43, 3
      %p363 = por %p361, %p362
      %p365 = scmp.ne.s32.totalorder %s350, %s364
      %p366 = scmp.eq.s32.totalorder %s43, 0
      %p367 = por %p365, %p366
      %s369 = sadd.s32 %s368, 1
      %p372 = scmp.eq.s32.totalorder %s37, 3
      %p373 = scmp.ne.s32.totalorder %s368, %s370
      %p374 = scmp.eq.s32.totalorder %s37, 0
      %p375 = por %p373, %p374
      %p376 = scmp.ne.s32.totalorder %s368, %s370
      %p377 = scmp.eq.s32.totalorder %s42, 3
      %p378 = por %p376, %p377
      %p379 = scmp.ne.s32.totalorder %s370, %s371
      %p380 = scmp.eq.s32.totalorder %s42, 0
      %p381 = por %p379, %p380
      %p382 = scmp.ne.s32.totalorder %s370, %s371
      %p383 = scmp.eq.s32.totalorder %s43, 3
      %p384 = por %p382, %p383
      %p386 = scmp.ne.s32.totalorder %s371, %s385
      %p387 = scmp.eq.s32.totalorder %s43, 0
      %p388 = por %p386, %p387
      %s390 = sadd.s32 %s389, 1
      %p393 = scmp.eq.s32.totalorder %s37, 3
      %p394 = scmp.ne.s32.totalorder %s389, %s391
      %p395 = scmp.eq.s32.totalorder %s37, 0
      %p396 = por %p394, %p395
      %p397 = scmp.ne.s32.totalorder %s389, %s391
      %p398 = scmp.eq.s32.totalorder %s42, 3
      %p399 = por %p397, %p398
      %p400 = scmp.ne.s32.totalorder %s391, %s392
      %p401 = scmp.eq.s32.totalorder %s42, 0
      %p402 = por %p400, %p401
      %p403 = scmp.ne.s32.totalorder %s391, %s392
      %p404 = scmp.eq.s32.totalorder %s43, 3
      %p405 = por %p403, %p404
      %p407 = scmp.ne.s32.totalorder %s392, %s406
      %p408 = scmp.eq.s32.totalorder %s43, 0
      %p409 = por %p407, %p408
      %s411 = sadd.s32 %s410, 1
      %p414 = scmp.eq.s32.totalorder %s37, 3
      %p415 = scmp.ne.s32.totalorder %s410, %s412
      %p416 = scmp.eq.s32.totalorder %s37, 0
      %p417 = por %p415, %p416
      %p418 = scmp.ne.s32.totalorder %s410, %s412
      %p419 = scmp.eq.s32.totalorder %s42, 3
      %p420 = por %p418, %p419
      %p421 = scmp.ne.s32.totalorder %s412, %s413
      %p422 = scmp.eq.s32.totalorder %s42, 0
      %p423 = por %p421, %p422
      %p424 = scmp.ne.s32.totalorder %s412, %s413
      %p425 = scmp.eq.s32.totalorder %s43, 3
      %p426 = por %p424, %p425
      %p428 = scmp.ne.s32.totalorder %s413, %s427
      %p429 = scmp.eq.s32.totalorder %s43, 0
      %p430 = por %p428, %p429
      %s432 = sadd.s32 %s431, 1
      %p435 = scmp.eq.s32.totalorder %s37, 3
      %p436 = scmp.ne.s32.totalorder %s431, %s433
      %p437 = scmp.eq.s32.totalorder %s37, 0
      %p438 = por %p436, %p437
      %p439 = scmp.ne.s32.totalorder %s431, %s433
      %p440 = scmp.eq.s32.totalorder %s42, 3
      %p441 = por %p439, %p440
      %p442 = scmp.ne.s32.totalorder %s433, %s434
      %p443 = scmp.eq.s32.totalorder %s42, 0
      %p444 = por %p442, %p443
      %p445 = scmp.ne.s32.totalorder %s433, %s434
      %p446 = scmp.eq.s32.totalorder %s43, 3
      %p447 = por %p445, %p446
      %p449 = scmp.ne.s32.totalorder %s434, %s448
      %p450 = scmp.eq.s32.totalorder %s43, 0
      %p451 = por %p449, %p450
      %s453 = sadd.s32 %s452, 1
      %p456 = scmp.eq.s32.totalorder %s37, 3
      %p457 = scmp.ne.s32.totalorder %s452, %s454
      %p458 = scmp.eq.s32.totalorder %s37, 0
      %p459 = por %p457, %p458
      %p460 = scmp.ne.s32.totalorder %s452, %s454
      %p461 = scmp.eq.s32.totalorder %s42, 3
      %p462 = por %p460, %p461
      %p463 = scmp.ne.s32.totalorder %s454, %s455
      %p464 = scmp.eq.s32.totalorder %s42, 0
      %p465 = por %p463, %p464
      %p466 = scmp.ne.s32.totalorder %s454, %s455
      %p467 = scmp.eq.s32.totalorder %s43, 3
      %p468 = por %p466, %p467
      %p470 = scmp.ne.s32.totalorder %s455, %s469
      %p471 = scmp.eq.s32.totalorder %s43, 0
      %p472 = por %p470, %p471
      %s473 = ssub.s32 %s44, %s56
      %s474 = ssub.s32 %s45, %s52
      %s475 = sor.u32 %s473, %s474
      %p476 = scmp.eq.s32.totalorder %s475, 0
      %s478 = sadd.s32 %s477, 1
      %s479 = scalar_select %p476, %s477, %s478
      %p482 = pneg %p476
      %p483 = scmp.eq.s32.totalorder %s37, 3
      %p484 = por %p482, %p483
      %p485 = scmp.ne.s32.totalorder %s477, %s480
      %p486 = scmp.eq.s32.totalorder %s37, 0
      %p487 = por %p485, %p486
      %p488 = scmp.ne.s32.totalorder %s477, %s480
      %p489 = scmp.eq.s32.totalorder %s42, 3
      %p490 = por %p488, %p489
      %p491 = scmp.ne.s32.totalorder %s480, %s481
      %p492 = scmp.eq.s32.totalorder %s42, 0
      %p493 = por %p491, %p492
      %p494 = scmp.ne.s32.totalorder %s480, %s481
      %p495 = scmp.eq.s32.totalorder %s43, 3
      %p496 = por %p494, %p495
      %p498 = scmp.ne.s32.totalorder %s481, %s497
      %p499 = scmp.eq.s32.totalorder %s43, 0
      %p500 = por %p498, %p499
      %p501 = scmp.le.s32.totalorder 1, %s37
      %p502 = scmp.lt.s32.totalorder %s37, 5
      %p503 = pnand %p501, %p502
      %p504 = pneg %p503
      // Predicated region
      $region9: #{tpu_custom_call.1} parent=5 // pred_check
        _
      $region10: #{tpu_custom_call.1} parent=5 // pred_check_branch
        %506 = sbr.rel (%p503) target = $region12
      $region11: #{tpu_custom_call.1} parent=5 // pred_region
        %s507 = ssub.s32 %s37, 1
        // Predicated region
        $region13: #{tpu_custom_call.1} parent=11 // pred_check
          %p508 = pneg %p150
        $region14: #{tpu_custom_call.1} parent=11 // pred_check_branch
          %510 = sbr.rel (%p508) target = $region16
        $region15: #{tpu_custom_call.1} parent=11 // pred_region
          %512 = vsyncadd [#allocation11], 0
          %s513 = sshll.u32 %s3, 4
          %s514 = int_to_ptr.hbm [resolvable:$true] %s513
          %s515 = sshll.u32 [#allocation10], 4
          %s516 = int_to_ptr.vmem [resolvable:$true] %s515
          %521 = dma.hbm_to_vmem [thread:$0]  %s514, 1024, %s516, [#allocation11], 64, 64, 4
        $region16: #{tpu_custom_call.1} parent=11 // pred_fallthru
          _
        // Predicated region
        $region17: #{tpu_custom_call.1} parent=11 // pred_check
          %p522 = pneg %p171
        $region18: #{tpu_custom_call.1} parent=11 // pred_check_branch
          %524 = sbr.rel (%p522) target = $region20
        $region19: #{tpu_custom_call.1} parent=11 // pred_region
          _
        $region20: #{tpu_custom_call.1} parent=11 // pred_fallthru
          _
        // Predicated region
        $region21: #{tpu_custom_call.1} parent=11 // pred_check
          %p525 = pneg %p192
        $region22: #{tpu_custom_call.1} parent=11 // pred_check_branch
          %527 = sbr.rel (%p525) target = $region24
        $region23: #{tpu_custom_call.1} parent=11 // pred_region
          %529 = vsyncadd [#allocation11], 0
          %s530 = sshll.u32 %s5, 4
          %s531 = int_to_ptr.hbm [resolvable:$true] %s530
          %s532 = sshll.u32 [#allocation12], 4
          %s533 = int_to_ptr.vmem [resolvable:$true] %s532
          %538 = dma.hbm_to_vmem [thread:$0]  %s531, 1024, %s533, [#allocation11], 64, 64, 4
        $region24: #{tpu_custom_call.1} parent=11 // pred_fallthru
          _
        // Predicated region
        $region25: #{tpu_custom_call.1} parent=11 // pred_check
          %p539 = pneg %p213
        $region26: #{tpu_custom_call.1} parent=11 // pred_check_branch
          %541 = sbr.rel (%p539) target = $region28
        $region27: #{tpu_custom_call.1} parent=11 // pred_region
          _
        $region28: #{tpu_custom_call.1} parent=11 // pred_fallthru
          _
        // Predicated region
        $region29: #{tpu_custom_call.1} parent=11 // pred_check
          %p542 = pneg %p234
        $region30: #{tpu_custom_call.1} parent=11 // pred_check_branch
          %544 = sbr.rel (%p542) target = $region32
        $region31: #{tpu_custom_call.1} parent=11 // pred_region
          %546 = vsyncadd [#allocation14], 0
          %s547 = sshll.u32 %s7, 4
          %s548 = int_to_ptr.hbm [resolvable:$true] %s547
          %s549 = sshll.u32 [#allocation13], 4
          %s550 = int_to_ptr.vmem [resolvable:$true] %s549
          %555 = dma.hbm_to_vmem [thread:$0]  %s548, 1024, %s550, [#allocation14], 64, 64, 4
        $region32: #{tpu_custom_call.1} parent=11 // pred_fallthru
          _
        // Predicated region
        $region33: #{tpu_custom_call.1} parent=11 // pred_check
          %p556 = pneg %p255
        $region34: #{tpu_custom_call.1} parent=11 // pred_check_branch
          %558 = sbr.rel (%p556) target = $region36
        $region35: #{tpu_custom_call.1} parent=11 // pred_region
          _
        $region36: #{tpu_custom_call.1} parent=11 // pred_fallthru
          _
        // Predicated region
        $region37: #{tpu_custom_call.1} parent=11 // pred_check
          %p559 = pneg %p276
        $region38: #{tpu_custom_call.1} parent=11 // pred_check_branch
          %561 = sbr.rel (%p559) target = $region40
        $region39: #{tpu_custom_call.1} parent=11 // pred_region
          %563 = vsyncadd [#allocation14], 0
          %s564 = sshll.u32 %s9, 4
          %s565 = int_to_ptr.hbm [resolvable:$true] %s564
          %s566 = sshll.u32 [#allocation15], 4
          %s567 = int_to_ptr.vmem [resolvable:$true] %s566
          %572 = dma.hbm_to_vmem [thread:$0]  %s565, 1024, %s567, [#allocation14], 64, 64, 4
        $region40: #{tpu_custom_call.1} parent=11 // pred_fallthru
          _
        // Predicated region
        $region41: #{tpu_custom_call.1} parent=11 // pred_check
          %p573 = pneg %p297
        $region42: #{tpu_custom_call.1} parent=11 // pred_check_branch
          %575 = sbr.rel (%p573) target = $region44
        $region43: #{tpu_custom_call.1} parent=11 // pred_region
          _
        $region44: #{tpu_custom_call.1} parent=11 // pred_fallthru
          _
        // Predicated region
        $region45: #{tpu_custom_call.1} parent=11 // pred_check
          %p576 = pneg %p318
        $region46: #{tpu_custom_call.1} parent=11 // pred_check_branch
          %578 = sbr.rel (%p576) target = $region48
        $region47: #{tpu_custom_call.1} parent=11 // pred_region
          _
        $region48: #{tpu_custom_call.1} parent=11 // pred_fallthru
          _
        // Predicated region
        $region49: #{tpu_custom_call.1} parent=11 // pred_check
          %p579 = pneg %p339
        $region50: #{tpu_custom_call.1} parent=11 // pred_check_branch
          %581 = sbr.rel (%p579) target = $region52
        $region51: #{tpu_custom_call.1} parent=11 // pred_region
          _
        $region52: #{tpu_custom_call.1} parent=11 // pred_fallthru
          _
        // Predicated region
        $region53: #{tpu_custom_call.1} parent=11 // pred_check
          %p582 = pneg %p360
        $region54: #{tpu_custom_call.1} parent=11 // pred_check_branch
          %584 = sbr.rel (%p582) target = $region56
        $region55: #{tpu_custom_call.1} parent=11 // pred_region
          _
        $region56: #{tpu_custom_call.1} parent=11 // pred_fallthru
          _
        // Predicated region
        $region57: #{tpu_custom_call.1} parent=11 // pred_check
          %p585 = pneg %p381
        $region58: #{tpu_custom_call.1} parent=11 // pred_check_branch
          %587 = sbr.rel (%p585) target = $region60
        $region59: #{tpu_custom_call.1} parent=11 // pred_region
          _
        $region60: #{tpu_custom_call.1} parent=11 // pred_fallthru
          _
        // Predicated region
        $region61: #{tpu_custom_call.1} parent=11 // pred_check
          %p588 = pneg %p402
        $region62: #{tpu_custom_call.1} parent=11 // pred_check_branch
          %590 = sbr.rel (%p588) target = $region64
        $region63: #{tpu_custom_call.1} parent=11 // pred_region
          %592 = vsyncadd [#allocation17], 0
          %s593 = sshll.u32 %s15, 4
          %s594 = int_to_ptr.hbm [resolvable:$true] %s593
          %s595 = sshll.u32 [#allocation16], 4
          %s596 = int_to_ptr.vmem [resolvable:$true] %s595
          %601 = dma.hbm_to_vmem [thread:$0]  %s594, 2048, %s596, [#allocation17], 128, 128, 8
        $region64: #{tpu_custom_call.1} parent=11 // pred_fallthru
          _
        // Predicated region
        $region65: #{tpu_custom_call.1} parent=11 // pred_check
          %p602 = pneg %p423
        $region66: #{tpu_custom_call.1} parent=11 // pred_check_branch
          %604 = sbr.rel (%p602) target = $region68
        $region67: #{tpu_custom_call.1} parent=11 // pred_region
          _
        $region68: #{tpu_custom_call.1} parent=11 // pred_fallthru
          _
        // Predicated region
        $region69: #{tpu_custom_call.1} parent=11 // pred_check
          %p605 = pneg %p444
        $region70: #{tpu_custom_call.1} parent=11 // pred_check_branch
          %607 = sbr.rel (%p605) target = $region72
        $region71: #{tpu_custom_call.1} parent=11 // pred_region
          %609 = vsyncadd [#allocation17], 0
          %s610 = sshll.u32 %s17, 4
          %s611 = int_to_ptr.hbm [resolvable:$true] %s610
          %s612 = sshll.u32 [#allocation18], 4
          %s613 = int_to_ptr.vmem [resolvable:$true] %s612
          %618 = dma.hbm_to_vmem [thread:$0]  %s611, 2048, %s613, [#allocation17], 64, 64, 4
        $region72: #{tpu_custom_call.1} parent=11 // pred_fallthru
          _
        // Predicated region
        $region73: #{tpu_custom_call.1} parent=11 // pred_check
          %p619 = pneg %p465
        $region74: #{tpu_custom_call.1} parent=11 // pred_check_branch
          %621 = sbr.rel (%p619) target = $region76
        $region75: #{tpu_custom_call.1} parent=11 // pred_region
          _
        $region76: #{tpu_custom_call.1} parent=11 // pred_fallthru
          _
      $region12: #{tpu_custom_call.1} parent=5 // pred_fallthru
        _
      %p622 = scmp.lt.s32.totalorder %s37, 4
      // Predicated region
      $region77: #{tpu_custom_call.1} parent=5 // pred_check
        %p623 = pneg %p622
      $region78: #{tpu_custom_call.1} parent=5 // pred_check_branch
        %625 = sbr.rel (%p623) target = $region80
      $region79: #{tpu_custom_call.1} parent=5 // pred_region
        // Predicated region
        $region81: #{tpu_custom_call.1} parent=79 // pred_check
          %p626 = pneg %p71
        $region82: #{tpu_custom_call.1} parent=79 // pred_check_branch
          %628 = sbr.rel (%p626) target = $region84
        $region83: #{tpu_custom_call.1} parent=79 // pred_region
          %s629 = sand.u32 %s61, 1
          %s630 = scalar_lea.sflag [#allocation5], %s629
          %s631 = sand.u32 %s61, 1
          %s632 = smul.addr %s631, 64
          %s633 = scalar_lea.vmem [#allocation4], %s632
          %s634 = smul.u32 8, %s45
          %636 = vsyncadd %s630, 0
          %s637 = smul.addr %s44, 16
          %s638 = sadd.s32 %s634, %s637
          %s639 = smul.addr %s638, 8
          %s640 = scalar_lea.hbm %s0, %s639
          %s641 = sshll.u32 %s640, 4
          %s642 = int_to_ptr.hbm [resolvable:$true] %s641
          %s643 = sshll.u32 %s633, 4
          %s644 = int_to_ptr.vmem [resolvable:$true] %s643
          %649 = dma.hbm_to_vmem [thread:$0]  %s642, 1024, %s644, %s630, 128, 128, 8
        $region84: #{tpu_custom_call.1} parent=79 // pred_fallthru
          _
        // Predicated region
        $region85: #{tpu_custom_call.1} parent=79 // pred_check
          %p650 = pneg %p97
        $region86: #{tpu_custom_call.1} parent=79 // pred_check_branch
          %652 = sbr.rel (%p650) target = $region88
        $region87: #{tpu_custom_call.1} parent=79 // pred_region
          %s653 = sand.u32 %s37, 1
          %s654 = scalar_lea.sflag [#allocation8], %s653
          %s655 = sand.u32 %s87, 1
          %s656 = smul.addr %s655, 64
          %s657 = scalar_lea.vmem [#allocation7], %s656
          %659 = vsyncadd %s654, 0
          %s660 = smul.addr %s44, 16
          %s661 = smul.addr %s660, 4
          %s662 = scalar_lea.hbm %s1, %s661
          %s663 = sshll.u32 %s662, 4
          %s664 = int_to_ptr.hbm [resolvable:$true] %s663
          %s665 = sshll.u32 %s657, 4
          %s666 = int_to_ptr.vmem [resolvable:$true] %s665
          %671 = dma.hbm_to_vmem [thread:$0]  %s664, 1024, %s666, %s654, 64, 64, 4
        $region88: #{tpu_custom_call.1} parent=79 // pred_fallthru
          _
        // Predicated region
        $region89: #{tpu_custom_call.1} parent=79 // pred_check
          %p672 = pneg %p123
        $region90: #{tpu_custom_call.1} parent=79 // pred_check_branch
          %674 = sbr.rel (%p672) target = $region92
        $region91: #{tpu_custom_call.1} parent=79 // pred_region
          %s675 = sand.u32 %s37, 1
          %s676 = scalar_lea.sflag [#allocation8], %s675
          %s677 = sand.u32 %s113, 1
          %s678 = scalar_lea.vmem [#allocation9], %s677
          %680 = vsyncadd %s676, 0
          %s681 = scalar_lea.hbm %s2, %s44
          %s683 = sshll.u32 %s681, 4
          %s684 = int_to_ptr.hbm [resolvable:$true] %s683
          %s685 = sshll.u32 %s678, 4
          %s686 = int_to_ptr.vmem [resolvable:$true] %s685
          %688 = dma.hbm_to_vmem [thread:$0]  %s684, 16, %s686, %s676
        $region92: #{tpu_custom_call.1} parent=79 // pred_fallthru
          _
      $region80: #{tpu_custom_call.1} parent=5 // pred_fallthru
        _
      %p689 = scmp.le.s32.totalorder 1, %s37
      %p690 = scmp.lt.s32.totalorder %s37, 5
      %p691 = pnand %p689, %p690
      %p692 = pneg %p691
      // Predicated region
      $region93: #{tpu_custom_call.1} parent=5 // pred_check
        _
      $region94: #{tpu_custom_call.1} parent=5 // pred_check_branch
        %694 = sbr.rel (%p691) target = $region96
      $region95: #{tpu_custom_call.1} parent=5 // pred_region
        %s695 = ssub.s32 %s37, 1
        %s696 = sand.u32 %s64, 1
        %s697 = scalar_lea.sflag [#allocation5], %s696
        %s698 = sand.u32 %s64, 1
        %s699 = smul.addr %s698, 64
        %s700 = scalar_lea.vmem [#allocation4], %s699
        // Predicated region
        $region97: #{tpu_custom_call.1} parent=95 // pred_check
          %p701 = pneg %p77
        $region98: #{tpu_custom_call.1} parent=95 // pred_check_branch
          %703 = sbr.rel (%p701) target = $region100
        $region99: #{tpu_custom_call.1} parent=95 // pred_region
          %705 = dma.done %s697, 1024
        $region100: #{tpu_custom_call.1} parent=95 // pred_fallthru
          _
        %s706 = sand.u32 %s42, 1
        %s707 = scalar_lea.sflag [#allocation8], %s706
        %s708 = sand.u32 %s90, 1
        %s709 = smul.addr %s708, 64
        %s710 = scalar_lea.vmem [#allocation7], %s709
        // Predicated region
        $region101: #{tpu_custom_call.1} parent=95 // pred_check
          %p711 = pneg %p103
        $region102: #{tpu_custom_call.1} parent=95 // pred_check_branch
          %713 = sbr.rel (%p711) target = $region104
        $region103: #{tpu_custom_call.1} parent=95 // pred_region
          %715 = dma.done %s707, 1024
        $region104: #{tpu_custom_call.1} parent=95 // pred_fallthru
          _
        %s716 = sand.u32 %s42, 1
        %s717 = scalar_lea.sflag [#allocation8], %s716
        %s718 = sand.u32 %s116, 1
        %s719 = scalar_lea.vmem [#allocation9], %s718
        // Predicated region
        $region105: #{tpu_custom_call.1} parent=95 // pred_check
          %p720 = pneg %p129
        $region106: #{tpu_custom_call.1} parent=95 // pred_check_branch
          %722 = sbr.rel (%p720) target = $region108
        $region107: #{tpu_custom_call.1} parent=95 // pred_region
          %724 = dma.done %s717, 16
        $region108: #{tpu_custom_call.1} parent=95 // pred_fallthru
          _
        // Predicated region
        $region109: #{tpu_custom_call.1} parent=95 // pred_check
          %p725 = pneg %p150
        $region110: #{tpu_custom_call.1} parent=95 // pred_check_branch
          %727 = sbr.rel (%p725) target = $region112
        $region111: #{tpu_custom_call.1} parent=95 // pred_region
          %729 = dma.done [#allocation11], 1024
        $region112: #{tpu_custom_call.1} parent=95 // pred_fallthru
          _
        // Predicated region
        $region113: #{tpu_custom_call.1} parent=95 // pred_check
          %p730 = pneg %p192
        $region114: #{tpu_custom_call.1} parent=95 // pred_check_branch
          %732 = sbr.rel (%p730) target = $region116
        $region115: #{tpu_custom_call.1} parent=95 // pred_region
          %734 = dma.done [#allocation11], 1024
        $region116: #{tpu_custom_call.1} parent=95 // pred_fallthru
          _
        // Predicated region
        $region117: #{tpu_custom_call.1} parent=95 // pred_check
          %p735 = pneg %p234
        $region118: #{tpu_custom_call.1} parent=95 // pred_check_branch
          %737 = sbr.rel (%p735) target = $region120
        $region119: #{tpu_custom_call.1} parent=95 // pred_region
          %739 = dma.done [#allocation14], 1024
        $region120: #{tpu_custom_call.1} parent=95 // pred_fallthru
          _
        // Predicated region
        $region121: #{tpu_custom_call.1} parent=95 // pred_check
          %p740 = pneg %p276
        $region122: #{tpu_custom_call.1} parent=95 // pred_check_branch
          %742 = sbr.rel (%p740) target = $region124
        $region123: #{tpu_custom_call.1} parent=95 // pred_region
          %744 = dma.done [#allocation14], 1024
        $region124: #{tpu_custom_call.1} parent=95 // pred_fallthru
          _
        // Predicated region
        $region125: #{tpu_custom_call.1} parent=95 // pred_check
          %p745 = pneg %p402
        $region126: #{tpu_custom_call.1} parent=95 // pred_check_branch
          %747 = sbr.rel (%p745) target = $region128
        $region127: #{tpu_custom_call.1} parent=95 // pred_region
          %749 = dma.done [#allocation17], 2048
        $region128: #{tpu_custom_call.1} parent=95 // pred_fallthru
          _
        // Predicated region
        $region129: #{tpu_custom_call.1} parent=95 // pred_check
          %p750 = pneg %p444
        $region130: #{tpu_custom_call.1} parent=95 // pred_check_branch
          %752 = sbr.rel (%p750) target = $region132
        $region131: #{tpu_custom_call.1} parent=95 // pred_region
          %754 = dma.done [#allocation17], 2048
        $region132: #{tpu_custom_call.1} parent=95 // pred_fallthru
          _
        %s755 = sand.u32 %s64, 1
        %s756 = scalar_lea.sflag [#allocation5], %s755
        %s757 = sand.u32 %s64, 1
        %s758 = smul.addr %s757, 64
        %s759 = scalar_lea.vmem [#allocation4], %s758
        %p760 = pneg %p77
        %p761 = pneg %p74
        %s762 = sand.u32 %s42, 1
        %s763 = scalar_lea.sflag [#allocation8], %s762
        %s764 = sand.u32 %s90, 1
        %s765 = smul.addr %s764, 64
        %s766 = scalar_lea.vmem [#allocation7], %s765
        %p767 = pneg %p103
        %p768 = pneg %p100
        %s769 = sand.u32 %s42, 1
        %s770 = scalar_lea.sflag [#allocation8], %s769
        %s771 = sand.u32 %s116, 1
        %s772 = scalar_lea.vmem [#allocation9], %s771
        %p773 = pneg %p129
        %p774 = pneg %p126
        %p775 = pneg %p150
        %p776 = pneg %p147
        %p777 = pneg %p171
        %p778 = pneg %p168
        %p779 = pneg %p192
        %p780 = pneg %p189
        %p781 = pneg %p213
        %p782 = pneg %p210
        %p783 = pneg %p234
        %p784 = pneg %p231
        %p785 = pneg %p255
        %p786 = pneg %p252
        %p787 = pneg %p276
        %p788 = pneg %p273
        %p789 = pneg %p297
        %p790 = pneg %p294
        %p791 = pneg %p318
        %p792 = pneg %p315
        %p793 = pneg %p339
        %p794 = pneg %p336
        %p795 = pneg %p360
        %p796 = pneg %p357
        %p797 = pneg %p381
        %p798 = pneg %p378
        %p799 = pneg %p402
        %p800 = pneg %p399
        %p801 = pneg %p423
        %p802 = pneg %p420
        %p803 = pneg %p444
        %p804 = pneg %p441
        %p805 = pneg %p465
        %p806 = pneg %p462
        %p807 = pneg %p493
        %p808 = pneg %p490
        %s809 = sand.u32 %s480, 1
        %s810 = scalar_lea.sflag [#allocation6], %s809
        %s811 = sand.u32 %s480, 1
        %s812 = smul.addr %s811, 64
        %s813 = scalar_lea.vmem [#allocation19], %s812
        %s814 = smul.u32 8, %s47
        %s815 = smul.u32 8, %s47
        %p817 = scmp.eq.s32.totalorder %s47, 0
        // Predicated region
        $region133: #{tpu_custom_call.1} parent=95 // pred_check
          %p818 = pneg %p817
        $region134: #{tpu_custom_call.1} parent=95 // pred_check_branch
          %820 = sbr.rel (%p818) target = $region136
        $region135: #{tpu_custom_call.1} parent=95 // pred_region
          %v821 = vld [vmem:[%s710] sm:$0xf]
          %v822 = vld [vmem:[%s710 + $0x4] sm:$0xf]
          %v823 = vld [vmem:[%s710 + $0x8] sm:$0xf]
          %v824 = vld [vmem:[%s710 + $0xc] sm:$0xf]
          %v825 = vld [vmem:[%s710 + $0x10] sm:$0xf]
          %v826 = vld [vmem:[%s710 + $0x14] sm:$0xf]
          %v827 = vld [vmem:[%s710 + $0x18] sm:$0xf]
          %v828 = vld [vmem:[%s710 + $0x1c] sm:$0xf]
          %v829 = vld [vmem:[%s710 + $0x20] sm:$0xf]
          %v830 = vld [vmem:[%s710 + $0x24] sm:$0xf]
          %v831 = vld [vmem:[%s710 + $0x28] sm:$0xf]
          %v832 = vld [vmem:[%s710 + $0x2c] sm:$0xf]
          %v833 = vld [vmem:[%s710 + $0x30] sm:$0xf]
          %v834 = vld [vmem:[%s710 + $0x34] sm:$0xf]
          %v835 = vld [vmem:[%s710 + $0x38] sm:$0xf]
          %v836 = vld [vmem:[%s710 + $0x3c] sm:$0xf]
          %v837 = vld [vmem:[#allocation12] sm:$0xf]
          %v838 = vld [vmem:[#allocation12 + $0x4] sm:$0xf]
          %v839 = vld [vmem:[#allocation12 + $0x8] sm:$0xf]
          %v840 = vld [vmem:[#allocation12 + $0xc] sm:$0xf]
          %v841 = vld [vmem:[#allocation12 + $0x10] sm:$0xf]
          %v842 = vld [vmem:[#allocation12 + $0x14] sm:$0xf]
          %v843 = vld [vmem:[#allocation12 + $0x18] sm:$0xf]
          %v844 = vld [vmem:[#allocation12 + $0x1c] sm:$0xf]
          %v845 = vld [vmem:[#allocation12 + $0x20] sm:$0xf]
          %v846 = vld [vmem:[#allocation12 + $0x24] sm:$0xf]
          %v847 = vld [vmem:[#allocation12 + $0x28] sm:$0xf]
          %v848 = vld [vmem:[#allocation12 + $0x2c] sm:$0xf]
          %v849 = vld [vmem:[#allocation12 + $0x30] sm:$0xf]
          %v850 = vld [vmem:[#allocation12 + $0x34] sm:$0xf]
          %v851 = vld [vmem:[#allocation12 + $0x38] sm:$0xf]
          %v852 = vld [vmem:[#allocation12 + $0x3c] sm:$0xf]
          %v853 = vld [vmem:[%s6] sm:$0x1]
          %v855 = vperm.slane %v853, 0
          %v873 = vunpack.c.l.b16 %v821
          %v874 = vunpack.c.l.b16 %v822
          %v875 = vunpack.c.l.b16 %v823
          %v876 = vunpack.c.l.b16 %v824
          %v877 = vunpack.c.l.b16 %v825
          %v878 = vunpack.c.l.b16 %v826
          %v879 = vunpack.c.l.b16 %v827
          %v880 = vunpack.c.l.b16 %v828
          %v881 = vunpack.c.l.b16 %v829
          %v882 = vunpack.c.l.b16 %v830
          %v883 = vunpack.c.l.b16 %v831
          %v884 = vunpack.c.l.b16 %v832
          %v885 = vunpack.c.l.b16 %v833
          %v886 = vunpack.c.l.b16 %v834
          %v887 = vunpack.c.l.b16 %v835
          %v888 = vunpack.c.l.b16 %v836
          %v889 = vpack.c.b16 %v874, %v873
          %v890 = vpack.c.b16 %v876, %v875
          %v891 = vpack.c.b16 %v878, %v877
          %v892 = vpack.c.b16 %v880, %v879
          %v893 = vpack.c.b16 %v882, %v881
          %v894 = vpack.c.b16 %v884, %v883
          %v895 = vpack.c.b16 %v886, %v885
          %v896 = vpack.c.b16 %v888, %v887
          %v921 = vunpack.c.l.b16 %v837
          %v922 = vunpack.c.l.b16 %v838
          %v923 = vunpack.c.l.b16 %v839
          %v924 = vunpack.c.l.b16 %v840
          %v925 = vunpack.c.l.b16 %v841
          %v926 = vunpack.c.l.b16 %v842
          %v927 = vunpack.c.l.b16 %v843
          %v928 = vunpack.c.l.b16 %v844
          %v929 = vunpack.c.l.b16 %v845
          %v930 = vunpack.c.l.b16 %v846
          %v931 = vunpack.c.l.b16 %v847
          %v932 = vunpack.c.l.b16 %v848
          %v933 = vunpack.c.l.b16 %v849
          %v934 = vunpack.c.l.b16 %v850
          %v935 = vunpack.c.l.b16 %v851
          %v936 = vunpack.c.l.b16 %v852
          %v937 = vpack.c.b16 %v922, %v921
          %v938 = vpack.c.b16 %v924, %v923
          %v939 = vpack.c.b16 %v926, %v925
          %v940 = vpack.c.b16 %v928, %v927
          %v941 = vpack.c.b16 %v930, %v929
          %v942 = vpack.c.b16 %v932, %v931
          %v943 = vpack.c.b16 %v934, %v933
          %v944 = vpack.c.b16 %v936, %v935
          %953 = vmatpush.bf16.msra.mxu0 %v944
          %954 = vmatpush.bf16.msra.mxu0 %v943
          %955 = vmatpush.bf16.msra.mxu0 %v942
          %956 = vmatpush.bf16.msra.mxu0 %v941
          %957 = vmatpush.bf16.msra.mxu0 %v940
          %958 = vmatpush.bf16.msra.mxu0 %v939
          %959 = vmatpush.bf16.msra.mxu0 %v938
          %960 = vmatpush.bf16.msra.mxu0 %v937
          %961 = vmatmul.bf16.gmra.mxu0 %v889
          %v962 = vpop.f32.mrf.mxu0
          %v963 = vadd.f32 %v855, %v962
          %v964 = vpop.f32.mrf.mxu0
          %v965 = vadd.f32 %v855, %v964
          %966 = vmatmul.bf16.gmra.mxu0 %v890
          %v967 = vpop.f32.mrf.mxu0
          %v968 = vadd.f32 %v855, %v967
          %v969 = vpop.f32.mrf.mxu0
          %v970 = vadd.f32 %v855, %v969
          %971 = vmatmul.bf16.gmra.mxu0 %v891
          %v972 = vpop.f32.mrf.mxu0
          %v973 = vadd.f32 %v855, %v972
          %v974 = vpop.f32.mrf.mxu0
          %v975 = vadd.f32 %v855, %v974
          %976 = vmatmul.bf16.gmra.mxu0 %v892
          %v977 = vpop.f32.mrf.mxu0
          %v978 = vadd.f32 %v855, %v977
          %v979 = vpop.f32.mrf.mxu0
          %v980 = vadd.f32 %v855, %v979
          %981 = vmatmul.bf16.gmra.mxu0 %v893
          %v982 = vpop.f32.mrf.mxu0
          %v983 = vadd.f32 %v855, %v982
          %v984 = vpop.f32.mrf.mxu0
          %v985 = vadd.f32 %v855, %v984
          %986 = vmatmul.bf16.gmra.mxu0 %v894
          %v987 = vpop.f32.mrf.mxu0
          %v988 = vadd.f32 %v855, %v987
          %v989 = vpop.f32.mrf.mxu0
          %v990 = vadd.f32 %v855, %v989
          %991 = vmatmul.bf16.gmra.mxu0 %v895
          %v992 = vpop.f32.mrf.mxu0
          %v993 = vadd.f32 %v855, %v992
          %v994 = vpop.f32.mrf.mxu0
          %v995 = vadd.f32 %v855, %v994
          %996 = vmatmul.bf16.gmra.mxu0 %v896
          %v997 = vpop.f32.mrf.mxu0
          %v998 = vadd.f32 %v855, %v997
          %v999 = vpop.f32.mrf.mxu0
          %v1000 = vadd.f32 %v855, %v999
          %1001 = vdwg.mxu0
          %v1002 = vld [vmem:[#allocation13] sm:$0xf]
          %v1003 = vld [vmem:[#allocation13 + $0x4] sm:$0xf]
          %v1004 = vld [vmem:[#allocation13 + $0x8] sm:$0xf]
          %v1005 = vld [vmem:[#allocation13 + $0xc] sm:$0xf]
          %v1006 = vld [vmem:[#allocation13 + $0x10] sm:$0xf]
          %v1007 = vld [vmem:[#allocation13 + $0x14] sm:$0xf]
          %v1008 = vld [vmem:[#allocation13 + $0x18] sm:$0xf]
          %v1009 = vld [vmem:[#allocation13 + $0x1c] sm:$0xf]
          %v1010 = vld [vmem:[#allocation13 + $0x20] sm:$0xf]
          %v1011 = vld [vmem:[#allocation13 + $0x24] sm:$0xf]
          %v1012 = vld [vmem:[#allocation13 + $0x28] sm:$0xf]
          %v1013 = vld [vmem:[#allocation13 + $0x2c] sm:$0xf]
          %v1014 = vld [vmem:[#allocation13 + $0x30] sm:$0xf]
          %v1015 = vld [vmem:[#allocation13 + $0x34] sm:$0xf]
          %v1016 = vld [vmem:[#allocation13 + $0x38] sm:$0xf]
          %v1017 = vld [vmem:[#allocation13 + $0x3c] sm:$0xf]
          %v1018 = vld [vmem:[%s8] sm:$0x1]
          %v1020 = vperm.slane %v1018, 0
          %v1038 = vunpack.c.l.b16 %v1002
          %v1039 = vunpack.c.l.b16 %v1003
          %v1040 = vunpack.c.l.b16 %v1004
          %v1041 = vunpack.c.l.b16 %v1005
          %v1042 = vunpack.c.l.b16 %v1006
          %v1043 = vunpack.c.l.b16 %v1007
          %v1044 = vunpack.c.l.b16 %v1008
          %v1045 = vunpack.c.l.b16 %v1009
          %v1046 = vunpack.c.l.b16 %v1010
          %v1047 = vunpack.c.l.b16 %v1011
          %v1048 = vunpack.c.l.b16 %v1012
          %v1049 = vunpack.c.l.b16 %v1013
          %v1050 = vunpack.c.l.b16 %v1014
          %v1051 = vunpack.c.l.b16 %v1015
          %v1052 = vunpack.c.l.b16 %v1016
          %v1053 = vunpack.c.l.b16 %v1017
          %v1054 = vpack.c.b16 %v1039, %v1038
          %v1055 = vpack.c.b16 %v1041, %v1040
          %v1056 = vpack.c.b16 %v1043, %v1042
          %v1057 = vpack.c.b16 %v1045, %v1044
          %v1058 = vpack.c.b16 %v1047, %v1046
          %v1059 = vpack.c.b16 %v1049, %v1048
          %v1060 = vpack.c.b16 %v1051, %v1050
          %v1061 = vpack.c.b16 %v1053, %v1052
          %1070 = vmatpush.bf16.msra.mxu0 %v1061
          %1071 = vmatpush.bf16.msra.mxu0 %v1060
          %1072 = vmatpush.bf16.msra.mxu0 %v1059
          %1073 = vmatpush.bf16.msra.mxu0 %v1058
          %1074 = vmatpush.bf16.msra.mxu0 %v1057
          %1075 = vmatpush.bf16.msra.mxu0 %v1056
          %1076 = vmatpush.bf16.msra.mxu0 %v1055
          %1077 = vmatpush.bf16.msra.mxu0 %v1054
          %1078 = vmatmul.bf16.gmra.mxu0 %v889
          %v1079 = vpop.f32.mrf.mxu0
          %v1080 = vadd.f32 %v1020, %v1079
          %v1081 = vpop.f32.mrf.mxu0
          %v1082 = vadd.f32 %v1020, %v1081
          %1083 = vmatmul.bf16.gmra.mxu0 %v890
          %v1084 = vpop.f32.mrf.mxu0
          %v1085 = vadd.f32 %v1020, %v1084
          %v1086 = vpop.f32.mrf.mxu0
          %v1087 = vadd.f32 %v1020, %v1086
          %1088 = vmatmul.bf16.gmra.mxu0 %v891
          %v1089 = vpop.f32.mrf.mxu0
          %v1090 = vadd.f32 %v1020, %v1089
          %v1091 = vpop.f32.mrf.mxu0
          %v1092 = vadd.f32 %v1020, %v1091
          %1093 = vmatmul.bf16.gmra.mxu0 %v892
          %v1094 = vpop.f32.mrf.mxu0
          %v1095 = vadd.f32 %v1020, %v1094
          %v1096 = vpop.f32.mrf.mxu0
          %v1097 = vadd.f32 %v1020, %v1096
          %1098 = vmatmul.bf16.gmra.mxu0 %v893
          %v1099 = vpop.f32.mrf.mxu0
          %v1100 = vadd.f32 %v1020, %v1099
          %v1101 = vpop.f32.mrf.mxu0
          %v1102 = vadd.f32 %v1020, %v1101
          %1103 = vmatmul.bf16.gmra.mxu0 %v894
          %v1104 = vpop.f32.mrf.mxu0
          %v1105 = vadd.f32 %v1020, %v1104
          %v1106 = vpop.f32.mrf.mxu0
          %v1107 = vadd.f32 %v1020, %v1106
          %1108 = vmatmul.bf16.gmra.mxu0 %v895
          %v1109 = vpop.f32.mrf.mxu0
          %v1110 = vadd.f32 %v1020, %v1109
          %v1111 = vpop.f32.mrf.mxu0
          %v1112 = vadd.f32 %v1020, %v1111
          %1113 = vmatmul.bf16.gmra.mxu0 %v896
          %v1114 = vpop.f32.mrf.mxu0
          %v1115 = vadd.f32 %v1020, %v1114
          %v1116 = vpop.f32.mrf.mxu0
          %v1117 = vadd.f32 %v1020, %v1116
          %1118 = vdwg.mxu0
          %v1119 = vpack.c.bf16 %v963, %v963
          %v1120 = vpack.c.bf16 %v965, %v965
          %v1121 = vpack.c.bf16 %v968, %v968
          %v1122 = vpack.c.bf16 %v970, %v970
          %v1123 = vpack.c.bf16 %v973, %v973
          %v1124 = vpack.c.bf16 %v975, %v975
          %v1125 = vpack.c.bf16 %v978, %v978
          %v1126 = vpack.c.bf16 %v980, %v980
          %v1127 = vpack.c.bf16 %v983, %v983
          %v1128 = vpack.c.bf16 %v985, %v985
          %v1129 = vpack.c.bf16 %v988, %v988
          %v1130 = vpack.c.bf16 %v990, %v990
          %v1131 = vpack.c.bf16 %v993, %v993
          %v1132 = vpack.c.bf16 %v995, %v995
          %v1133 = vpack.c.bf16 %v998, %v998
          %v1134 = vpack.c.bf16 %v1000, %v1000
          %vm1135 = vcmask 257024
          %1136 = vst.msk [vmem:[#allocation2] sm:$0xf] %vm1135, %v1119
          %1137 = vst.msk [vmem:[#allocation2 + $0x4] sm:$0xf] %vm1135, %v1120
          %1138 = vst.msk [vmem:[#allocation2 + $0x8] sm:$0xf] %vm1135, %v1121
          %1139 = vst.msk [vmem:[#allocation2 + $0xc] sm:$0xf] %vm1135, %v1122
          %1140 = vst.msk [vmem:[#allocation2 + $0x10] sm:$0xf] %vm1135, %v1123
          %1141 = vst.msk [vmem:[#allocation2 + $0x14] sm:$0xf] %vm1135, %v1124
          %1142 = vst.msk [vmem:[#allocation2 + $0x18] sm:$0xf] %vm1135, %v1125
          %1143 = vst.msk [vmem:[#allocation2 + $0x1c] sm:$0xf] %vm1135, %v1126
          %1144 = vst.msk [vmem:[#allocation2 + $0x20] sm:$0xf] %vm1135, %v1127
          %1145 = vst.msk [vmem:[#allocation2 + $0x24] sm:$0xf] %vm1135, %v1128
          %1146 = vst.msk [vmem:[#allocation2 + $0x28] sm:$0xf] %vm1135, %v1129
          %1147 = vst.msk [vmem:[#allocation2 + $0x2c] sm:$0xf] %vm1135, %v1130
          %1148 = vst.msk [vmem:[#allocation2 + $0x30] sm:$0xf] %vm1135, %v1131
          %1149 = vst.msk [vmem:[#allocation2 + $0x34] sm:$0xf] %vm1135, %v1132
          %1150 = vst.msk [vmem:[#allocation2 + $0x38] sm:$0xf] %vm1135, %v1133
          %1151 = vst.msk [vmem:[#allocation2 + $0x3c] sm:$0xf] %vm1135, %v1134
          %v1152 = vpack.c.bf16 %v1080, %v1080
          %v1153 = vpack.c.bf16 %v1082, %v1082
          %v1154 = vpack.c.bf16 %v1085, %v1085
          %v1155 = vpack.c.bf16 %v1087, %v1087
          %v1156 = vpack.c.bf16 %v1090, %v1090
          %v1157 = vpack.c.bf16 %v1092, %v1092
          %v1158 = vpack.c.bf16 %v1095, %v1095
          %v1159 = vpack.c.bf16 %v1097, %v1097
          %v1160 = vpack.c.bf16 %v1100, %v1100
          %v1161 = vpack.c.bf16 %v1102, %v1102
          %v1162 = vpack.c.bf16 %v1105, %v1105
          %v1163 = vpack.c.bf16 %v1107, %v1107
          %v1164 = vpack.c.bf16 %v1110, %v1110
          %v1165 = vpack.c.bf16 %v1112, %v1112
          %v1166 = vpack.c.bf16 %v1115, %v1115
          %v1167 = vpack.c.bf16 %v1117, %v1117
          %1168 = vst.msk [vmem:[#allocation3] sm:$0xf] %vm1135, %v1152
          %1169 = vst.msk [vmem:[#allocation3 + $0x4] sm:$0xf] %vm1135, %v1153
          %1170 = vst.msk [vmem:[#allocation3 + $0x8] sm:$0xf] %vm1135, %v1154
          %1171 = vst.msk [vmem:[#allocation3 + $0xc] sm:$0xf] %vm1135, %v1155
          %1172 = vst.msk [vmem:[#allocation3 + $0x10] sm:$0xf] %vm1135, %v1156
          %1173 = vst.msk [vmem:[#allocation3 + $0x14] sm:$0xf] %vm1135, %v1157
          %1174 = vst.msk [vmem:[#allocation3 + $0x18] sm:$0xf] %vm1135, %v1158
          %1175 = vst.msk [vmem:[#allocation3 + $0x1c] sm:$0xf] %vm1135, %v1159
          %1176 = vst.msk [vmem:[#allocation3 + $0x20] sm:$0xf] %vm1135, %v1160
          %1177 = vst.msk [vmem:[#allocation3 + $0x24] sm:$0xf] %vm1135, %v1161
          %1178 = vst.msk [vmem:[#allocation3 + $0x28] sm:$0xf] %vm1135, %v1162
          %1179 = vst.msk [vmem:[#allocation3 + $0x2c] sm:$0xf] %vm1135, %v1163
          %1180 = vst.msk [vmem:[#allocation3 + $0x30] sm:$0xf] %vm1135, %v1164
          %1181 = vst.msk [vmem:[#allocation3 + $0x34] sm:$0xf] %vm1135, %v1165
          %1182 = vst.msk [vmem:[#allocation3 + $0x38] sm:$0xf] %vm1135, %v1166
          %1183 = vst.msk [vmem:[#allocation3 + $0x3c] sm:$0xf] %vm1135, %v1167
          %v1184 = vld [vmem:[#allocation12] sm:$0xf]
          %v1185 = vld [vmem:[#allocation12 + $0x4] sm:$0xf]
          %v1186 = vld [vmem:[#allocation12 + $0x8] sm:$0xf]
          %v1187 = vld [vmem:[#allocation12 + $0xc] sm:$0xf]
          %v1188 = vld [vmem:[#allocation12 + $0x10] sm:$0xf]
          %v1189 = vld [vmem:[#allocation12 + $0x14] sm:$0xf]
          %v1190 = vld [vmem:[#allocation12 + $0x18] sm:$0xf]
          %v1191 = vld [vmem:[#allocation12 + $0x1c] sm:$0xf]
          %v1192 = vld [vmem:[#allocation12 + $0x20] sm:$0xf]
          %v1193 = vld [vmem:[#allocation12 + $0x24] sm:$0xf]
          %v1194 = vld [vmem:[#allocation12 + $0x28] sm:$0xf]
          %v1195 = vld [vmem:[#allocation12 + $0x2c] sm:$0xf]
          %v1196 = vld [vmem:[#allocation12 + $0x30] sm:$0xf]
          %v1197 = vld [vmem:[#allocation12 + $0x34] sm:$0xf]
          %v1198 = vld [vmem:[#allocation12 + $0x38] sm:$0xf]
          %v1199 = vld [vmem:[#allocation12 + $0x3c] sm:$0xf]
          %v1200 = vld [vmem:[%s6] sm:$0x1]
          %v1202 = vperm.slane %v1200, 0
          %v1219 = vunpack.c.l.b16 %v1184
          %v1220 = vunpack.c.l.b16 %v1185
          %v1221 = vunpack.c.l.b16 %v1186
          %v1222 = vunpack.c.l.b16 %v1187
          %v1223 = vunpack.c.l.b16 %v1188
          %v1224 = vunpack.c.l.b16 %v1189
          %v1225 = vunpack.c.l.b16 %v1190
          %v1226 = vunpack.c.l.b16 %v1191
          %v1227 = vunpack.c.l.b16 %v1192
          %v1228 = vunpack.c.l.b16 %v1193
          %v1229 = vunpack.c.l.b16 %v1194
          %v1230 = vunpack.c.l.b16 %v1195
          %v1231 = vunpack.c.l.b16 %v1196
          %v1232 = vunpack.c.l.b16 %v1197
          %v1233 = vunpack.c.l.b16 %v1198
          %v1234 = vunpack.c.l.b16 %v1199
          %v1235 = vpack.c.b16 %v1220, %v1219
          %v1236 = vpack.c.b16 %v1222, %v1221
          %v1237 = vpack.c.b16 %v1224, %v1223
          %v1238 = vpack.c.b16 %v1226, %v1225
          %v1239 = vpack.c.b16 %v1228, %v1227
          %v1240 = vpack.c.b16 %v1230, %v1229
          %v1241 = vpack.c.b16 %v1232, %v1231
          %v1242 = vpack.c.b16 %v1234, %v1233
          %1243 = vrot.lane.b32.xlu0 %v1235, 96
          %v1244 = vpop.permute.xlu0 %1243
          %1245 = vrot.lane.b32.xlu0 %v1236, 96
          %v1246 = vpop.permute.xlu0 %1245
          %1247 = vrot.lane.b32.xlu0 %v1237, 96
          %v1248 = vpop.permute.xlu0 %1247
          %1249 = vrot.lane.b32.xlu0 %v1238, 96
          %v1250 = vpop.permute.xlu0 %1249
          %1251 = vrot.lane.b32.xlu0 %v1239, 96
          %v1252 = vpop.permute.xlu0 %1251
          %1253 = vrot.lane.b32.xlu0 %v1240, 96
          %v1254 = vpop.permute.xlu0 %1253
          %1255 = vrot.lane.b32.xlu0 %v1241, 96
          %v1256 = vpop.permute.xlu0 %1255
          %1257 = vrot.lane.b32.xlu0 %v1242, 96
          %v1258 = vpop.permute.xlu0 %1257
          %1267 = vrot.lane.b32.xlu0 %v1202, 96
          %v1268 = vpop.permute.xlu0 %1267
          %1270 = vmatpush.bf16.msra.mxu0 %v1258
          %1271 = vmatpush.bf16.msra.mxu0 %v1256
          %1272 = vmatpush.bf16.msra.mxu0 %v1254
          %1273 = vmatpush.bf16.msra.mxu0 %v1252
          %1274 = vmatpush.bf16.msra.mxu0 %v1250
          %1275 = vmatpush.bf16.msra.mxu0 %v1248
          %1276 = vmatpush.bf16.msra.mxu0 %v1246
          %1277 = vmatpush.bf16.msra.mxu0 %v1244
          %1278 = vmatmul.bf16.gmra.mxu0 %v889
          %v1279 = vpop.f32.mrf.mxu0
          %v1280 = vadd.f32 %v1268, %v1279
          %v1281 = vpop.f32.mrf.mxu0
          %v1282 = vadd.f32 %v1268, %v1281
          %1283 = vmatmul.bf16.gmra.mxu0 %v890
          %v1284 = vpop.f32.mrf.mxu0
          %v1285 = vadd.f32 %v1268, %v1284
          %v1286 = vpop.f32.mrf.mxu0
          %v1287 = vadd.f32 %v1268, %v1286
          %1288 = vmatmul.bf16.gmra.mxu0 %v891
          %v1289 = vpop.f32.mrf.mxu0
          %v1290 = vadd.f32 %v1268, %v1289
          %v1291 = vpop.f32.mrf.mxu0
          %v1292 = vadd.f32 %v1268, %v1291
          %1293 = vmatmul.bf16.gmra.mxu0 %v892
          %v1294 = vpop.f32.mrf.mxu0
          %v1295 = vadd.f32 %v1268, %v1294
          %v1296 = vpop.f32.mrf.mxu0
          %v1297 = vadd.f32 %v1268, %v1296
          %1298 = vmatmul.bf16.gmra.mxu0 %v893
          %v1299 = vpop.f32.mrf.mxu0
          %v1300 = vadd.f32 %v1268, %v1299
          %v1301 = vpop.f32.mrf.mxu0
          %v1302 = vadd.f32 %v1268, %v1301
          %1303 = vmatmul.bf16.gmra.mxu0 %v894
          %v1304 = vpop.f32.mrf.mxu0
          %v1305 = vadd.f32 %v1268, %v1304
          %v1306 = vpop.f32.mrf.mxu0
          %v1307 = vadd.f32 %v1268, %v1306
          %1308 = vmatmul.bf16.gmra.mxu0 %v895
          %v1309 = vpop.f32.mrf.mxu0
          %v1310 = vadd.f32 %v1268, %v1309
          %v1311 = vpop.f32.mrf.mxu0
          %v1312 = vadd.f32 %v1268, %v1311
          %1313 = vmatmul.bf16.gmra.mxu0 %v896
          %v1314 = vpop.f32.mrf.mxu0
          %v1315 = vadd.f32 %v1268, %v1314
          %v1316 = vpop.f32.mrf.mxu0
          %v1317 = vadd.f32 %v1268, %v1316
          %1318 = vdwg.mxu0
          %v1319 = vld [vmem:[#allocation13] sm:$0xf]
          %v1320 = vld [vmem:[#allocation13 + $0x4] sm:$0xf]
          %v1321 = vld [vmem:[#allocation13 + $0x8] sm:$0xf]
          %v1322 = vld [vmem:[#allocation13 + $0xc] sm:$0xf]
          %v1323 = vld [vmem:[#allocation13 + $0x10] sm:$0xf]
          %v1324 = vld [vmem:[#allocation13 + $0x14] sm:$0xf]
          %v1325 = vld [vmem:[#allocation13 + $0x18] sm:$0xf]
          %v1326 = vld [vmem:[#allocation13 + $0x1c] sm:$0xf]
          %v1327 = vld [vmem:[#allocation13 + $0x20] sm:$0xf]
          %v1328 = vld [vmem:[#allocation13 + $0x24] sm:$0xf]
          %v1329 = vld [vmem:[#allocation13 + $0x28] sm:$0xf]
          %v1330 = vld [vmem:[#allocation13 + $0x2c] sm:$0xf]
          %v1331 = vld [vmem:[#allocation13 + $0x30] sm:$0xf]
          %v1332 = vld [vmem:[#allocation13 + $0x34] sm:$0xf]
          %v1333 = vld [vmem:[#allocation13 + $0x38] sm:$0xf]
          %v1334 = vld [vmem:[#allocation13 + $0x3c] sm:$0xf]
          %v1335 = vld [vmem:[%s8] sm:$0x1]
          %v1337 = vperm.slane %v1335, 0
          %v1354 = vunpack.c.l.b16 %v1319
          %v1355 = vunpack.c.l.b16 %v1320
          %v1356 = vunpack.c.l.b16 %v1321
          %v1357 = vunpack.c.l.b16 %v1322
          %v1358 = vunpack.c.l.b16 %v1323
          %v1359 = vunpack.c.l.b16 %v1324
          %v1360 = vunpack.c.l.b16 %v1325
          %v1361 = vunpack.c.l.b16 %v1326
          %v1362 = vunpack.c.l.b16 %v1327
          %v1363 = vunpack.c.l.b16 %v1328
          %v1364 = vunpack.c.l.b16 %v1329
          %v1365 = vunpack.c.l.b16 %v1330
          %v1366 = vunpack.c.l.b16 %v1331
          %v1367 = vunpack.c.l.b16 %v1332
          %v1368 = vunpack.c.l.b16 %v1333
          %v1369 = vunpack.c.l.b16 %v1334
          %v1370 = vpack.c.b16 %v1355, %v1354
          %v1371 = vpack.c.b16 %v1357, %v1356
          %v1372 = vpack.c.b16 %v1359, %v1358
          %v1373 = vpack.c.b16 %v1361, %v1360
          %v1374 = vpack.c.b16 %v1363, %v1362
          %v1375 = vpack.c.b16 %v1365, %v1364
          %v1376 = vpack.c.b16 %v1367, %v1366
          %v1377 = vpack.c.b16 %v1369, %v1368
          %1378 = vrot.lane.b32.xlu0 %v1370, 96
          %v1379 = vpop.permute.xlu0 %1378
          %1380 = vrot.lane.b32.xlu0 %v1371, 96
          %v1381 = vpop.permute.xlu0 %1380
          %1382 = vrot.lane.b32.xlu0 %v1372, 96
          %v1383 = vpop.permute.xlu0 %1382
          %1384 = vrot.lane.b32.xlu0 %v1373, 96
          %v1385 = vpop.permute.xlu0 %1384
          %1386 = vrot.lane.b32.xlu0 %v1374, 96
          %v1387 = vpop.permute.xlu0 %1386
          %1388 = vrot.lane.b32.xlu0 %v1375, 96
          %v1389 = vpop.permute.xlu0 %1388
          %1390 = vrot.lane.b32.xlu0 %v1376, 96
          %v1391 = vpop.permute.xlu0 %1390
          %1392 = vrot.lane.b32.xlu0 %v1377, 96
          %v1393 = vpop.permute.xlu0 %1392
          %1402 = vrot.lane.b32.xlu0 %v1337, 96
          %v1403 = vpop.permute.xlu0 %1402
          %1405 = vmatpush.bf16.msra.mxu0 %v1393
          %1406 = vmatpush.bf16.msra.mxu0 %v1391
          %1407 = vmatpush.bf16.msra.mxu0 %v1389
          %1408 = vmatpush.bf16.msra.mxu0 %v1387
          %1409 = vmatpush.bf16.msra.mxu0 %v1385
          %1410 = vmatpush.bf16.msra.mxu0 %v1383
          %1411 = vmatpush.bf16.msra.mxu0 %v1381
          %1412 = vmatpush.bf16.msra.mxu0 %v1379
          %1413 = vmatmul.bf16.gmra.mxu0 %v889
          %v1414 = vpop.f32.mrf.mxu0
          %v1415 = vadd.f32 %v1403, %v1414
          %v1416 = vpop.f32.mrf.mxu0
          %v1417 = vadd.f32 %v1403, %v1416
          %1418 = vmatmul.bf16.gmra.mxu0 %v890
          %v1419 = vpop.f32.mrf.mxu0
          %v1420 = vadd.f32 %v1403, %v1419
          %v1421 = vpop.f32.mrf.mxu0
          %v1422 = vadd.f32 %v1403, %v1421
          %1423 = vmatmul.bf16.gmra.mxu0 %v891
          %v1424 = vpop.f32.mrf.mxu0
          %v1425 = vadd.f32 %v1403, %v1424
          %v1426 = vpop.f32.mrf.mxu0
          %v1427 = vadd.f32 %v1403, %v1426
          %1428 = vmatmul.bf16.gmra.mxu0 %v892
          %v1429 = vpop.f32.mrf.mxu0
          %v1430 = vadd.f32 %v1403, %v1429
          %v1431 = vpop.f32.mrf.mxu0
          %v1432 = vadd.f32 %v1403, %v1431
          %1433 = vmatmul.bf16.gmra.mxu0 %v893
          %v1434 = vpop.f32.mrf.mxu0
          %v1435 = vadd.f32 %v1403, %v1434
          %v1436 = vpop.f32.mrf.mxu0
          %v1437 = vadd.f32 %v1403, %v1436
          %1438 = vmatmul.bf16.gmra.mxu0 %v894
          %v1439 = vpop.f32.mrf.mxu0
          %v1440 = vadd.f32 %v1403, %v1439
          %v1441 = vpop.f32.mrf.mxu0
          %v1442 = vadd.f32 %v1403, %v1441
          %1443 = vmatmul.bf16.gmra.mxu0 %v895
          %v1444 = vpop.f32.mrf.mxu0
          %v1445 = vadd.f32 %v1403, %v1444
          %v1446 = vpop.f32.mrf.mxu0
          %v1447 = vadd.f32 %v1403, %v1446
          %1448 = vmatmul.bf16.gmra.mxu0 %v896
          %v1449 = vpop.f32.mrf.mxu0
          %v1450 = vadd.f32 %v1403, %v1449
          %v1451 = vpop.f32.mrf.mxu0
          %v1452 = vadd.f32 %v1403, %v1451
          %1453 = vdwg.mxu0
          %v1454 = vpack.c.bf16 %v1280, %v1280
          %v1455 = vpack.c.bf16 %v1282, %v1282
          %v1456 = vpack.c.bf16 %v1285, %v1285
          %v1457 = vpack.c.bf16 %v1287, %v1287
          %v1458 = vpack.c.bf16 %v1290, %v1290
          %v1459 = vpack.c.bf16 %v1292, %v1292
          %v1460 = vpack.c.bf16 %v1295, %v1295
          %v1461 = vpack.c.bf16 %v1297, %v1297
          %v1462 = vpack.c.bf16 %v1300, %v1300
          %v1463 = vpack.c.bf16 %v1302, %v1302
          %v1464 = vpack.c.bf16 %v1305, %v1305
          %v1465 = vpack.c.bf16 %v1307, %v1307
          %v1466 = vpack.c.bf16 %v1310, %v1310
          %v1467 = vpack.c.bf16 %v1312, %v1312
          %v1468 = vpack.c.bf16 %v1315, %v1315
          %v1469 = vpack.c.bf16 %v1317, %v1317
          %s1470 = scalar_lea.vmem [#allocation2], 64
          %1471 = vst.msk [vmem:[%s1470] sm:$0xf] %vm1135, %v1454
          %1472 = vst.msk [vmem:[%s1470 + $0x4] sm:$0xf] %vm1135, %v1455
          %1473 = vst.msk [vmem:[%s1470 + $0x8] sm:$0xf] %vm1135, %v1456
          %1474 = vst.msk [vmem:[%s1470 + $0xc] sm:$0xf] %vm1135, %v1457
          %1475 = vst.msk [vmem:[%s1470 + $0x10] sm:$0xf] %vm1135, %v1458
          %1476 = vst.msk [vmem:[%s1470 + $0x14] sm:$0xf] %vm1135, %v1459
          %1477 = vst.msk [vmem:[%s1470 + $0x18] sm:$0xf] %vm1135, %v1460
          %1478 = vst.msk [vmem:[%s1470 + $0x1c] sm:$0xf] %vm1135, %v1461
          %1479 = vst.msk [vmem:[%s1470 + $0x20] sm:$0xf] %vm1135, %v1462
          %1480 = vst.msk [vmem:[%s1470 + $0x24] sm:$0xf] %vm1135, %v1463
          %1481 = vst.msk [vmem:[%s1470 + $0x28] sm:$0xf] %vm1135, %v1464
          %1482 = vst.msk [vmem:[%s1470 + $0x2c] sm:$0xf] %vm1135, %v1465
          %1483 = vst.msk [vmem:[%s1470 + $0x30] sm:$0xf] %vm1135, %v1466
          %1484 = vst.msk [vmem:[%s1470 + $0x34] sm:$0xf] %vm1135, %v1467
          %1485 = vst.msk [vmem:[%s1470 + $0x38] sm:$0xf] %vm1135, %v1468
          %1486 = vst.msk [vmem:[%s1470 + $0x3c] sm:$0xf] %vm1135, %v1469
          %v1487 = vpack.c.bf16 %v1415, %v1415
          %v1488 = vpack.c.bf16 %v1417, %v1417
          %v1489 = vpack.c.bf16 %v1420, %v1420
          %v1490 = vpack.c.bf16 %v1422, %v1422
          %v1491 = vpack.c.bf16 %v1425, %v1425
          %v1492 = vpack.c.bf16 %v1427, %v1427
          %v1493 = vpack.c.bf16 %v1430, %v1430
          %v1494 = vpack.c.bf16 %v1432, %v1432
          %v1495 = vpack.c.bf16 %v1435, %v1435
          %v1496 = vpack.c.bf16 %v1437, %v1437
          %v1497 = vpack.c.bf16 %v1440, %v1440
          %v1498 = vpack.c.bf16 %v1442, %v1442
          %v1499 = vpack.c.bf16 %v1445, %v1445
          %v1500 = vpack.c.bf16 %v1447, %v1447
          %v1501 = vpack.c.bf16 %v1450, %v1450
          %v1502 = vpack.c.bf16 %v1452, %v1452
          %s1503 = scalar_lea.vmem [#allocation3], 64
          %1504 = vst.msk [vmem:[%s1503] sm:$0xf] %vm1135, %v1487
          %1505 = vst.msk [vmem:[%s1503 + $0x4] sm:$0xf] %vm1135, %v1488
          %1506 = vst.msk [vmem:[%s1503 + $0x8] sm:$0xf] %vm1135, %v1489
          %1507 = vst.msk [vmem:[%s1503 + $0xc] sm:$0xf] %vm1135, %v1490
          %1508 = vst.msk [vmem:[%s1503 + $0x10] sm:$0xf] %vm1135, %v1491
          %1509 = vst.msk [vmem:[%s1503 + $0x14] sm:$0xf] %vm1135, %v1492
          %1510 = vst.msk [vmem:[%s1503 + $0x18] sm:$0xf] %vm1135, %v1493
          %1511 = vst.msk [vmem:[%s1503 + $0x1c] sm:$0xf] %vm1135, %v1494
          %1512 = vst.msk [vmem:[%s1503 + $0x20] sm:$0xf] %vm1135, %v1495
          %1513 = vst.msk [vmem:[%s1503 + $0x24] sm:$0xf] %vm1135, %v1496
          %1514 = vst.msk [vmem:[%s1503 + $0x28] sm:$0xf] %vm1135, %v1497
          %1515 = vst.msk [vmem:[%s1503 + $0x2c] sm:$0xf] %vm1135, %v1498
          %1516 = vst.msk [vmem:[%s1503 + $0x30] sm:$0xf] %vm1135, %v1499
          %1517 = vst.msk [vmem:[%s1503 + $0x34] sm:$0xf] %vm1135, %v1500
          %1518 = vst.msk [vmem:[%s1503 + $0x38] sm:$0xf] %vm1135, %v1501
          %1519 = vst.msk [vmem:[%s1503 + $0x3c] sm:$0xf] %vm1135, %v1502
          %v1520 = vld [vmem:[#allocation12] sm:$0xf]
          %v1521 = vld [vmem:[#allocation12 + $0x4] sm:$0xf]
          %v1522 = vld [vmem:[#allocation12 + $0x8] sm:$0xf]
          %v1523 = vld [vmem:[#allocation12 + $0xc] sm:$0xf]
          %v1524 = vld [vmem:[#allocation12 + $0x10] sm:$0xf]
          %v1525 = vld [vmem:[#allocation12 + $0x14] sm:$0xf]
          %v1526 = vld [vmem:[#allocation12 + $0x18] sm:$0xf]
          %v1527 = vld [vmem:[#allocation12 + $0x1c] sm:$0xf]
          %v1528 = vld [vmem:[#allocation12 + $0x20] sm:$0xf]
          %v1529 = vld [vmem:[#allocation12 + $0x24] sm:$0xf]
          %v1530 = vld [vmem:[#allocation12 + $0x28] sm:$0xf]
          %v1531 = vld [vmem:[#allocation12 + $0x2c] sm:$0xf]
          %v1532 = vld [vmem:[#allocation12 + $0x30] sm:$0xf]
          %v1533 = vld [vmem:[#allocation12 + $0x34] sm:$0xf]
          %v1534 = vld [vmem:[#allocation12 + $0x38] sm:$0xf]
          %v1535 = vld [vmem:[#allocation12 + $0x3c] sm:$0xf]
          %v1536 = vld [vmem:[%s6] sm:$0x1]
          %v1538 = vperm.slane %v1536, 0
          %v1555 = vunpack.c.l.b16 %v1520
          %v1556 = vunpack.c.l.b16 %v1521
          %v1557 = vunpack.c.l.b16 %v1522
          %v1558 = vunpack.c.l.b16 %v1523
          %v1559 = vunpack.c.l.b16 %v1524
          %v1560 = vunpack.c.l.b16 %v1525
          %v1561 = vunpack.c.l.b16 %v1526
          %v1562 = vunpack.c.l.b16 %v1527
          %v1563 = vunpack.c.l.b16 %v1528
          %v1564 = vunpack.c.l.b16 %v1529
          %v1565 = vunpack.c.l.b16 %v1530
          %v1566 = vunpack.c.l.b16 %v1531
          %v1567 = vunpack.c.l.b16 %v1532
          %v1568 = vunpack.c.l.b16 %v1533
          %v1569 = vunpack.c.l.b16 %v1534
          %v1570 = vunpack.c.l.b16 %v1535
          %v1571 = vpack.c.b16 %v1556, %v1555
          %v1572 = vpack.c.b16 %v1558, %v1557
          %v1573 = vpack.c.b16 %v1560, %v1559
          %v1574 = vpack.c.b16 %v1562, %v1561
          %v1575 = vpack.c.b16 %v1564, %v1563
          %v1576 = vpack.c.b16 %v1566, %v1565
          %v1577 = vpack.c.b16 %v1568, %v1567
          %v1578 = vpack.c.b16 %v1570, %v1569
          %1579 = vrot.lane.b32.xlu0 %v1571, 64
          %v1580 = vpop.permute.xlu0 %1579
          %1581 = vrot.lane.b32.xlu0 %v1572, 64
          %v1582 = vpop.permute.xlu0 %1581
          %1583 = vrot.lane.b32.xlu0 %v1573, 64
          %v1584 = vpop.permute.xlu0 %1583
          %1585 = vrot.lane.b32.xlu0 %v1574, 64
          %v1586 = vpop.permute.xlu0 %1585
          %1587 = vrot.lane.b32.xlu0 %v1575, 64
          %v1588 = vpop.permute.xlu0 %1587
          %1589 = vrot.lane.b32.xlu0 %v1576, 64
          %v1590 = vpop.permute.xlu0 %1589
          %1591 = vrot.lane.b32.xlu0 %v1577, 64
          %v1592 = vpop.permute.xlu0 %1591
          %1593 = vrot.lane.b32.xlu0 %v1578, 64
          %v1594 = vpop.permute.xlu0 %1593
          %1603 = vrot.lane.b32.xlu0 %v1538, 64
          %v1604 = vpop.permute.xlu0 %1603
          %1606 = vmatpush.bf16.msra.mxu0 %v1594
          %1607 = vmatpush.bf16.msra.mxu0 %v1592
          %1608 = vmatpush.bf16.msra.mxu0 %v1590
          %1609 = vmatpush.bf16.msra.mxu0 %v1588
          %1610 = vmatpush.bf16.msra.mxu0 %v1586
          %1611 = vmatpush.bf16.msra.mxu0 %v1584
          %1612 = vmatpush.bf16.msra.mxu0 %v1582
          %1613 = vmatpush.bf16.msra.mxu0 %v1580
          %1614 = vmatmul.bf16.gmra.mxu0 %v889
          %v1615 = vpop.f32.mrf.mxu0
          %v1616 = vadd.f32 %v1604, %v1615
          %v1617 = vpop.f32.mrf.mxu0
          %v1618 = vadd.f32 %v1604, %v1617
          %1619 = vmatmul.bf16.gmra.mxu0 %v890
          %v1620 = vpop.f32.mrf.mxu0
          %v1621 = vadd.f32 %v1604, %v1620
          %v1622 = vpop.f32.mrf.mxu0
          %v1623 = vadd.f32 %v1604, %v1622
          %1624 = vmatmul.bf16.gmra.mxu0 %v891
          %v1625 = vpop.f32.mrf.mxu0
          %v1626 = vadd.f32 %v1604, %v1625
          %v1627 = vpop.f32.mrf.mxu0
          %v1628 = vadd.f32 %v1604, %v1627
          %1629 = vmatmul.bf16.gmra.mxu0 %v892
          %v1630 = vpop.f32.mrf.mxu0
          %v1631 = vadd.f32 %v1604, %v1630
          %v1632 = vpop.f32.mrf.mxu0
          %v1633 = vadd.f32 %v1604, %v1632
          %1634 = vmatmul.bf16.gmra.mxu0 %v893
          %v1635 = vpop.f32.mrf.mxu0
          %v1636 = vadd.f32 %v1604, %v1635
          %v1637 = vpop.f32.mrf.mxu0
          %v1638 = vadd.f32 %v1604, %v1637
          %1639 = vmatmul.bf16.gmra.mxu0 %v894
          %v1640 = vpop.f32.mrf.mxu0
          %v1641 = vadd.f32 %v1604, %v1640
          %v1642 = vpop.f32.mrf.mxu0
          %v1643 = vadd.f32 %v1604, %v1642
          %1644 = vmatmul.bf16.gmra.mxu0 %v895
          %v1645 = vpop.f32.mrf.mxu0
          %v1646 = vadd.f32 %v1604, %v1645
          %v1647 = vpop.f32.mrf.mxu0
          %v1648 = vadd.f32 %v1604, %v1647
          %1649 = vmatmul.bf16.gmra.mxu0 %v896
          %v1650 = vpop.f32.mrf.mxu0
          %v1651 = vadd.f32 %v1604, %v1650
          %v1652 = vpop.f32.mrf.mxu0
          %v1653 = vadd.f32 %v1604, %v1652
          %1654 = vdwg.mxu0
          %v1655 = vld [vmem:[#allocation13] sm:$0xf]
          %v1656 = vld [vmem:[#allocation13 + $0x4] sm:$0xf]
          %v1657 = vld [vmem:[#allocation13 + $0x8] sm:$0xf]
          %v1658 = vld [vmem:[#allocation13 + $0xc] sm:$0xf]
          %v1659 = vld [vmem:[#allocation13 + $0x10] sm:$0xf]
          %v1660 = vld [vmem:[#allocation13 + $0x14] sm:$0xf]
          %v1661 = vld [vmem:[#allocation13 + $0x18] sm:$0xf]
          %v1662 = vld [vmem:[#allocation13 + $0x1c] sm:$0xf]
          %v1663 = vld [vmem:[#allocation13 + $0x20] sm:$0xf]
          %v1664 = vld [vmem:[#allocation13 + $0x24] sm:$0xf]
          %v1665 = vld [vmem:[#allocation13 + $0x28] sm:$0xf]
          %v1666 = vld [vmem:[#allocation13 + $0x2c] sm:$0xf]
          %v1667 = vld [vmem:[#allocation13 + $0x30] sm:$0xf]
          %v1668 = vld [vmem:[#allocation13 + $0x34] sm:$0xf]
          %v1669 = vld [vmem:[#allocation13 + $0x38] sm:$0xf]
          %v1670 = vld [vmem:[#allocation13 + $0x3c] sm:$0xf]
          %v1671 = vld [vmem:[%s8] sm:$0x1]
          %v1673 = vperm.slane %v1671, 0
          %v1690 = vunpack.c.l.b16 %v1655
          %v1691 = vunpack.c.l.b16 %v1656
          %v1692 = vunpack.c.l.b16 %v1657
          %v1693 = vunpack.c.l.b16 %v1658
          %v1694 = vunpack.c.l.b16 %v1659
          %v1695 = vunpack.c.l.b16 %v1660
          %v1696 = vunpack.c.l.b16 %v1661
          %v1697 = vunpack.c.l.b16 %v1662
          %v1698 = vunpack.c.l.b16 %v1663
          %v1699 = vunpack.c.l.b16 %v1664
          %v1700 = vunpack.c.l.b16 %v1665
          %v1701 = vunpack.c.l.b16 %v1666
          %v1702 = vunpack.c.l.b16 %v1667
          %v1703 = vunpack.c.l.b16 %v1668
          %v1704 = vunpack.c.l.b16 %v1669
          %v1705 = vunpack.c.l.b16 %v1670
          %v1706 = vpack.c.b16 %v1691, %v1690
          %v1707 = vpack.c.b16 %v1693, %v1692
          %v1708 = vpack.c.b16 %v1695, %v1694
          %v1709 = vpack.c.b16 %v1697, %v1696
          %v1710 = vpack.c.b16 %v1699, %v1698
          %v1711 = vpack.c.b16 %v1701, %v1700
          %v1712 = vpack.c.b16 %v1703, %v1702
          %v1713 = vpack.c.b16 %v1705, %v1704
          %1714 = vrot.lane.b32.xlu0 %v1706, 64
          %v1715 = vpop.permute.xlu0 %1714
          %1716 = vrot.lane.b32.xlu0 %v1707, 64
          %v1717 = vpop.permute.xlu0 %1716
          %1718 = vrot.lane.b32.xlu0 %v1708, 64
          %v1719 = vpop.permute.xlu0 %1718
          %1720 = vrot.lane.b32.xlu0 %v1709, 64
          %v1721 = vpop.permute.xlu0 %1720
          %1722 = vrot.lane.b32.xlu0 %v1710, 64
          %v1723 = vpop.permute.xlu0 %1722
          %1724 = vrot.lane.b32.xlu0 %v1711, 64
          %v1725 = vpop.permute.xlu0 %1724
          %1726 = vrot.lane.b32.xlu0 %v1712, 64
          %v1727 = vpop.permute.xlu0 %1726
          %1728 = vrot.lane.b32.xlu0 %v1713, 64
          %v1729 = vpop.permute.xlu0 %1728
          %1738 = vrot.lane.b32.xlu0 %v1673, 64
          %v1739 = vpop.permute.xlu0 %1738
          %1741 = vmatpush.bf16.msra.mxu0 %v1729
          %1742 = vmatpush.bf16.msra.mxu0 %v1727
          %1743 = vmatpush.bf16.msra.mxu0 %v1725
          %1744 = vmatpush.bf16.msra.mxu0 %v1723
          %1745 = vmatpush.bf16.msra.mxu0 %v1721
          %1746 = vmatpush.bf16.msra.mxu0 %v1719
          %1747 = vmatpush.bf16.msra.mxu0 %v1717
          %1748 = vmatpush.bf16.msra.mxu0 %v1715
          %1749 = vmatmul.bf16.gmra.mxu0 %v889
          %v1750 = vpop.f32.mrf.mxu0
          %v1751 = vadd.f32 %v1739, %v1750
          %v1752 = vpop.f32.mrf.mxu0
          %v1753 = vadd.f32 %v1739, %v1752
          %1754 = vmatmul.bf16.gmra.mxu0 %v890
          %v1755 = vpop.f32.mrf.mxu0
          %v1756 = vadd.f32 %v1739, %v1755
          %v1757 = vpop.f32.mrf.mxu0
          %v1758 = vadd.f32 %v1739, %v1757
          %1759 = vmatmul.bf16.gmra.mxu0 %v891
          %v1760 = vpop.f32.mrf.mxu0
          %v1761 = vadd.f32 %v1739, %v1760
          %v1762 = vpop.f32.mrf.mxu0
          %v1763 = vadd.f32 %v1739, %v1762
          %1764 = vmatmul.bf16.gmra.mxu0 %v892
          %v1765 = vpop.f32.mrf.mxu0
          %v1766 = vadd.f32 %v1739, %v1765
          %v1767 = vpop.f32.mrf.mxu0
          %v1768 = vadd.f32 %v1739, %v1767
          %1769 = vmatmul.bf16.gmra.mxu0 %v893
          %v1770 = vpop.f32.mrf.mxu0
          %v1771 = vadd.f32 %v1739, %v1770
          %v1772 = vpop.f32.mrf.mxu0
          %v1773 = vadd.f32 %v1739, %v1772
          %1774 = vmatmul.bf16.gmra.mxu0 %v894
          %v1775 = vpop.f32.mrf.mxu0
          %v1776 = vadd.f32 %v1739, %v1775
          %v1777 = vpop.f32.mrf.mxu0
          %v1778 = vadd.f32 %v1739, %v1777
          %1779 = vmatmul.bf16.gmra.mxu0 %v895
          %v1780 = vpop.f32.mrf.mxu0
          %v1781 = vadd.f32 %v1739, %v1780
          %v1782 = vpop.f32.mrf.mxu0
          %v1783 = vadd.f32 %v1739, %v1782
          %1784 = vmatmul.bf16.gmra.mxu0 %v896
          %v1785 = vpop.f32.mrf.mxu0
          %v1786 = vadd.f32 %v1739, %v1785
          %v1787 = vpop.f32.mrf.mxu0
          %v1788 = vadd.f32 %v1739, %v1787
          %1789 = vdwg.mxu0
          %v1790 = vpack.c.bf16 %v1616, %v1616
          %v1791 = vpack.c.bf16 %v1618, %v1618
          %v1792 = vpack.c.bf16 %v1621, %v1621
          %v1793 = vpack.c.bf16 %v1623, %v1623
          %v1794 = vpack.c.bf16 %v1626, %v1626
          %v1795 = vpack.c.bf16 %v1628, %v1628
          %v1796 = vpack.c.bf16 %v1631, %v1631
          %v1797 = vpack.c.bf16 %v1633, %v1633
          %v1798 = vpack.c.bf16 %v1636, %v1636
          %v1799 = vpack.c.bf16 %v1638, %v1638
          %v1800 = vpack.c.bf16 %v1641, %v1641
          %v1801 = vpack.c.bf16 %v1643, %v1643
          %v1802 = vpack.c.bf16 %v1646, %v1646
          %v1803 = vpack.c.bf16 %v1648, %v1648
          %v1804 = vpack.c.bf16 %v1651, %v1651
          %v1805 = vpack.c.bf16 %v1653, %v1653
          %s1806 = scalar_lea.vmem [#allocation2], 128
          %1807 = vst.msk [vmem:[%s1806] sm:$0xf] %vm1135, %v1790
          %1808 = vst.msk [vmem:[%s1806 + $0x4] sm:$0xf] %vm1135, %v1791
          %1809 = vst.msk [vmem:[%s1806 + $0x8] sm:$0xf] %vm1135, %v1792
          %1810 = vst.msk [vmem:[%s1806 + $0xc] sm:$0xf] %vm1135, %v1793
          %1811 = vst.msk [vmem:[%s1806 + $0x10] sm:$0xf] %vm1135, %v1794
          %1812 = vst.msk [vmem:[%s1806 + $0x14] sm:$0xf] %vm1135, %v1795
          %1813 = vst.msk [vmem:[%s1806 + $0x18] sm:$0xf] %vm1135, %v1796
          %1814 = vst.msk [vmem:[%s1806 + $0x1c] sm:$0xf] %vm1135, %v1797
          %1815 = vst.msk [vmem:[%s1806 + $0x20] sm:$0xf] %vm1135, %v1798
          %1816 = vst.msk [vmem:[%s1806 + $0x24] sm:$0xf] %vm1135, %v1799
          %1817 = vst.msk [vmem:[%s1806 + $0x28] sm:$0xf] %vm1135, %v1800
          %1818 = vst.msk [vmem:[%s1806 + $0x2c] sm:$0xf] %vm1135, %v1801
          %1819 = vst.msk [vmem:[%s1806 + $0x30] sm:$0xf] %vm1135, %v1802
          %1820 = vst.msk [vmem:[%s1806 + $0x34] sm:$0xf] %vm1135, %v1803
          %1821 = vst.msk [vmem:[%s1806 + $0x38] sm:$0xf] %vm1135, %v1804
          %1822 = vst.msk [vmem:[%s1806 + $0x3c] sm:$0xf] %vm1135, %v1805
          %v1823 = vpack.c.bf16 %v1751, %v1751
          %v1824 = vpack.c.bf16 %v1753, %v1753
          %v1825 = vpack.c.bf16 %v1756, %v1756
          %v1826 = vpack.c.bf16 %v1758, %v1758
          %v1827 = vpack.c.bf16 %v1761, %v1761
          %v1828 = vpack.c.bf16 %v1763, %v1763
          %v1829 = vpack.c.bf16 %v1766, %v1766
          %v1830 = vpack.c.bf16 %v1768, %v1768
          %v1831 = vpack.c.bf16 %v1771, %v1771
          %v1832 = vpack.c.bf16 %v1773, %v1773
          %v1833 = vpack.c.bf16 %v1776, %v1776
          %v1834 = vpack.c.bf16 %v1778, %v1778
          %v1835 = vpack.c.bf16 %v1781, %v1781
          %v1836 = vpack.c.bf16 %v1783, %v1783
          %v1837 = vpack.c.bf16 %v1786, %v1786
          %v1838 = vpack.c.bf16 %v1788, %v1788
          %s1839 = scalar_lea.vmem [#allocation3], 128
          %1840 = vst.msk [vmem:[%s1839] sm:$0xf] %vm1135, %v1823
          %1841 = vst.msk [vmem:[%s1839 + $0x4] sm:$0xf] %vm1135, %v1824
          %1842 = vst.msk [vmem:[%s1839 + $0x8] sm:$0xf] %vm1135, %v1825
          %1843 = vst.msk [vmem:[%s1839 + $0xc] sm:$0xf] %vm1135, %v1826
          %1844 = vst.msk [vmem:[%s1839 + $0x10] sm:$0xf] %vm1135, %v1827
          %1845 = vst.msk [vmem:[%s1839 + $0x14] sm:$0xf] %vm1135, %v1828
          %1846 = vst.msk [vmem:[%s1839 + $0x18] sm:$0xf] %vm1135, %v1829
          %1847 = vst.msk [vmem:[%s1839 + $0x1c] sm:$0xf] %vm1135, %v1830
          %1848 = vst.msk [vmem:[%s1839 + $0x20] sm:$0xf] %vm1135, %v1831
          %1849 = vst.msk [vmem:[%s1839 + $0x24] sm:$0xf] %vm1135, %v1832
          %1850 = vst.msk [vmem:[%s1839 + $0x28] sm:$0xf] %vm1135, %v1833
          %1851 = vst.msk [vmem:[%s1839 + $0x2c] sm:$0xf] %vm1135, %v1834
          %1852 = vst.msk [vmem:[%s1839 + $0x30] sm:$0xf] %vm1135, %v1835
          %1853 = vst.msk [vmem:[%s1839 + $0x34] sm:$0xf] %vm1135, %v1836
          %1854 = vst.msk [vmem:[%s1839 + $0x38] sm:$0xf] %vm1135, %v1837
          %1855 = vst.msk [vmem:[%s1839 + $0x3c] sm:$0xf] %vm1135, %v1838
          %v1856 = vld [vmem:[#allocation12] sm:$0xf]
          %v1857 = vld [vmem:[#allocation12 + $0x4] sm:$0xf]
          %v1858 = vld [vmem:[#allocation12 + $0x8] sm:$0xf]
          %v1859 = vld [vmem:[#allocation12 + $0xc] sm:$0xf]
          %v1860 = vld [vmem:[#allocation12 + $0x10] sm:$0xf]
          %v1861 = vld [vmem:[#allocation12 + $0x14] sm:$0xf]
          %v1862 = vld [vmem:[#allocation12 + $0x18] sm:$0xf]
          %v1863 = vld [vmem:[#allocation12 + $0x1c] sm:$0xf]
          %v1864 = vld [vmem:[#allocation12 + $0x20] sm:$0xf]
          %v1865 = vld [vmem:[#allocation12 + $0x24] sm:$0xf]
          %v1866 = vld [vmem:[#allocation12 + $0x28] sm:$0xf]
          %v1867 = vld [vmem:[#allocation12 + $0x2c] sm:$0xf]
          %v1868 = vld [vmem:[#allocation12 + $0x30] sm:$0xf]
          %v1869 = vld [vmem:[#allocation12 + $0x34] sm:$0xf]
          %v1870 = vld [vmem:[#allocation12 + $0x38] sm:$0xf]
          %v1871 = vld [vmem:[#allocation12 + $0x3c] sm:$0xf]
          %v1872 = vld [vmem:[%s6] sm:$0x1]
          %v1874 = vperm.slane %v1872, 0
          %v1891 = vunpack.c.l.b16 %v1856
          %v1892 = vunpack.c.l.b16 %v1857
          %v1893 = vunpack.c.l.b16 %v1858
          %v1894 = vunpack.c.l.b16 %v1859
          %v1895 = vunpack.c.l.b16 %v1860
          %v1896 = vunpack.c.l.b16 %v1861
          %v1897 = vunpack.c.l.b16 %v1862
          %v1898 = vunpack.c.l.b16 %v1863
          %v1899 = vunpack.c.l.b16 %v1864
          %v1900 = vunpack.c.l.b16 %v1865
          %v1901 = vunpack.c.l.b16 %v1866
          %v1902 = vunpack.c.l.b16 %v1867
          %v1903 = vunpack.c.l.b16 %v1868
          %v1904 = vunpack.c.l.b16 %v1869
          %v1905 = vunpack.c.l.b16 %v1870
          %v1906 = vunpack.c.l.b16 %v1871
          %v1907 = vpack.c.b16 %v1892, %v1891
          %v1908 = vpack.c.b16 %v1894, %v1893
          %v1909 = vpack.c.b16 %v1896, %v1895
          %v1910 = vpack.c.b16 %v1898, %v1897
          %v1911 = vpack.c.b16 %v1900, %v1899
          %v1912 = vpack.c.b16 %v1902, %v1901
          %v1913 = vpack.c.b16 %v1904, %v1903
          %v1914 = vpack.c.b16 %v1906, %v1905
          %1915 = vrot.lane.b32.xlu0 %v1907, 32
          %v1916 = vpop.permute.xlu0 %1915
          %1917 = vrot.lane.b32.xlu0 %v1908, 32
          %v1918 = vpop.permute.xlu0 %1917
          %1919 = vrot.lane.b32.xlu0 %v1909, 32
          %v1920 = vpop.permute.xlu0 %1919
          %1921 = vrot.lane.b32.xlu0 %v1910, 32
          %v1922 = vpop.permute.xlu0 %1921
          %1923 = vrot.lane.b32.xlu0 %v1911, 32
          %v1924 = vpop.permute.xlu0 %1923
          %1925 = vrot.lane.b32.xlu0 %v1912, 32
          %v1926 = vpop.permute.xlu0 %1925
          %1927 = vrot.lane.b32.xlu0 %v1913, 32
          %v1928 = vpop.permute.xlu0 %1927
          %1929 = vrot.lane.b32.xlu0 %v1914, 32
          %v1930 = vpop.permute.xlu0 %1929
          %1939 = vrot.lane.b32.xlu0 %v1874, 32
          %v1940 = vpop.permute.xlu0 %1939
          %1942 = vmatpush.bf16.msra.mxu0 %v1930
          %1943 = vmatpush.bf16.msra.mxu0 %v1928
          %1944 = vmatpush.bf16.msra.mxu0 %v1926
          %1945 = vmatpush.bf16.msra.mxu0 %v1924
          %1946 = vmatpush.bf16.msra.mxu0 %v1922
          %1947 = vmatpush.bf16.msra.mxu0 %v1920
          %1948 = vmatpush.bf16.msra.mxu0 %v1918
          %1949 = vmatpush.bf16.msra.mxu0 %v1916
          %1950 = vmatmul.bf16.gmra.mxu0 %v889
          %v1951 = vpop.f32.mrf.mxu0
          %v1952 = vadd.f32 %v1940, %v1951
          %v1953 = vpop.f32.mrf.mxu0
          %v1954 = vadd.f32 %v1940, %v1953
          %1955 = vmatmul.bf16.gmra.mxu0 %v890
          %v1956 = vpop.f32.mrf.mxu0
          %v1957 = vadd.f32 %v1940, %v1956
          %v1958 = vpop.f32.mrf.mxu0
          %v1959 = vadd.f32 %v1940, %v1958
          %1960 = vmatmul.bf16.gmra.mxu0 %v891
          %v1961 = vpop.f32.mrf.mxu0
          %v1962 = vadd.f32 %v1940, %v1961
          %v1963 = vpop.f32.mrf.mxu0
          %v1964 = vadd.f32 %v1940, %v1963
          %1965 = vmatmul.bf16.gmra.mxu0 %v892
          %v1966 = vpop.f32.mrf.mxu0
          %v1967 = vadd.f32 %v1940, %v1966
          %v1968 = vpop.f32.mrf.mxu0
          %v1969 = vadd.f32 %v1940, %v1968
          %1970 = vmatmul.bf16.gmra.mxu0 %v893
          %v1971 = vpop.f32.mrf.mxu0
          %v1972 = vadd.f32 %v1940, %v1971
          %v1973 = vpop.f32.mrf.mxu0
          %v1974 = vadd.f32 %v1940, %v1973
          %1975 = vmatmul.bf16.gmra.mxu0 %v894
          %v1976 = vpop.f32.mrf.mxu0
          %v1977 = vadd.f32 %v1940, %v1976
          %v1978 = vpop.f32.mrf.mxu0
          %v1979 = vadd.f32 %v1940, %v1978
          %1980 = vmatmul.bf16.gmra.mxu0 %v895
          %v1981 = vpop.f32.mrf.mxu0
          %v1982 = vadd.f32 %v1940, %v1981
          %v1983 = vpop.f32.mrf.mxu0
          %v1984 = vadd.f32 %v1940, %v1983
          %1985 = vmatmul.bf16.gmra.mxu0 %v896
          %v1986 = vpop.f32.mrf.mxu0
          %v1987 = vadd.f32 %v1940, %v1986
          %v1988 = vpop.f32.mrf.mxu0
          %v1989 = vadd.f32 %v1940, %v1988
          %1990 = vdwg.mxu0
          %v1991 = vld [vmem:[#allocation13] sm:$0xf]
          %v1992 = vld [vmem:[#allocation13 + $0x4] sm:$0xf]
          %v1993 = vld [vmem:[#allocation13 + $0x8] sm:$0xf]
          %v1994 = vld [vmem:[#allocation13 + $0xc] sm:$0xf]
          %v1995 = vld [vmem:[#allocation13 + $0x10] sm:$0xf]
          %v1996 = vld [vmem:[#allocation13 + $0x14] sm:$0xf]
          %v1997 = vld [vmem:[#allocation13 + $0x18] sm:$0xf]
          %v1998 = vld [vmem:[#allocation13 + $0x1c] sm:$0xf]
          %v1999 = vld [vmem:[#allocation13 + $0x20] sm:$0xf]
          %v2000 = vld [vmem:[#allocation13 + $0x24] sm:$0xf]
          %v2001 = vld [vmem:[#allocation13 + $0x28] sm:$0xf]
          %v2002 = vld [vmem:[#allocation13 + $0x2c] sm:$0xf]
          %v2003 = vld [vmem:[#allocation13 + $0x30] sm:$0xf]
          %v2004 = vld [vmem:[#allocation13 + $0x34] sm:$0xf]
          %v2005 = vld [vmem:[#allocation13 + $0x38] sm:$0xf]
          %v2006 = vld [vmem:[#allocation13 + $0x3c] sm:$0xf]
          %v2007 = vld [vmem:[%s8] sm:$0x1]
          %v2009 = vperm.slane %v2007, 0
          %v2026 = vunpack.c.l.b16 %v1991
          %v2027 = vunpack.c.l.b16 %v1992
          %v2028 = vunpack.c.l.b16 %v1993
          %v2029 = vunpack.c.l.b16 %v1994
          %v2030 = vunpack.c.l.b16 %v1995
          %v2031 = vunpack.c.l.b16 %v1996
          %v2032 = vunpack.c.l.b16 %v1997
          %v2033 = vunpack.c.l.b16 %v1998
          %v2034 = vunpack.c.l.b16 %v1999
          %v2035 = vunpack.c.l.b16 %v2000
          %v2036 = vunpack.c.l.b16 %v2001
          %v2037 = vunpack.c.l.b16 %v2002
          %v2038 = vunpack.c.l.b16 %v2003
          %v2039 = vunpack.c.l.b16 %v2004
          %v2040 = vunpack.c.l.b16 %v2005
          %v2041 = vunpack.c.l.b16 %v2006
          %v2042 = vpack.c.b16 %v2027, %v2026
          %v2043 = vpack.c.b16 %v2029, %v2028
          %v2044 = vpack.c.b16 %v2031, %v2030
          %v2045 = vpack.c.b16 %v2033, %v2032
          %v2046 = vpack.c.b16 %v2035, %v2034
          %v2047 = vpack.c.b16 %v2037, %v2036
          %v2048 = vpack.c.b16 %v2039, %v2038
          %v2049 = vpack.c.b16 %v2041, %v2040
          %2050 = vrot.lane.b32.xlu0 %v2042, 32
          %v2051 = vpop.permute.xlu0 %2050
          %2052 = vrot.lane.b32.xlu0 %v2043, 32
          %v2053 = vpop.permute.xlu0 %2052
          %2054 = vrot.lane.b32.xlu0 %v2044, 32
          %v2055 = vpop.permute.xlu0 %2054
          %2056 = vrot.lane.b32.xlu0 %v2045, 32
          %v2057 = vpop.permute.xlu0 %2056
          %2058 = vrot.lane.b32.xlu0 %v2046, 32
          %v2059 = vpop.permute.xlu0 %2058
          %2060 = vrot.lane.b32.xlu0 %v2047, 32
          %v2061 = vpop.permute.xlu0 %2060
          %2062 = vrot.lane.b32.xlu0 %v2048, 32
          %v2063 = vpop.permute.xlu0 %2062
          %2064 = vrot.lane.b32.xlu0 %v2049, 32
          %v2065 = vpop.permute.xlu0 %2064
          %2074 = vrot.lane.b32.xlu0 %v2009, 32
          %v2075 = vpop.permute.xlu0 %2074
          %2077 = vmatpush.bf16.msra.mxu0 %v2065
          %2078 = vmatpush.bf16.msra.mxu0 %v2063
          %2079 = vmatpush.bf16.msra.mxu0 %v2061
          %2080 = vmatpush.bf16.msra.mxu0 %v2059
          %2081 = vmatpush.bf16.msra.mxu0 %v2057
          %2082 = vmatpush.bf16.msra.mxu0 %v2055
          %2083 = vmatpush.bf16.msra.mxu0 %v2053
          %2084 = vmatpush.bf16.msra.mxu0 %v2051
          %2085 = vmatmul.bf16.gmra.mxu0 %v889
          %v2086 = vpop.f32.mrf.mxu0
          %v2087 = vadd.f32 %v2075, %v2086
          %v2088 = vpop.f32.mrf.mxu0
          %v2089 = vadd.f32 %v2075, %v2088
          %2090 = vmatmul.bf16.gmra.mxu0 %v890
          %v2091 = vpop.f32.mrf.mxu0
          %v2092 = vadd.f32 %v2075, %v2091
          %v2093 = vpop.f32.mrf.mxu0
          %v2094 = vadd.f32 %v2075, %v2093
          %2095 = vmatmul.bf16.gmra.mxu0 %v891
          %v2096 = vpop.f32.mrf.mxu0
          %v2097 = vadd.f32 %v2075, %v2096
          %v2098 = vpop.f32.mrf.mxu0
          %v2099 = vadd.f32 %v2075, %v2098
          %2100 = vmatmul.bf16.gmra.mxu0 %v892
          %v2101 = vpop.f32.mrf.mxu0
          %v2102 = vadd.f32 %v2075, %v2101
          %v2103 = vpop.f32.mrf.mxu0
          %v2104 = vadd.f32 %v2075, %v2103
          %2105 = vmatmul.bf16.gmra.mxu0 %v893
          %v2106 = vpop.f32.mrf.mxu0
          %v2107 = vadd.f32 %v2075, %v2106
          %v2108 = vpop.f32.mrf.mxu0
          %v2109 = vadd.f32 %v2075, %v2108
          %2110 = vmatmul.bf16.gmra.mxu0 %v894
          %v2111 = vpop.f32.mrf.mxu0
          %v2112 = vadd.f32 %v2075, %v2111
          %v2113 = vpop.f32.mrf.mxu0
          %v2114 = vadd.f32 %v2075, %v2113
          %2115 = vmatmul.bf16.gmra.mxu0 %v895
          %v2116 = vpop.f32.mrf.mxu0
          %v2117 = vadd.f32 %v2075, %v2116
          %v2118 = vpop.f32.mrf.mxu0
          %v2119 = vadd.f32 %v2075, %v2118
          %2120 = vmatmul.bf16.gmra.mxu0 %v896
          %v2121 = vpop.f32.mrf.mxu0
          %v2122 = vadd.f32 %v2075, %v2121
          %v2123 = vpop.f32.mrf.mxu0
          %v2124 = vadd.f32 %v2075, %v2123
          %2125 = vdwg.mxu0
          %v2126 = vpack.c.bf16 %v1952, %v1952
          %v2127 = vpack.c.bf16 %v1954, %v1954
          %v2128 = vpack.c.bf16 %v1957, %v1957
          %v2129 = vpack.c.bf16 %v1959, %v1959
          %v2130 = vpack.c.bf16 %v1962, %v1962
          %v2131 = vpack.c.bf16 %v1964, %v1964
          %v2132 = vpack.c.bf16 %v1967, %v1967
          %v2133 = vpack.c.bf16 %v1969, %v1969
          %v2134 = vpack.c.bf16 %v1972, %v1972
          %v2135 = vpack.c.bf16 %v1974, %v1974
          %v2136 = vpack.c.bf16 %v1977, %v1977
          %v2137 = vpack.c.bf16 %v1979, %v1979
          %v2138 = vpack.c.bf16 %v1982, %v1982
          %v2139 = vpack.c.bf16 %v1984, %v1984
          %v2140 = vpack.c.bf16 %v1987, %v1987
          %v2141 = vpack.c.bf16 %v1989, %v1989
          %s2142 = scalar_lea.vmem [#allocation2], 192
          %2143 = vst.msk [vmem:[%s2142] sm:$0xf] %vm1135, %v2126
          %2144 = vst.msk [vmem:[%s2142 + $0x4] sm:$0xf] %vm1135, %v2127
          %2145 = vst.msk [vmem:[%s2142 + $0x8] sm:$0xf] %vm1135, %v2128
          %2146 = vst.msk [vmem:[%s2142 + $0xc] sm:$0xf] %vm1135, %v2129
          %2147 = vst.msk [vmem:[%s2142 + $0x10] sm:$0xf] %vm1135, %v2130
          %2148 = vst.msk [vmem:[%s2142 + $0x14] sm:$0xf] %vm1135, %v2131
          %2149 = vst.msk [vmem:[%s2142 + $0x18] sm:$0xf] %vm1135, %v2132
          %2150 = vst.msk [vmem:[%s2142 + $0x1c] sm:$0xf] %vm1135, %v2133
          %2151 = vst.msk [vmem:[%s2142 + $0x20] sm:$0xf] %vm1135, %v2134
          %2152 = vst.msk [vmem:[%s2142 + $0x24] sm:$0xf] %vm1135, %v2135
          %2153 = vst.msk [vmem:[%s2142 + $0x28] sm:$0xf] %vm1135, %v2136
          %2154 = vst.msk [vmem:[%s2142 + $0x2c] sm:$0xf] %vm1135, %v2137
          %2155 = vst.msk [vmem:[%s2142 + $0x30] sm:$0xf] %vm1135, %v2138
          %2156 = vst.msk [vmem:[%s2142 + $0x34] sm:$0xf] %vm1135, %v2139
          %2157 = vst.msk [vmem:[%s2142 + $0x38] sm:$0xf] %vm1135, %v2140
          %2158 = vst.msk [vmem:[%s2142 + $0x3c] sm:$0xf] %vm1135, %v2141
          %v2159 = vpack.c.bf16 %v2087, %v2087
          %v2160 = vpack.c.bf16 %v2089, %v2089
          %v2161 = vpack.c.bf16 %v2092, %v2092
          %v2162 = vpack.c.bf16 %v2094, %v2094
          %v2163 = vpack.c.bf16 %v2097, %v2097
          %v2164 = vpack.c.bf16 %v2099, %v2099
          %v2165 = vpack.c.bf16 %v2102, %v2102
          %v2166 = vpack.c.bf16 %v2104, %v2104
          %v2167 = vpack.c.bf16 %v2107, %v2107
          %v2168 = vpack.c.bf16 %v2109, %v2109
          %v2169 = vpack.c.bf16 %v2112, %v2112
          %v2170 = vpack.c.bf16 %v2114, %v2114
          %v2171 = vpack.c.bf16 %v2117, %v2117
          %v2172 = vpack.c.bf16 %v2119, %v2119
          %v2173 = vpack.c.bf16 %v2122, %v2122
          %v2174 = vpack.c.bf16 %v2124, %v2124
          %s2175 = scalar_lea.vmem [#allocation3], 192
          %2176 = vst.msk [vmem:[%s2175] sm:$0xf] %vm1135, %v2159
          %2177 = vst.msk [vmem:[%s2175 + $0x4] sm:$0xf] %vm1135, %v2160
          %2178 = vst.msk [vmem:[%s2175 + $0x8] sm:$0xf] %vm1135, %v2161
          %2179 = vst.msk [vmem:[%s2175 + $0xc] sm:$0xf] %vm1135, %v2162
          %2180 = vst.msk [vmem:[%s2175 + $0x10] sm:$0xf] %vm1135, %v2163
          %2181 = vst.msk [vmem:[%s2175 + $0x14] sm:$0xf] %vm1135, %v2164
          %2182 = vst.msk [vmem:[%s2175 + $0x18] sm:$0xf] %vm1135, %v2165
          %2183 = vst.msk [vmem:[%s2175 + $0x1c] sm:$0xf] %vm1135, %v2166
          %2184 = vst.msk [vmem:[%s2175 + $0x20] sm:$0xf] %vm1135, %v2167
          %2185 = vst.msk [vmem:[%s2175 + $0x24] sm:$0xf] %vm1135, %v2168
          %2186 = vst.msk [vmem:[%s2175 + $0x28] sm:$0xf] %vm1135, %v2169
          %2187 = vst.msk [vmem:[%s2175 + $0x2c] sm:$0xf] %vm1135, %v2170
          %2188 = vst.msk [vmem:[%s2175 + $0x30] sm:$0xf] %vm1135, %v2171
          %2189 = vst.msk [vmem:[%s2175 + $0x34] sm:$0xf] %vm1135, %v2172
          %2190 = vst.msk [vmem:[%s2175 + $0x38] sm:$0xf] %vm1135, %v2173
          %2191 = vst.msk [vmem:[%s2175 + $0x3c] sm:$0xf] %vm1135, %v2174
        $region136: #{tpu_custom_call.1} parent=95 // pred_fallthru
          _
        %s2192 = smul.u32 %s47, 64
        %v2193 = vld [vmem:[%s700] sm:$0xff]
        %v2194 = vld [vmem:[%s700 + $0x8] sm:$0xff]
        %v2195 = vld [vmem:[%s700 + $0x10] sm:$0xff]
        %v2196 = vld [vmem:[%s700 + $0x18] sm:$0xff]
        %v2197 = vld [vmem:[%s700 + $0x20] sm:$0xff]
        %v2198 = vld [vmem:[%s700 + $0x28] sm:$0xff]
        %v2199 = vld [vmem:[%s700 + $0x30] sm:$0xff]
        %v2200 = vld [vmem:[%s700 + $0x38] sm:$0xff]
        %s2201 = sshra.s32 %s2192, 3
        %s2202 = sand.u32 %s2192, 7
        %s2203 = smul.addr %s2201, 4
        %s2204 = scalar_lea.vmem %s710, %s2203 [#allocation7]
        %v2205 = vld [vmem:[%s2204] sm:$0xf]
        %v2206 = vld [vmem:[%s2204 + $0x4] sm:$0xf]
        %v2207 = vld [vmem:[%s2204 + $0x8] sm:$0xf]
        %v2208 = vld [vmem:[%s2204 + $0xc] sm:$0xf]
        %v2209 = vld [vmem:[%s2204 + $0x10] sm:$0xf]
        %v2210 = vld [vmem:[%s2204 + $0x14] sm:$0xf]
        %v2211 = vld [vmem:[%s2204 + $0x18] sm:$0xf]
        %v2212 = vld [vmem:[%s2204 + $0x1c] sm:$0xf]
        %v2213 = vld [vmem:[%s719] sm:$0x1]
        %v2214 = vld [vmem:[#allocation10] sm:$0xf]
        %v2215 = vld [vmem:[#allocation10 + $0x4] sm:$0xf]
        %v2216 = vld [vmem:[#allocation10 + $0x8] sm:$0xf]
        %v2217 = vld [vmem:[#allocation10 + $0xc] sm:$0xf]
        %v2218 = vld [vmem:[#allocation10 + $0x10] sm:$0xf]
        %v2219 = vld [vmem:[#allocation10 + $0x14] sm:$0xf]
        %v2220 = vld [vmem:[#allocation10 + $0x18] sm:$0xf]
        %v2221 = vld [vmem:[#allocation10 + $0x1c] sm:$0xf]
        %v2222 = vld [vmem:[#allocation10 + $0x20] sm:$0xf]
        %v2223 = vld [vmem:[#allocation10 + $0x24] sm:$0xf]
        %v2224 = vld [vmem:[#allocation10 + $0x28] sm:$0xf]
        %v2225 = vld [vmem:[#allocation10 + $0x2c] sm:$0xf]
        %v2226 = vld [vmem:[#allocation10 + $0x30] sm:$0xf]
        %v2227 = vld [vmem:[#allocation10 + $0x34] sm:$0xf]
        %v2228 = vld [vmem:[#allocation10 + $0x38] sm:$0xf]
        %v2229 = vld [vmem:[#allocation10 + $0x3c] sm:$0xf]
        %v2230 = vld [vmem:[%s4] sm:$0x1]
        %v2232 = vperm.slane %v2230, 0
        %v2242 = vunpack.c.l.b16 %v2205
        %v2243 = vunpack.c.l.b16 %v2206
        %v2244 = vunpack.c.l.b16 %v2207
        %v2245 = vunpack.c.l.b16 %v2208
        %v2246 = vunpack.c.l.b16 %v2209
        %v2247 = vunpack.c.l.b16 %v2210
        %v2248 = vunpack.c.l.b16 %v2211
        %v2249 = vunpack.c.l.b16 %v2212
        %v2250 = vpack.c.b16 %v2243, %v2242
        %v2251 = vpack.c.b16 %v2245, %v2244
        %v2252 = vpack.c.b16 %v2247, %v2246
        %v2253 = vpack.c.b16 %v2249, %v2248
        %v2274 = vunpack.c.l.b16 %v2214
        %v2275 = vunpack.c.l.b16 %v2215
        %v2276 = vunpack.c.l.b16 %v2216
        %v2277 = vunpack.c.l.b16 %v2217
        %v2278 = vunpack.c.l.b16 %v2218
        %v2279 = vunpack.c.l.b16 %v2219
        %v2280 = vunpack.c.l.b16 %v2220
        %v2281 = vunpack.c.l.b16 %v2221
        %v2282 = vunpack.c.l.b16 %v2222
        %v2283 = vunpack.c.l.b16 %v2223
        %v2284 = vunpack.c.l.b16 %v2224
        %v2285 = vunpack.c.l.b16 %v2225
        %v2286 = vunpack.c.l.b16 %v2226
        %v2287 = vunpack.c.l.b16 %v2227
        %v2288 = vunpack.c.l.b16 %v2228
        %v2289 = vunpack.c.l.b16 %v2229
        %v2290 = vpack.c.b16 %v2275, %v2274
        %v2291 = vpack.c.b16 %v2277, %v2276
        %v2292 = vpack.c.b16 %v2279, %v2278
        %v2293 = vpack.c.b16 %v2281, %v2280
        %v2294 = vpack.c.b16 %v2283, %v2282
        %v2295 = vpack.c.b16 %v2285, %v2284
        %v2296 = vpack.c.b16 %v2287, %v2286
        %v2297 = vpack.c.b16 %v2289, %v2288
        %2306 = vmatpush.bf16.msra.mxu0 %v2297
        %2307 = vmatpush.bf16.msra.mxu0 %v2296
        %2308 = vmatpush.bf16.msra.mxu0 %v2295
        %2309 = vmatpush.bf16.msra.mxu0 %v2294
        %2310 = vmatpush.bf16.msra.mxu0 %v2293
        %2311 = vmatpush.bf16.msra.mxu0 %v2292
        %2312 = vmatpush.bf16.msra.mxu0 %v2291
        %2313 = vmatpush.bf16.msra.mxu0 %v2290
        %2314 = vmatmul.bf16.gmra.mxu0 %v2250
        %v2315 = vpop.f32.mrf.mxu0
        %v2316 = vadd.f32 %v2232, %v2315
        %v2317 = vpop.f32.mrf.mxu0
        %v2318 = vadd.f32 %v2232, %v2317
        %2319 = vmatmul.bf16.gmra.mxu0 %v2251
        %v2320 = vpop.f32.mrf.mxu0
        %v2321 = vadd.f32 %v2232, %v2320
        %v2322 = vpop.f32.mrf.mxu0
        %v2323 = vadd.f32 %v2232, %v2322
        %2324 = vmatmul.bf16.gmra.mxu0 %v2252
        %v2325 = vpop.f32.mrf.mxu0
        %v2326 = vadd.f32 %v2232, %v2325
        %v2327 = vpop.f32.mrf.mxu0
        %v2328 = vadd.f32 %v2232, %v2327
        %2329 = vmatmul.bf16.gmra.mxu0 %v2253
        %v2330 = vpop.f32.mrf.mxu0
        %v2331 = vadd.f32 %v2232, %v2330
        %v2332 = vpop.f32.mrf.mxu0
        %v2333 = vadd.f32 %v2232, %v2332
        %2334 = vdwg.mxu0
        %v2335 = vpack.c.bf16 %v2318, %v2316
        %v2336 = vpack.c.bf16 %v2323, %v2321
        %v2337 = vpack.c.bf16 %v2328, %v2326
        %v2338 = vpack.c.bf16 %v2333, %v2331
        %v2339 = vld [vmem:[#allocation2] sm:$0xf]
        %v2340 = vld [vmem:[#allocation2 + $0x4] sm:$0xf]
        %v2341 = vld [vmem:[#allocation2 + $0x8] sm:$0xf]
        %v2342 = vld [vmem:[#allocation2 + $0xc] sm:$0xf]
        %v2343 = vld [vmem:[#allocation2 + $0x10] sm:$0xf]
        %v2344 = vld [vmem:[#allocation2 + $0x14] sm:$0xf]
        %v2345 = vld [vmem:[#allocation2 + $0x18] sm:$0xf]
        %v2346 = vld [vmem:[#allocation2 + $0x1c] sm:$0xf]
        %v2347 = vld [vmem:[#allocation2 + $0x20] sm:$0xf]
        %v2348 = vld [vmem:[#allocation2 + $0x24] sm:$0xf]
        %v2349 = vld [vmem:[#allocation2 + $0x28] sm:$0xf]
        %v2350 = vld [vmem:[#allocation2 + $0x2c] sm:$0xf]
        %v2351 = vld [vmem:[#allocation2 + $0x30] sm:$0xf]
        %v2352 = vld [vmem:[#allocation2 + $0x34] sm:$0xf]
        %v2353 = vld [vmem:[#allocation2 + $0x38] sm:$0xf]
        %v2354 = vld [vmem:[#allocation2 + $0x3c] sm:$0xf]
        %v2356 = vperm.slane %v2213, 0
        %v2374 = vunpack.c.l.b16 %v2339
        %v2375 = vunpack.c.l.b16 %v2340
        %v2376 = vunpack.c.l.b16 %v2341
        %v2377 = vunpack.c.l.b16 %v2342
        %v2378 = vunpack.c.l.b16 %v2343
        %v2379 = vunpack.c.l.b16 %v2344
        %v2380 = vunpack.c.l.b16 %v2345
        %v2381 = vunpack.c.l.b16 %v2346
        %v2382 = vunpack.c.l.b16 %v2347
        %v2383 = vunpack.c.l.b16 %v2348
        %v2384 = vunpack.c.l.b16 %v2349
        %v2385 = vunpack.c.l.b16 %v2350
        %v2386 = vunpack.c.l.b16 %v2351
        %v2387 = vunpack.c.l.b16 %v2352
        %v2388 = vunpack.c.l.b16 %v2353
        %v2389 = vunpack.c.l.b16 %v2354
        %v2390 = vpack.c.b16 %v2375, %v2374
        %v2391 = vpack.c.b16 %v2377, %v2376
        %v2392 = vpack.c.b16 %v2379, %v2378
        %v2393 = vpack.c.b16 %v2381, %v2380
        %v2394 = vpack.c.b16 %v2383, %v2382
        %v2395 = vpack.c.b16 %v2385, %v2384
        %v2396 = vpack.c.b16 %v2387, %v2386
        %v2397 = vpack.c.b16 %v2389, %v2388
        %vm2398 = vcmask 261120
        %v2400 = vsel %vm2398, %v2335, 0
        %v2403 = vsel %vm2398, %v2336, 0
        %v2406 = vsel %vm2398, %v2337, 0
        %v2409 = vsel %vm2398, %v2338, 0
        %v2412 = vsel %vm2398, %v2390, 0
        %v2415 = vsel %vm2398, %v2391, 0
        %v2418 = vsel %vm2398, %v2392, 0
        %v2421 = vsel %vm2398, %v2393, 0
        %v2424 = vsel %vm2398, %v2394, 0
        %v2427 = vsel %vm2398, %v2395, 0
        %v2430 = vsel %vm2398, %v2396, 0
        %v2433 = vsel %vm2398, %v2397, 0
        %2435 = vmatpush.bf16.xpose.msra.mxu0 %v2433
        %2436 = vmatpush.bf16.xpose.msra.mxu0 %v2430
        %2437 = vmatpush.bf16.xpose.msra.mxu0 %v2427
        %2438 = vmatpush.bf16.xpose.msra.mxu0 %v2424
        %2439 = vmatpush.bf16.xpose.msra.mxu0 %v2421
        %2440 = vmatpush.bf16.xpose.msra.mxu0 %v2418
        %2441 = vmatpush.bf16.xpose.msra.mxu0 %v2415
        %2442 = vmatpush.bf16.xpose.msra.mxu0 %v2412
        %2443 = vmatmul.bf16.gmra.mxu0 %v2400
        %v2444 = vpop.f32.mrf.mxu0
        %v2445 = vadd.f32 %v2356, %v2444
        %v2446 = vpop.f32.mrf.mxu0
        %v2447 = vadd.f32 %v2356, %v2446
        %2448 = vmatmul.bf16.gmra.mxu0 %v2403
        %v2449 = vpop.f32.mrf.mxu0
        %v2450 = vadd.f32 %v2356, %v2449
        %v2451 = vpop.f32.mrf.mxu0
        %v2452 = vadd.f32 %v2356, %v2451
        %2453 = vmatmul.bf16.gmra.mxu0 %v2406
        %v2454 = vpop.f32.mrf.mxu0
        %v2455 = vadd.f32 %v2356, %v2454
        %v2456 = vpop.f32.mrf.mxu0
        %v2457 = vadd.f32 %v2356, %v2456
        %2458 = vmatmul.bf16.gmra.mxu0 %v2409
        %v2459 = vpop.f32.mrf.mxu0
        %v2460 = vadd.f32 %v2356, %v2459
        %v2461 = vpop.f32.mrf.mxu0
        %v2462 = vadd.f32 %v2356, %v2461
        %2463 = vdwg.mxu0
        %2464 = vmax.xlane.f32.xlu0 %v2445
        %v2465 = vpop.xlane.xlu0 %2464
        %2466 = vmax.xlane.f32.xlu0 %v2447
        %v2467 = vpop.xlane.xlu0 %2466
        %2468 = vmax.xlane.f32.xlu0 %v2450
        %v2469 = vpop.xlane.xlu0 %2468
        %2470 = vmax.xlane.f32.xlu0 %v2452
        %v2471 = vpop.xlane.xlu0 %2470
        %2472 = vmax.xlane.f32.xlu0 %v2455
        %v2473 = vpop.xlane.xlu0 %2472
        %2474 = vmax.xlane.f32.xlu0 %v2457
        %v2475 = vpop.xlane.xlu0 %2474
        %2476 = vmax.xlane.f32.xlu0 %v2460
        %v2477 = vpop.xlane.xlu0 %2476
        %2478 = vmax.xlane.f32.xlu0 %v2462
        %v2479 = vpop.xlane.xlu0 %2478
        %v2480 = vsub.f32 %v2445, %v2465
        %v2481 = vsub.f32 %v2447, %v2467
        %v2482 = vsub.f32 %v2450, %v2469
        %v2483 = vsub.f32 %v2452, %v2471
        %v2484 = vsub.f32 %v2455, %v2473
        %v2485 = vsub.f32 %v2457, %v2475
        %v2486 = vsub.f32 %v2460, %v2477
        %v2487 = vsub.f32 %v2462, %v2479
        %v2488 = vmul.f32 %v2480, 1.442695
        %v2489 = vpow.pop %v2488
        %v2490 = vmul.f32 %v2481, 1.442695
        %v2491 = vpow.pop %v2490
        %v2492 = vmul.f32 %v2482, 1.442695
        %v2493 = vpow.pop %v2492
        %v2494 = vmul.f32 %v2483, 1.442695
        %v2495 = vpow.pop %v2494
        %v2496 = vmul.f32 %v2484, 1.442695
        %v2497 = vpow.pop %v2496
        %v2498 = vmul.f32 %v2485, 1.442695
        %v2499 = vpow.pop %v2498
        %v2500 = vmul.f32 %v2486, 1.442695
        %v2501 = vpow.pop %v2500
        %v2502 = vmul.f32 %v2487, 1.442695
        %v2503 = vpow.pop %v2502
        %2504 = vadd.xlane.f32.xlu0 %v2489
        %v2505 = vpop.xlane.xlu0 %2504
        %2506 = vadd.xlane.f32.xlu0 %v2491
        %v2507 = vpop.xlane.xlu0 %2506
        %2508 = vadd.xlane.f32.xlu0 %v2493
        %v2509 = vpop.xlane.xlu0 %2508
        %2510 = vadd.xlane.f32.xlu0 %v2495
        %v2511 = vpop.xlane.xlu0 %2510
        %2512 = vadd.xlane.f32.xlu0 %v2497
        %v2513 = vpop.xlane.xlu0 %2512
        %2514 = vadd.xlane.f32.xlu0 %v2499
        %v2515 = vpop.xlane.xlu0 %2514
        %2516 = vadd.xlane.f32.xlu0 %v2501
        %v2517 = vpop.xlane.xlu0 %2516
        %2518 = vadd.xlane.f32.xlu0 %v2503
        %v2519 = vpop.xlane.xlu0 %2518
        %v2520 = vrcp.pop %v2505
        %v2521 = vrcp.pop %v2507
        %v2522 = vrcp.pop %v2509
        %v2523 = vrcp.pop %v2511
        %v2524 = vrcp.pop %v2513
        %v2525 = vrcp.pop %v2515
        %v2526 = vrcp.pop %v2517
        %v2527 = vrcp.pop %v2519
        %v2528 = vmul.f32 %v2489, %v2520
        %v2529 = vmul.f32 %v2491, %v2521
        %v2530 = vmul.f32 %v2493, %v2522
        %v2531 = vmul.f32 %v2495, %v2523
        %v2532 = vmul.f32 %v2497, %v2524
        %v2533 = vmul.f32 %v2499, %v2525
        %v2534 = vmul.f32 %v2501, %v2526
        %v2535 = vmul.f32 %v2503, %v2527
        %v2536 = vpack.c.bf16 %v2529, %v2528
        %v2537 = vpack.c.bf16 %v2531, %v2530
        %v2538 = vpack.c.bf16 %v2533, %v2532
        %v2539 = vpack.c.bf16 %v2535, %v2534
        %v2540 = vld [vmem:[#allocation3] sm:$0xf]
        %v2541 = vld [vmem:[#allocation3 + $0x4] sm:$0xf]
        %v2542 = vld [vmem:[#allocation3 + $0x8] sm:$0xf]
        %v2543 = vld [vmem:[#allocation3 + $0xc] sm:$0xf]
        %v2544 = vld [vmem:[#allocation3 + $0x10] sm:$0xf]
        %v2545 = vld [vmem:[#allocation3 + $0x14] sm:$0xf]
        %v2546 = vld [vmem:[#allocation3 + $0x18] sm:$0xf]
        %v2547 = vld [vmem:[#allocation3 + $0x1c] sm:$0xf]
        %v2548 = vld [vmem:[#allocation3 + $0x20] sm:$0xf]
        %v2549 = vld [vmem:[#allocation3 + $0x24] sm:$0xf]
        %v2550 = vld [vmem:[#allocation3 + $0x28] sm:$0xf]
        %v2551 = vld [vmem:[#allocation3 + $0x2c] sm:$0xf]
        %v2552 = vld [vmem:[#allocation3 + $0x30] sm:$0xf]
        %v2553 = vld [vmem:[#allocation3 + $0x34] sm:$0xf]
        %v2554 = vld [vmem:[#allocation3 + $0x38] sm:$0xf]
        %v2555 = vld [vmem:[#allocation3 + $0x3c] sm:$0xf]
        %v2572 = vunpack.c.l.b16 %v2540
        %v2573 = vunpack.c.l.b16 %v2541
        %v2574 = vunpack.c.l.b16 %v2542
        %v2575 = vunpack.c.l.b16 %v2543
        %v2576 = vunpack.c.l.b16 %v2544
        %v2577 = vunpack.c.l.b16 %v2545
        %v2578 = vunpack.c.l.b16 %v2546
        %v2579 = vunpack.c.l.b16 %v2547
        %v2580 = vunpack.c.l.b16 %v2548
        %v2581 = vunpack.c.l.b16 %v2549
        %v2582 = vunpack.c.l.b16 %v2550
        %v2583 = vunpack.c.l.b16 %v2551
        %v2584 = vunpack.c.l.b16 %v2552
        %v2585 = vunpack.c.l.b16 %v2553
        %v2586 = vunpack.c.l.b16 %v2554
        %v2587 = vunpack.c.l.b16 %v2555
        %v2588 = vpack.c.b16 %v2573, %v2572
        %v2589 = vpack.c.b16 %v2575, %v2574
        %v2590 = vpack.c.b16 %v2577, %v2576
        %v2591 = vpack.c.b16 %v2579, %v2578
        %v2592 = vpack.c.b16 %v2581, %v2580
        %v2593 = vpack.c.b16 %v2583, %v2582
        %v2594 = vpack.c.b16 %v2585, %v2584
        %v2595 = vpack.c.b16 %v2587, %v2586
        %2604 = vmatpush.bf16.msra.mxu0 %v2595
        %2605 = vmatpush.bf16.msra.mxu0 %v2594
        %2606 = vmatpush.bf16.msra.mxu0 %v2593
        %2607 = vmatpush.bf16.msra.mxu0 %v2592
        %2608 = vmatpush.bf16.msra.mxu0 %v2591
        %2609 = vmatpush.bf16.msra.mxu0 %v2590
        %2610 = vmatpush.bf16.msra.mxu0 %v2589
        %2611 = vmatpush.bf16.msra.mxu0 %v2588
        %2612 = vmatmul.bf16.gmra.mxu0 %v2536
        %v2613 = vpop.f32.mrf.mxu0
        %v2614 = vadd.f32 0.0, %v2613
        %v2615 = vpop.f32.mrf.mxu0
        %v2616 = vadd.f32 0.0, %v2615
        %2617 = vmatmul.bf16.gmra.mxu0 %v2537
        %v2618 = vpop.f32.mrf.mxu0
        %v2619 = vadd.f32 0.0, %v2618
        %v2620 = vpop.f32.mrf.mxu0
        %v2621 = vadd.f32 0.0, %v2620
        %2622 = vmatmul.bf16.gmra.mxu0 %v2538
        %v2623 = vpop.f32.mrf.mxu0
        %v2624 = vadd.f32 0.0, %v2623
        %v2625 = vpop.f32.mrf.mxu0
        %v2626 = vadd.f32 0.0, %v2625
        %2627 = vmatmul.bf16.gmra.mxu0 %v2539
        %v2628 = vpop.f32.mrf.mxu0
        %v2629 = vadd.f32 0.0, %v2628
        %v2630 = vpop.f32.mrf.mxu0
        %v2631 = vadd.f32 0.0, %v2630
        %2632 = vdwg.mxu0
        %v2633 = vpack.c.bf16 %v2616, %v2614
        %v2634 = vpack.c.bf16 %v2621, %v2619
        %v2635 = vpack.c.bf16 %v2626, %v2624
        %v2636 = vpack.c.bf16 %v2631, %v2629
        %v2637 = vld [vmem:[#allocation15] sm:$0xf]
        %v2638 = vld [vmem:[#allocation15 + $0x4] sm:$0xf]
        %v2639 = vld [vmem:[#allocation15 + $0x8] sm:$0xf]
        %v2640 = vld [vmem:[#allocation15 + $0xc] sm:$0xf]
        %2641 = vrot.lane.b32.xlu0 %v2290, 96
        %v2642 = vpop.permute.xlu0 %2641
        %2643 = vrot.lane.b32.xlu0 %v2291, 96
        %v2644 = vpop.permute.xlu0 %2643
        %2645 = vrot.lane.b32.xlu0 %v2292, 96
        %v2646 = vpop.permute.xlu0 %2645
        %2647 = vrot.lane.b32.xlu0 %v2293, 96
        %v2648 = vpop.permute.xlu0 %2647
        %2649 = vrot.lane.b32.xlu0 %v2294, 96
        %v2650 = vpop.permute.xlu0 %2649
        %2651 = vrot.lane.b32.xlu0 %v2295, 96
        %v2652 = vpop.permute.xlu0 %2651
        %2653 = vrot.lane.b32.xlu0 %v2296, 96
        %v2654 = vpop.permute.xlu0 %2653
        %2655 = vrot.lane.b32.xlu0 %v2297, 96
        %v2656 = vpop.permute.xlu0 %2655
        %2665 = vrot.lane.b32.xlu0 %v2232, 96
        %v2666 = vpop.permute.xlu0 %2665
        %2668 = vmatpush.bf16.msra.mxu0 %v2656
        %2669 = vmatpush.bf16.msra.mxu0 %v2654
        %2670 = vmatpush.bf16.msra.mxu0 %v2652
        %2671 = vmatpush.bf16.msra.mxu0 %v2650
        %2672 = vmatpush.bf16.msra.mxu0 %v2648
        %2673 = vmatpush.bf16.msra.mxu0 %v2646
        %2674 = vmatpush.bf16.msra.mxu0 %v2644
        %2675 = vmatpush.bf16.msra.mxu0 %v2642
        %2676 = vmatmul.bf16.gmra.mxu0 %v2250
        %v2677 = vpop.f32.mrf.mxu0
        %v2678 = vadd.f32 %v2666, %v2677
        %v2679 = vpop.f32.mrf.mxu0
        %v2680 = vadd.f32 %v2666, %v2679
        %2681 = vmatmul.bf16.gmra.mxu0 %v2251
        %v2682 = vpop.f32.mrf.mxu0
        %v2683 = vadd.f32 %v2666, %v2682
        %v2684 = vpop.f32.mrf.mxu0
        %v2685 = vadd.f32 %v2666, %v2684
        %2686 = vmatmul.bf16.gmra.mxu0 %v2252
        %v2687 = vpop.f32.mrf.mxu0
        %v2688 = vadd.f32 %v2666, %v2687
        %v2689 = vpop.f32.mrf.mxu0
        %v2690 = vadd.f32 %v2666, %v2689
        %2691 = vmatmul.bf16.gmra.mxu0 %v2253
        %v2692 = vpop.f32.mrf.mxu0
        %v2693 = vadd.f32 %v2666, %v2692
        %v2694 = vpop.f32.mrf.mxu0
        %v2695 = vadd.f32 %v2666, %v2694
        %2696 = vdwg.mxu0
        %v2697 = vpack.c.bf16 %v2680, %v2678
        %v2698 = vpack.c.bf16 %v2685, %v2683
        %v2699 = vpack.c.bf16 %v2690, %v2688
        %v2700 = vpack.c.bf16 %v2695, %v2693
        %s2701 = scalar_lea.vmem [#allocation2], 64
        %v2702 = vld [vmem:[%s2701] sm:$0xf]
        %v2703 = vld [vmem:[%s2701 + $0x4] sm:$0xf]
        %v2704 = vld [vmem:[%s2701 + $0x8] sm:$0xf]
        %v2705 = vld [vmem:[%s2701 + $0xc] sm:$0xf]
        %v2706 = vld [vmem:[%s2701 + $0x10] sm:$0xf]
        %v2707 = vld [vmem:[%s2701 + $0x14] sm:$0xf]
        %v2708 = vld [vmem:[%s2701 + $0x18] sm:$0xf]
        %v2709 = vld [vmem:[%s2701 + $0x1c] sm:$0xf]
        %v2710 = vld [vmem:[%s2701 + $0x20] sm:$0xf]
        %v2711 = vld [vmem:[%s2701 + $0x24] sm:$0xf]
        %v2712 = vld [vmem:[%s2701 + $0x28] sm:$0xf]
        %v2713 = vld [vmem:[%s2701 + $0x2c] sm:$0xf]
        %v2714 = vld [vmem:[%s2701 + $0x30] sm:$0xf]
        %v2715 = vld [vmem:[%s2701 + $0x34] sm:$0xf]
        %v2716 = vld [vmem:[%s2701 + $0x38] sm:$0xf]
        %v2717 = vld [vmem:[%s2701 + $0x3c] sm:$0xf]
        %v2734 = vunpack.c.l.b16 %v2702
        %v2735 = vunpack.c.l.b16 %v2703
        %v2736 = vunpack.c.l.b16 %v2704
        %v2737 = vunpack.c.l.b16 %v2705
        %v2738 = vunpack.c.l.b16 %v2706
        %v2739 = vunpack.c.l.b16 %v2707
        %v2740 = vunpack.c.l.b16 %v2708
        %v2741 = vunpack.c.l.b16 %v2709
        %v2742 = vunpack.c.l.b16 %v2710
        %v2743 = vunpack.c.l.b16 %v2711
        %v2744 = vunpack.c.l.b16 %v2712
        %v2745 = vunpack.c.l.b16 %v2713
        %v2746 = vunpack.c.l.b16 %v2714
        %v2747 = vunpack.c.l.b16 %v2715
        %v2748 = vunpack.c.l.b16 %v2716
        %v2749 = vunpack.c.l.b16 %v2717
        %v2750 = vpack.c.b16 %v2735, %v2734
        %v2751 = vpack.c.b16 %v2737, %v2736
        %v2752 = vpack.c.b16 %v2739, %v2738
        %v2753 = vpack.c.b16 %v2741, %v2740
        %v2754 = vpack.c.b16 %v2743, %v2742
        %v2755 = vpack.c.b16 %v2745, %v2744
        %v2756 = vpack.c.b16 %v2747, %v2746
        %v2757 = vpack.c.b16 %v2749, %v2748
        %v2759 = vsel %vm2398, %v2697, 0
        %v2762 = vsel %vm2398, %v2698, 0
        %v2765 = vsel %vm2398, %v2699, 0
        %v2768 = vsel %vm2398, %v2700, 0
        %v2771 = vsel %vm2398, %v2750, 0
        %v2774 = vsel %vm2398, %v2751, 0
        %v2777 = vsel %vm2398, %v2752, 0
        %v2780 = vsel %vm2398, %v2753, 0
        %v2783 = vsel %vm2398, %v2754, 0
        %v2786 = vsel %vm2398, %v2755, 0
        %v2789 = vsel %vm2398, %v2756, 0
        %v2792 = vsel %vm2398, %v2757, 0
        %2794 = vmatpush.bf16.xpose.msra.mxu0 %v2792
        %2795 = vmatpush.bf16.xpose.msra.mxu0 %v2789
        %2796 = vmatpush.bf16.xpose.msra.mxu0 %v2786
        %2797 = vmatpush.bf16.xpose.msra.mxu0 %v2783
        %2798 = vmatpush.bf16.xpose.msra.mxu0 %v2780
        %2799 = vmatpush.bf16.xpose.msra.mxu0 %v2777
        %2800 = vmatpush.bf16.xpose.msra.mxu0 %v2774
        %2801 = vmatpush.bf16.xpose.msra.mxu0 %v2771
        %2802 = vmatmul.bf16.gmra.mxu0 %v2759
        %v2803 = vpop.f32.mrf.mxu0
        %v2804 = vadd.f32 %v2356, %v2803
        %v2805 = vpop.f32.mrf.mxu0
        %v2806 = vadd.f32 %v2356, %v2805
        %2807 = vmatmul.bf16.gmra.mxu0 %v2762
        %v2808 = vpop.f32.mrf.mxu0
        %v2809 = vadd.f32 %v2356, %v2808
        %v2810 = vpop.f32.mrf.mxu0
        %v2811 = vadd.f32 %v2356, %v2810
        %2812 = vmatmul.bf16.gmra.mxu0 %v2765
        %v2813 = vpop.f32.mrf.mxu0
        %v2814 = vadd.f32 %v2356, %v2813
        %v2815 = vpop.f32.mrf.mxu0
        %v2816 = vadd.f32 %v2356, %v2815
        %2817 = vmatmul.bf16.gmra.mxu0 %v2768
        %v2818 = vpop.f32.mrf.mxu0
        %v2819 = vadd.f32 %v2356, %v2818
        %v2820 = vpop.f32.mrf.mxu0
        %v2821 = vadd.f32 %v2356, %v2820
        %2822 = vdwg.mxu0
        %2823 = vmax.xlane.f32.xlu0 %v2804
        %v2824 = vpop.xlane.xlu0 %2823
        %2825 = vmax.xlane.f32.xlu0 %v2806
        %v2826 = vpop.xlane.xlu0 %2825
        %2827 = vmax.xlane.f32.xlu0 %v2809
        %v2828 = vpop.xlane.xlu0 %2827
        %2829 = vmax.xlane.f32.xlu0 %v2811
        %v2830 = vpop.xlane.xlu0 %2829
        %2831 = vmax.xlane.f32.xlu0 %v2814
        %v2832 = vpop.xlane.xlu0 %2831
        %2833 = vmax.xlane.f32.xlu0 %v2816
        %v2834 = vpop.xlane.xlu0 %2833
        %2835 = vmax.xlane.f32.xlu0 %v2819
        %v2836 = vpop.xlane.xlu0 %2835
        %2837 = vmax.xlane.f32.xlu0 %v2821
        %v2838 = vpop.xlane.xlu0 %2837
        %v2839 = vsub.f32 %v2804, %v2824
        %v2840 = vsub.f32 %v2806, %v2826
        %v2841 = vsub.f32 %v2809, %v2828
        %v2842 = vsub.f32 %v2811, %v2830
        %v2843 = vsub.f32 %v2814, %v2832
        %v2844 = vsub.f32 %v2816, %v2834
        %v2845 = vsub.f32 %v2819, %v2836
        %v2846 = vsub.f32 %v2821, %v2838
        %v2847 = vmul.f32 %v2839, 1.442695
        %v2848 = vpow.pop %v2847
        %v2849 = vmul.f32 %v2840, 1.442695
        %v2850 = vpow.pop %v2849
        %v2851 = vmul.f32 %v2841, 1.442695
        %v2852 = vpow.pop %v2851
        %v2853 = vmul.f32 %v2842, 1.442695
        %v2854 = vpow.pop %v2853
        %v2855 = vmul.f32 %v2843, 1.442695
        %v2856 = vpow.pop %v2855
        %v2857 = vmul.f32 %v2844, 1.442695
        %v2858 = vpow.pop %v2857
        %v2859 = vmul.f32 %v2845, 1.442695
        %v2860 = vpow.pop %v2859
        %v2861 = vmul.f32 %v2846, 1.442695
        %v2862 = vpow.pop %v2861
        %2863 = vadd.xlane.f32.xlu0 %v2848
        %v2864 = vpop.xlane.xlu0 %2863
        %2865 = vadd.xlane.f32.xlu0 %v2850
        %v2866 = vpop.xlane.xlu0 %2865
        %2867 = vadd.xlane.f32.xlu0 %v2852
        %v2868 = vpop.xlane.xlu0 %2867
        %2869 = vadd.xlane.f32.xlu0 %v2854
        %v2870 = vpop.xlane.xlu0 %2869
        %2871 = vadd.xlane.f32.xlu0 %v2856
        %v2872 = vpop.xlane.xlu0 %2871
        %2873 = vadd.xlane.f32.xlu0 %v2858
        %v2874 = vpop.xlane.xlu0 %2873
        %2875 = vadd.xlane.f32.xlu0 %v2860
        %v2876 = vpop.xlane.xlu0 %2875
        %2877 = vadd.xlane.f32.xlu0 %v2862
        %v2878 = vpop.xlane.xlu0 %2877
        %v2879 = vrcp.pop %v2864
        %v2880 = vrcp.pop %v2866
        %v2881 = vrcp.pop %v2868
        %v2882 = vrcp.pop %v2870
        %v2883 = vrcp.pop %v2872
        %v2884 = vrcp.pop %v2874
        %v2885 = vrcp.pop %v2876
        %v2886 = vrcp.pop %v2878
        %v2887 = vmul.f32 %v2848, %v2879
        %v2888 = vmul.f32 %v2850, %v2880
        %v2889 = vmul.f32 %v2852, %v2881
        %v2890 = vmul.f32 %v2854, %v2882
        %v2891 = vmul.f32 %v2856, %v2883
        %v2892 = vmul.f32 %v2858, %v2884
        %v2893 = vmul.f32 %v2860, %v2885
        %v2894 = vmul.f32 %v2862, %v2886
        %v2895 = vpack.c.bf16 %v2888, %v2887
        %v2896 = vpack.c.bf16 %v2890, %v2889
        %v2897 = vpack.c.bf16 %v2892, %v2891
        %v2898 = vpack.c.bf16 %v2894, %v2893
        %s2899 = scalar_lea.vmem [#allocation3], 64
        %v2900 = vld [vmem:[%s2899] sm:$0xf]
        %v2901 = vld [vmem:[%s2899 + $0x4] sm:$0xf]
        %v2902 = vld [vmem:[%s2899 + $0x8] sm:$0xf]
        %v2903 = vld [vmem:[%s2899 + $0xc] sm:$0xf]
        %v2904 = vld [vmem:[%s2899 + $0x10] sm:$0xf]
        %v2905 = vld [vmem:[%s2899 + $0x14] sm:$0xf]
        %v2906 = vld [vmem:[%s2899 + $0x18] sm:$0xf]
        %v2907 = vld [vmem:[%s2899 + $0x1c] sm:$0xf]
        %v2908 = vld [vmem:[%s2899 + $0x20] sm:$0xf]
        %v2909 = vld [vmem:[%s2899 + $0x24] sm:$0xf]
        %v2910 = vld [vmem:[%s2899 + $0x28] sm:$0xf]
        %v2911 = vld [vmem:[%s2899 + $0x2c] sm:$0xf]
        %v2912 = vld [vmem:[%s2899 + $0x30] sm:$0xf]
        %v2913 = vld [vmem:[%s2899 + $0x34] sm:$0xf]
        %v2914 = vld [vmem:[%s2899 + $0x38] sm:$0xf]
        %v2915 = vld [vmem:[%s2899 + $0x3c] sm:$0xf]
        %v2932 = vunpack.c.l.b16 %v2900
        %v2933 = vunpack.c.l.b16 %v2901
        %v2934 = vunpack.c.l.b16 %v2902
        %v2935 = vunpack.c.l.b16 %v2903
        %v2936 = vunpack.c.l.b16 %v2904
        %v2937 = vunpack.c.l.b16 %v2905
        %v2938 = vunpack.c.l.b16 %v2906
        %v2939 = vunpack.c.l.b16 %v2907
        %v2940 = vunpack.c.l.b16 %v2908
        %v2941 = vunpack.c.l.b16 %v2909
        %v2942 = vunpack.c.l.b16 %v2910
        %v2943 = vunpack.c.l.b16 %v2911
        %v2944 = vunpack.c.l.b16 %v2912
        %v2945 = vunpack.c.l.b16 %v2913
        %v2946 = vunpack.c.l.b16 %v2914
        %v2947 = vunpack.c.l.b16 %v2915
        %v2948 = vpack.c.b16 %v2933, %v2932
        %v2949 = vpack.c.b16 %v2935, %v2934
        %v2950 = vpack.c.b16 %v2937, %v2936
        %v2951 = vpack.c.b16 %v2939, %v2938
        %v2952 = vpack.c.b16 %v2941, %v2940
        %v2953 = vpack.c.b16 %v2943, %v2942
        %v2954 = vpack.c.b16 %v2945, %v2944
        %v2955 = vpack.c.b16 %v2947, %v2946
        %2964 = vmatpush.bf16.msra.mxu0 %v2955
        %2965 = vmatpush.bf16.msra.mxu0 %v2954
        %2966 = vmatpush.bf16.msra.mxu0 %v2953
        %2967 = vmatpush.bf16.msra.mxu0 %v2952
        %2968 = vmatpush.bf16.msra.mxu0 %v2951
        %2969 = vmatpush.bf16.msra.mxu0 %v2950
        %2970 = vmatpush.bf16.msra.mxu0 %v2949
        %2971 = vmatpush.bf16.msra.mxu0 %v2948
        %2972 = vmatmul.bf16.gmra.mxu0 %v2895
        %v2973 = vpop.f32.mrf.mxu0
        %v2974 = vadd.f32 0.0, %v2973
        %v2975 = vpop.f32.mrf.mxu0
        %v2976 = vadd.f32 0.0, %v2975
        %2977 = vmatmul.bf16.gmra.mxu0 %v2896
        %v2978 = vpop.f32.mrf.mxu0
        %v2979 = vadd.f32 0.0, %v2978
        %v2980 = vpop.f32.mrf.mxu0
        %v2981 = vadd.f32 0.0, %v2980
        %2982 = vmatmul.bf16.gmra.mxu0 %v2897
        %v2983 = vpop.f32.mrf.mxu0
        %v2984 = vadd.f32 0.0, %v2983
        %v2985 = vpop.f32.mrf.mxu0
        %v2986 = vadd.f32 0.0, %v2985
        %2987 = vmatmul.bf16.gmra.mxu0 %v2898
        %v2988 = vpop.f32.mrf.mxu0
        %v2989 = vadd.f32 0.0, %v2988
        %v2990 = vpop.f32.mrf.mxu0
        %v2991 = vadd.f32 0.0, %v2990
        %2992 = vdwg.mxu0
        %v2993 = vpack.c.bf16 %v2976, %v2974
        %v2994 = vpack.c.bf16 %v2981, %v2979
        %v2995 = vpack.c.bf16 %v2986, %v2984
        %v2996 = vpack.c.bf16 %v2991, %v2989
        %v2997 = vld [vmem:[#allocation15 + $0x10] sm:$0xf]
        %v2998 = vld [vmem:[#allocation15 + $0x14] sm:$0xf]
        %v2999 = vld [vmem:[#allocation15 + $0x18] sm:$0xf]
        %v3000 = vld [vmem:[#allocation15 + $0x1c] sm:$0xf]
        %v3005 = vunpack.c.l.b16 %v2997
        %v3006 = vunpack.c.l.b16 %v2998
        %v3007 = vunpack.c.l.b16 %v2999
        %v3008 = vunpack.c.l.b16 %v3000
        %v3009 = vpack.c.b16 %v3006, %v3005
        %v3010 = vpack.c.b16 %v3008, %v3007
        %v3014 = vsel %vm2398, %v2993, 0
        %v3017 = vsel %vm2398, %v2994, 0
        %v3020 = vsel %vm2398, %v2995, 0
        %v3023 = vsel %vm2398, %v2996, 0
        %3025 = vmatpush.bf16.msra.mxu0 0
        %3026 = vmatpush.bf16.msra.mxu0 0
        %3027 = vmatpush.bf16.msra.mxu0 0
        %3028 = vmatpush.bf16.msra.mxu0 0
        %3029 = vmatpush.bf16.msra.mxu0 0
        %3030 = vmatpush.bf16.msra.mxu0 0
        %3031 = vmatpush.bf16.msra.mxu0 %v3010
        %3032 = vmatpush.bf16.msra.mxu0 %v3009
        %3033 = vmatmul.bf16.gmra.mxu0 %v3014
        %v3034 = vpop.f32.mrf.mxu0
        %v3035 = vadd.f32 0.0, %v3034
        %v3036 = vpop.f32.mrf.mxu0
        %v3037 = vadd.f32 0.0, %v3036
        %3038 = vmatmul.bf16.gmra.mxu0 %v3017
        %v3039 = vpop.f32.mrf.mxu0
        %v3040 = vadd.f32 0.0, %v3039
        %v3041 = vpop.f32.mrf.mxu0
        %v3042 = vadd.f32 0.0, %v3041
        %3043 = vmatmul.bf16.gmra.mxu0 %v3020
        %v3044 = vpop.f32.mrf.mxu0
        %v3045 = vadd.f32 0.0, %v3044
        %v3046 = vpop.f32.mrf.mxu0
        %v3047 = vadd.f32 0.0, %v3046
        %3048 = vmatmul.bf16.gmra.mxu0 %v3023
        %v3049 = vpop.f32.mrf.mxu0
        %v3050 = vadd.f32 0.0, %v3049
        %v3051 = vpop.f32.mrf.mxu0
        %v3052 = vadd.f32 0.0, %v3051
        %3053 = vdwg.mxu0
        %v3058 = vunpack.c.l.b16 %v2637
        %v3059 = vunpack.c.l.b16 %v2638
        %v3060 = vunpack.c.l.b16 %v2639
        %v3061 = vunpack.c.l.b16 %v2640
        %v3062 = vpack.c.b16 %v3059, %v3058
        %v3063 = vpack.c.b16 %v3061, %v3060
        %v3067 = vsel %vm2398, %v2633, 0
        %v3070 = vsel %vm2398, %v2634, 0
        %v3073 = vsel %vm2398, %v2635, 0
        %v3076 = vsel %vm2398, %v2636, 0
        %3078 = vmatpush.bf16.msra.mxu0 0
        %3079 = vmatpush.bf16.msra.mxu0 0
        %3080 = vmatpush.bf16.msra.mxu0 0
        %3081 = vmatpush.bf16.msra.mxu0 0
        %3082 = vmatpush.bf16.msra.mxu0 0
        %3083 = vmatpush.bf16.msra.mxu0 0
        %3084 = vmatpush.bf16.msra.mxu0 %v3063
        %3085 = vmatpush.bf16.msra.mxu0 %v3062
        %3086 = vmatmul.bf16.gmra.mxu0 %v3067
        %v3087 = vpop.f32.mrf.mxu0
        %v3088 = vadd.f32 %v3035, %v3087
        %v3089 = vpop.f32.mrf.mxu0
        %v3090 = vadd.f32 %v3037, %v3089
        %3091 = vmatmul.bf16.gmra.mxu0 %v3070
        %v3092 = vpop.f32.mrf.mxu0
        %v3093 = vadd.f32 %v3040, %v3092
        %v3094 = vpop.f32.mrf.mxu0
        %v3095 = vadd.f32 %v3042, %v3094
        %3096 = vmatmul.bf16.gmra.mxu0 %v3073
        %v3097 = vpop.f32.mrf.mxu0
        %v3098 = vadd.f32 %v3045, %v3097
        %v3099 = vpop.f32.mrf.mxu0
        %v3100 = vadd.f32 %v3047, %v3099
        %3101 = vmatmul.bf16.gmra.mxu0 %v3076
        %v3102 = vpop.f32.mrf.mxu0
        %v3103 = vadd.f32 %v3050, %v3102
        %v3104 = vpop.f32.mrf.mxu0
        %v3105 = vadd.f32 %v3052, %v3104
        %3106 = vdwg.mxu0
        %3107 = vrot.lane.b32.xlu0 %v2290, 64
        %v3108 = vpop.permute.xlu0 %3107
        %3109 = vrot.lane.b32.xlu0 %v2291, 64
        %v3110 = vpop.permute.xlu0 %3109
        %3111 = vrot.lane.b32.xlu0 %v2292, 64
        %v3112 = vpop.permute.xlu0 %3111
        %3113 = vrot.lane.b32.xlu0 %v2293, 64
        %v3114 = vpop.permute.xlu0 %3113
        %3115 = vrot.lane.b32.xlu0 %v2294, 64
        %v3116 = vpop.permute.xlu0 %3115
        %3117 = vrot.lane.b32.xlu0 %v2295, 64
        %v3118 = vpop.permute.xlu0 %3117
        %3119 = vrot.lane.b32.xlu0 %v2296, 64
        %v3120 = vpop.permute.xlu0 %3119
        %3121 = vrot.lane.b32.xlu0 %v2297, 64
        %v3122 = vpop.permute.xlu0 %3121
        %3131 = vrot.lane.b32.xlu0 %v2232, 64
        %v3132 = vpop.permute.xlu0 %3131
        %3134 = vmatpush.bf16.msra.mxu0 %v3122
        %3135 = vmatpush.bf16.msra.mxu0 %v3120
        %3136 = vmatpush.bf16.msra.mxu0 %v3118
        %3137 = vmatpush.bf16.msra.mxu0 %v3116
        %3138 = vmatpush.bf16.msra.mxu0 %v3114
        %3139 = vmatpush.bf16.msra.mxu0 %v3112
        %3140 = vmatpush.bf16.msra.mxu0 %v3110
        %3141 = vmatpush.bf16.msra.mxu0 %v3108
        %3142 = vmatmul.bf16.gmra.mxu0 %v2250
        %v3143 = vpop.f32.mrf.mxu0
        %v3144 = vadd.f32 %v3132, %v3143
        %v3145 = vpop.f32.mrf.mxu0
        %v3146 = vadd.f32 %v3132, %v3145
        %3147 = vmatmul.bf16.gmra.mxu0 %v2251
        %v3148 = vpop.f32.mrf.mxu0
        %v3149 = vadd.f32 %v3132, %v3148
        %v3150 = vpop.f32.mrf.mxu0
        %v3151 = vadd.f32 %v3132, %v3150
        %3152 = vmatmul.bf16.gmra.mxu0 %v2252
        %v3153 = vpop.f32.mrf.mxu0
        %v3154 = vadd.f32 %v3132, %v3153
        %v3155 = vpop.f32.mrf.mxu0
        %v3156 = vadd.f32 %v3132, %v3155
        %3157 = vmatmul.bf16.gmra.mxu0 %v2253
        %v3158 = vpop.f32.mrf.mxu0
        %v3159 = vadd.f32 %v3132, %v3158
        %v3160 = vpop.f32.mrf.mxu0
        %v3161 = vadd.f32 %v3132, %v3160
        %3162 = vdwg.mxu0
        %v3163 = vpack.c.bf16 %v3146, %v3144
        %v3164 = vpack.c.bf16 %v3151, %v3149
        %v3165 = vpack.c.bf16 %v3156, %v3154
        %v3166 = vpack.c.bf16 %v3161, %v3159
        %s3167 = scalar_lea.vmem [#allocation2], 128
        %v3168 = vld [vmem:[%s3167] sm:$0xf]
        %v3169 = vld [vmem:[%s3167 + $0x4] sm:$0xf]
        %v3170 = vld [vmem:[%s3167 + $0x8] sm:$0xf]
        %v3171 = vld [vmem:[%s3167 + $0xc] sm:$0xf]
        %v3172 = vld [vmem:[%s3167 + $0x10] sm:$0xf]
        %v3173 = vld [vmem:[%s3167 + $0x14] sm:$0xf]
        %v3174 = vld [vmem:[%s3167 + $0x18] sm:$0xf]
        %v3175 = vld [vmem:[%s3167 + $0x1c] sm:$0xf]
        %v3176 = vld [vmem:[%s3167 + $0x20] sm:$0xf]
        %v3177 = vld [vmem:[%s3167 + $0x24] sm:$0xf]
        %v3178 = vld [vmem:[%s3167 + $0x28] sm:$0xf]
        %v3179 = vld [vmem:[%s3167 + $0x2c] sm:$0xf]
        %v3180 = vld [vmem:[%s3167 + $0x30] sm:$0xf]
        %v3181 = vld [vmem:[%s3167 + $0x34] sm:$0xf]
        %v3182 = vld [vmem:[%s3167 + $0x38] sm:$0xf]
        %v3183 = vld [vmem:[%s3167 + $0x3c] sm:$0xf]
        %v3200 = vunpack.c.l.b16 %v3168
        %v3201 = vunpack.c.l.b16 %v3169
        %v3202 = vunpack.c.l.b16 %v3170
        %v3203 = vunpack.c.l.b16 %v3171
        %v3204 = vunpack.c.l.b16 %v3172
        %v3205 = vunpack.c.l.b16 %v3173
        %v3206 = vunpack.c.l.b16 %v3174
        %v3207 = vunpack.c.l.b16 %v3175
        %v3208 = vunpack.c.l.b16 %v3176
        %v3209 = vunpack.c.l.b16 %v3177
        %v3210 = vunpack.c.l.b16 %v3178
        %v3211 = vunpack.c.l.b16 %v3179
        %v3212 = vunpack.c.l.b16 %v3180
        %v3213 = vunpack.c.l.b16 %v3181
        %v3214 = vunpack.c.l.b16 %v3182
        %v3215 = vunpack.c.l.b16 %v3183
        %v3216 = vpack.c.b16 %v3201, %v3200
        %v3217 = vpack.c.b16 %v3203, %v3202
        %v3218 = vpack.c.b16 %v3205, %v3204
        %v3219 = vpack.c.b16 %v3207, %v3206
        %v3220 = vpack.c.b16 %v3209, %v3208
        %v3221 = vpack.c.b16 %v3211, %v3210
        %v3222 = vpack.c.b16 %v3213, %v3212
        %v3223 = vpack.c.b16 %v3215, %v3214
        %v3225 = vsel %vm2398, %v3163, 0
        %v3228 = vsel %vm2398, %v3164, 0
        %v3231 = vsel %vm2398, %v3165, 0
        %v3234 = vsel %vm2398, %v3166, 0
        %v3237 = vsel %vm2398, %v3216, 0
        %v3240 = vsel %vm2398, %v3217, 0
        %v3243 = vsel %vm2398, %v3218, 0
        %v3246 = vsel %vm2398, %v3219, 0
        %v3249 = vsel %vm2398, %v3220, 0
        %v3252 = vsel %vm2398, %v3221, 0
        %v3255 = vsel %vm2398, %v3222, 0
        %v3258 = vsel %vm2398, %v3223, 0
        %3260 = vmatpush.bf16.xpose.msra.mxu0 %v3258
        %3261 = vmatpush.bf16.xpose.msra.mxu0 %v3255
        %3262 = vmatpush.bf16.xpose.msra.mxu0 %v3252
        %3263 = vmatpush.bf16.xpose.msra.mxu0 %v3249
        %3264 = vmatpush.bf16.xpose.msra.mxu0 %v3246
        %3265 = vmatpush.bf16.xpose.msra.mxu0 %v3243
        %3266 = vmatpush.bf16.xpose.msra.mxu0 %v3240
        %3267 = vmatpush.bf16.xpose.msra.mxu0 %v3237
        %3268 = vmatmul.bf16.gmra.mxu0 %v3225
        %v3269 = vpop.f32.mrf.mxu0
        %v3270 = vadd.f32 %v2356, %v3269
        %v3271 = vpop.f32.mrf.mxu0
        %v3272 = vadd.f32 %v2356, %v3271
        %3273 = vmatmul.bf16.gmra.mxu0 %v3228
        %v3274 = vpop.f32.mrf.mxu0
        %v3275 = vadd.f32 %v2356, %v3274
        %v3276 = vpop.f32.mrf.mxu0
        %v3277 = vadd.f32 %v2356, %v3276
        %3278 = vmatmul.bf16.gmra.mxu0 %v3231
        %v3279 = vpop.f32.mrf.mxu0
        %v3280 = vadd.f32 %v2356, %v3279
        %v3281 = vpop.f32.mrf.mxu0
        %v3282 = vadd.f32 %v2356, %v3281
        %3283 = vmatmul.bf16.gmra.mxu0 %v3234
        %v3284 = vpop.f32.mrf.mxu0
        %v3285 = vadd.f32 %v2356, %v3284
        %v3286 = vpop.f32.mrf.mxu0
        %v3287 = vadd.f32 %v2356, %v3286
        %3288 = vdwg.mxu0
        %3289 = vmax.xlane.f32.xlu0 %v3270
        %v3290 = vpop.xlane.xlu0 %3289
        %3291 = vmax.xlane.f32.xlu0 %v3272
        %v3292 = vpop.xlane.xlu0 %3291
        %3293 = vmax.xlane.f32.xlu0 %v3275
        %v3294 = vpop.xlane.xlu0 %3293
        %3295 = vmax.xlane.f32.xlu0 %v3277
        %v3296 = vpop.xlane.xlu0 %3295
        %3297 = vmax.xlane.f32.xlu0 %v3280
        %v3298 = vpop.xlane.xlu0 %3297
        %3299 = vmax.xlane.f32.xlu0 %v3282
        %v3300 = vpop.xlane.xlu0 %3299
        %3301 = vmax.xlane.f32.xlu0 %v3285
        %v3302 = vpop.xlane.xlu0 %3301
        %3303 = vmax.xlane.f32.xlu0 %v3287
        %v3304 = vpop.xlane.xlu0 %3303
        %v3305 = vsub.f32 %v3270, %v3290
        %v3306 = vsub.f32 %v3272, %v3292
        %v3307 = vsub.f32 %v3275, %v3294
        %v3308 = vsub.f32 %v3277, %v3296
        %v3309 = vsub.f32 %v3280, %v3298
        %v3310 = vsub.f32 %v3282, %v3300
        %v3311 = vsub.f32 %v3285, %v3302
        %v3312 = vsub.f32 %v3287, %v3304
        %v3313 = vmul.f32 %v3305, 1.442695
        %v3314 = vpow.pop %v3313
        %v3315 = vmul.f32 %v3306, 1.442695
        %v3316 = vpow.pop %v3315
        %v3317 = vmul.f32 %v3307, 1.442695
        %v3318 = vpow.pop %v3317
        %v3319 = vmul.f32 %v3308, 1.442695
        %v3320 = vpow.pop %v3319
        %v3321 = vmul.f32 %v3309, 1.442695
        %v3322 = vpow.pop %v3321
        %v3323 = vmul.f32 %v3310, 1.442695
        %v3324 = vpow.pop %v3323
        %v3325 = vmul.f32 %v3311, 1.442695
        %v3326 = vpow.pop %v3325
        %v3327 = vmul.f32 %v3312, 1.442695
        %v3328 = vpow.pop %v3327
        %3329 = vadd.xlane.f32.xlu0 %v3314
        %v3330 = vpop.xlane.xlu0 %3329
        %3331 = vadd.xlane.f32.xlu0 %v3316
        %v3332 = vpop.xlane.xlu0 %3331
        %3333 = vadd.xlane.f32.xlu0 %v3318
        %v3334 = vpop.xlane.xlu0 %3333
        %3335 = vadd.xlane.f32.xlu0 %v3320
        %v3336 = vpop.xlane.xlu0 %3335
        %3337 = vadd.xlane.f32.xlu0 %v3322
        %v3338 = vpop.xlane.xlu0 %3337
        %3339 = vadd.xlane.f32.xlu0 %v3324
        %v3340 = vpop.xlane.xlu0 %3339
        %3341 = vadd.xlane.f32.xlu0 %v3326
        %v3342 = vpop.xlane.xlu0 %3341
        %3343 = vadd.xlane.f32.xlu0 %v3328
        %v3344 = vpop.xlane.xlu0 %3343
        %v3345 = vrcp.pop %v3330
        %v3346 = vrcp.pop %v3332
        %v3347 = vrcp.pop %v3334
        %v3348 = vrcp.pop %v3336
        %v3349 = vrcp.pop %v3338
        %v3350 = vrcp.pop %v3340
        %v3351 = vrcp.pop %v3342
        %v3352 = vrcp.pop %v3344
        %v3353 = vmul.f32 %v3314, %v3345
        %v3354 = vmul.f32 %v3316, %v3346
        %v3355 = vmul.f32 %v3318, %v3347
        %v3356 = vmul.f32 %v3320, %v3348
        %v3357 = vmul.f32 %v3322, %v3349
        %v3358 = vmul.f32 %v3324, %v3350
        %v3359 = vmul.f32 %v3326, %v3351
        %v3360 = vmul.f32 %v3328, %v3352
        %v3361 = vpack.c.bf16 %v3354, %v3353
        %v3362 = vpack.c.bf16 %v3356, %v3355
        %v3363 = vpack.c.bf16 %v3358, %v3357
        %v3364 = vpack.c.bf16 %v3360, %v3359
        %s3365 = scalar_lea.vmem [#allocation3], 128
        %v3366 = vld [vmem:[%s3365] sm:$0xf]
        %v3367 = vld [vmem:[%s3365 + $0x4] sm:$0xf]
        %v3368 = vld [vmem:[%s3365 + $0x8] sm:$0xf]
        %v3369 = vld [vmem:[%s3365 + $0xc] sm:$0xf]
        %v3370 = vld [vmem:[%s3365 + $0x10] sm:$0xf]
        %v3371 = vld [vmem:[%s3365 + $0x14] sm:$0xf]
        %v3372 = vld [vmem:[%s3365 + $0x18] sm:$0xf]
        %v3373 = vld [vmem:[%s3365 + $0x1c] sm:$0xf]
        %v3374 = vld [vmem:[%s3365 + $0x20] sm:$0xf]
        %v3375 = vld [vmem:[%s3365 + $0x24] sm:$0xf]
        %v3376 = vld [vmem:[%s3365 + $0x28] sm:$0xf]
        %v3377 = vld [vmem:[%s3365 + $0x2c] sm:$0xf]
        %v3378 = vld [vmem:[%s3365 + $0x30] sm:$0xf]
        %v3379 = vld [vmem:[%s3365 + $0x34] sm:$0xf]
        %v3380 = vld [vmem:[%s3365 + $0x38] sm:$0xf]
        %v3381 = vld [vmem:[%s3365 + $0x3c] sm:$0xf]
        %v3398 = vunpack.c.l.b16 %v3366
        %v3399 = vunpack.c.l.b16 %v3367
        %v3400 = vunpack.c.l.b16 %v3368
        %v3401 = vunpack.c.l.b16 %v3369
        %v3402 = vunpack.c.l.b16 %v3370
        %v3403 = vunpack.c.l.b16 %v3371
        %v3404 = vunpack.c.l.b16 %v3372
        %v3405 = vunpack.c.l.b16 %v3373
        %v3406 = vunpack.c.l.b16 %v3374
        %v3407 = vunpack.c.l.b16 %v3375
        %v3408 = vunpack.c.l.b16 %v3376
        %v3409 = vunpack.c.l.b16 %v3377
        %v3410 = vunpack.c.l.b16 %v3378
        %v3411 = vunpack.c.l.b16 %v3379
        %v3412 = vunpack.c.l.b16 %v3380
        %v3413 = vunpack.c.l.b16 %v3381
        %v3414 = vpack.c.b16 %v3399, %v3398
        %v3415 = vpack.c.b16 %v3401, %v3400
        %v3416 = vpack.c.b16 %v3403, %v3402
        %v3417 = vpack.c.b16 %v3405, %v3404
        %v3418 = vpack.c.b16 %v3407, %v3406
        %v3419 = vpack.c.b16 %v3409, %v3408
        %v3420 = vpack.c.b16 %v3411, %v3410
        %v3421 = vpack.c.b16 %v3413, %v3412
        %3430 = vmatpush.bf16.msra.mxu0 %v3421
        %3431 = vmatpush.bf16.msra.mxu0 %v3420
        %3432 = vmatpush.bf16.msra.mxu0 %v3419
        %3433 = vmatpush.bf16.msra.mxu0 %v3418
        %3434 = vmatpush.bf16.msra.mxu0 %v3417
        %3435 = vmatpush.bf16.msra.mxu0 %v3416
        %3436 = vmatpush.bf16.msra.mxu0 %v3415
        %3437 = vmatpush.bf16.msra.mxu0 %v3414
        %3438 = vmatmul.bf16.gmra.mxu0 %v3361
        %v3439 = vpop.f32.mrf.mxu0
        %v3440 = vadd.f32 0.0, %v3439
        %v3441 = vpop.f32.mrf.mxu0
        %v3442 = vadd.f32 0.0, %v3441
        %3443 = vmatmul.bf16.gmra.mxu0 %v3362
        %v3444 = vpop.f32.mrf.mxu0
        %v3445 = vadd.f32 0.0, %v3444
        %v3446 = vpop.f32.mrf.mxu0
        %v3447 = vadd.f32 0.0, %v3446
        %3448 = vmatmul.bf16.gmra.mxu0 %v3363
        %v3449 = vpop.f32.mrf.mxu0
        %v3450 = vadd.f32 0.0, %v3449
        %v3451 = vpop.f32.mrf.mxu0
        %v3452 = vadd.f32 0.0, %v3451
        %3453 = vmatmul.bf16.gmra.mxu0 %v3364
        %v3454 = vpop.f32.mrf.mxu0
        %v3455 = vadd.f32 0.0, %v3454
        %v3456 = vpop.f32.mrf.mxu0
        %v3457 = vadd.f32 0.0, %v3456
        %3458 = vdwg.mxu0
        %v3459 = vpack.c.bf16 %v3442, %v3440
        %v3460 = vpack.c.bf16 %v3447, %v3445
        %v3461 = vpack.c.bf16 %v3452, %v3450
        %v3462 = vpack.c.bf16 %v3457, %v3455
        %v3463 = vld [vmem:[#allocation15 + $0x20] sm:$0xf]
        %v3464 = vld [vmem:[#allocation15 + $0x24] sm:$0xf]
        %v3465 = vld [vmem:[#allocation15 + $0x28] sm:$0xf]
        %v3466 = vld [vmem:[#allocation15 + $0x2c] sm:$0xf]
        %v3471 = vunpack.c.l.b16 %v3463
        %v3472 = vunpack.c.l.b16 %v3464
        %v3473 = vunpack.c.l.b16 %v3465
        %v3474 = vunpack.c.l.b16 %v3466
        %v3475 = vpack.c.b16 %v3472, %v3471
        %v3476 = vpack.c.b16 %v3474, %v3473
        %v3480 = vsel %vm2398, %v3459, 0
        %v3483 = vsel %vm2398, %v3460, 0
        %v3486 = vsel %vm2398, %v3461, 0
        %v3489 = vsel %vm2398, %v3462, 0
        %3491 = vmatpush.bf16.msra.mxu0 0
        %3492 = vmatpush.bf16.msra.mxu0 0
        %3493 = vmatpush.bf16.msra.mxu0 0
        %3494 = vmatpush.bf16.msra.mxu0 0
        %3495 = vmatpush.bf16.msra.mxu0 0
        %3496 = vmatpush.bf16.msra.mxu0 0
        %3497 = vmatpush.bf16.msra.mxu0 %v3476
        %3498 = vmatpush.bf16.msra.mxu0 %v3475
        %3499 = vmatmul.bf16.gmra.mxu0 %v3480
        %v3500 = vpop.f32.mrf.mxu0
        %v3501 = vadd.f32 0.0, %v3500
        %v3502 = vpop.f32.mrf.mxu0
        %v3503 = vadd.f32 0.0, %v3502
        %3504 = vmatmul.bf16.gmra.mxu0 %v3483
        %v3505 = vpop.f32.mrf.mxu0
        %v3506 = vadd.f32 0.0, %v3505
        %v3507 = vpop.f32.mrf.mxu0
        %v3508 = vadd.f32 0.0, %v3507
        %3509 = vmatmul.bf16.gmra.mxu0 %v3486
        %v3510 = vpop.f32.mrf.mxu0
        %v3511 = vadd.f32 0.0, %v3510
        %v3512 = vpop.f32.mrf.mxu0
        %v3513 = vadd.f32 0.0, %v3512
        %3514 = vmatmul.bf16.gmra.mxu0 %v3489
        %v3515 = vpop.f32.mrf.mxu0
        %v3516 = vadd.f32 0.0, %v3515
        %v3517 = vpop.f32.mrf.mxu0
        %v3518 = vadd.f32 0.0, %v3517
        %3519 = vdwg.mxu0
        %v3520 = vadd.f32 %v3088, %v3501
        %v3521 = vadd.f32 %v3090, %v3503
        %v3522 = vadd.f32 %v3093, %v3506
        %v3523 = vadd.f32 %v3095, %v3508
        %v3524 = vadd.f32 %v3098, %v3511
        %v3525 = vadd.f32 %v3100, %v3513
        %v3526 = vadd.f32 %v3103, %v3516
        %v3527 = vadd.f32 %v3105, %v3518
        %3528 = vrot.lane.b32.xlu0 %v2290, 32
        %v3529 = vpop.permute.xlu0 %3528
        %3530 = vrot.lane.b32.xlu0 %v2291, 32
        %v3531 = vpop.permute.xlu0 %3530
        %3532 = vrot.lane.b32.xlu0 %v2292, 32
        %v3533 = vpop.permute.xlu0 %3532
        %3534 = vrot.lane.b32.xlu0 %v2293, 32
        %v3535 = vpop.permute.xlu0 %3534
        %3536 = vrot.lane.b32.xlu0 %v2294, 32
        %v3537 = vpop.permute.xlu0 %3536
        %3538 = vrot.lane.b32.xlu0 %v2295, 32
        %v3539 = vpop.permute.xlu0 %3538
        %3540 = vrot.lane.b32.xlu0 %v2296, 32
        %v3541 = vpop.permute.xlu0 %3540
        %3542 = vrot.lane.b32.xlu0 %v2297, 32
        %v3543 = vpop.permute.xlu0 %3542
        %3552 = vrot.lane.b32.xlu0 %v2232, 32
        %v3553 = vpop.permute.xlu0 %3552
        %3555 = vmatpush.bf16.msra.mxu0 %v3543
        %3556 = vmatpush.bf16.msra.mxu0 %v3541
        %3557 = vmatpush.bf16.msra.mxu0 %v3539
        %3558 = vmatpush.bf16.msra.mxu0 %v3537
        %3559 = vmatpush.bf16.msra.mxu0 %v3535
        %3560 = vmatpush.bf16.msra.mxu0 %v3533
        %3561 = vmatpush.bf16.msra.mxu0 %v3531
        %3562 = vmatpush.bf16.msra.mxu0 %v3529
        %3563 = vmatmul.bf16.gmra.mxu0 %v2250
        %v3564 = vpop.f32.mrf.mxu0
        %v3565 = vadd.f32 %v3553, %v3564
        %v3566 = vpop.f32.mrf.mxu0
        %v3567 = vadd.f32 %v3553, %v3566
        %3568 = vmatmul.bf16.gmra.mxu0 %v2251
        %v3569 = vpop.f32.mrf.mxu0
        %v3570 = vadd.f32 %v3553, %v3569
        %v3571 = vpop.f32.mrf.mxu0
        %v3572 = vadd.f32 %v3553, %v3571
        %3573 = vmatmul.bf16.gmra.mxu0 %v2252
        %v3574 = vpop.f32.mrf.mxu0
        %v3575 = vadd.f32 %v3553, %v3574
        %v3576 = vpop.f32.mrf.mxu0
        %v3577 = vadd.f32 %v3553, %v3576
        %3578 = vmatmul.bf16.gmra.mxu0 %v2253
        %v3579 = vpop.f32.mrf.mxu0
        %v3580 = vadd.f32 %v3553, %v3579
        %v3581 = vpop.f32.mrf.mxu0
        %v3582 = vadd.f32 %v3553, %v3581
        %3583 = vdwg.mxu0
        %v3584 = vpack.c.bf16 %v3567, %v3565
        %v3585 = vpack.c.bf16 %v3572, %v3570
        %v3586 = vpack.c.bf16 %v3577, %v3575
        %v3587 = vpack.c.bf16 %v3582, %v3580
        %s3588 = scalar_lea.vmem [#allocation2], 192
        %v3589 = vld [vmem:[%s3588] sm:$0xf]
        %v3590 = vld [vmem:[%s3588 + $0x4] sm:$0xf]
        %v3591 = vld [vmem:[%s3588 + $0x8] sm:$0xf]
        %v3592 = vld [vmem:[%s3588 + $0xc] sm:$0xf]
        %v3593 = vld [vmem:[%s3588 + $0x10] sm:$0xf]
        %v3594 = vld [vmem:[%s3588 + $0x14] sm:$0xf]
        %v3595 = vld [vmem:[%s3588 + $0x18] sm:$0xf]
        %v3596 = vld [vmem:[%s3588 + $0x1c] sm:$0xf]
        %v3597 = vld [vmem:[%s3588 + $0x20] sm:$0xf]
        %v3598 = vld [vmem:[%s3588 + $0x24] sm:$0xf]
        %v3599 = vld [vmem:[%s3588 + $0x28] sm:$0xf]
        %v3600 = vld [vmem:[%s3588 + $0x2c] sm:$0xf]
        %v3601 = vld [vmem:[%s3588 + $0x30] sm:$0xf]
        %v3602 = vld [vmem:[%s3588 + $0x34] sm:$0xf]
        %v3603 = vld [vmem:[%s3588 + $0x38] sm:$0xf]
        %v3604 = vld [vmem:[%s3588 + $0x3c] sm:$0xf]
        %v3621 = vunpack.c.l.b16 %v3589
        %v3622 = vunpack.c.l.b16 %v3590
        %v3623 = vunpack.c.l.b16 %v3591
        %v3624 = vunpack.c.l.b16 %v3592
        %v3625 = vunpack.c.l.b16 %v3593
        %v3626 = vunpack.c.l.b16 %v3594
        %v3627 = vunpack.c.l.b16 %v3595
        %v3628 = vunpack.c.l.b16 %v3596
        %v3629 = vunpack.c.l.b16 %v3597
        %v3630 = vunpack.c.l.b16 %v3598
        %v3631 = vunpack.c.l.b16 %v3599
        %v3632 = vunpack.c.l.b16 %v3600
        %v3633 = vunpack.c.l.b16 %v3601
        %v3634 = vunpack.c.l.b16 %v3602
        %v3635 = vunpack.c.l.b16 %v3603
        %v3636 = vunpack.c.l.b16 %v3604
        %v3637 = vpack.c.b16 %v3622, %v3621
        %v3638 = vpack.c.b16 %v3624, %v3623
        %v3639 = vpack.c.b16 %v3626, %v3625
        %v3640 = vpack.c.b16 %v3628, %v3627
        %v3641 = vpack.c.b16 %v3630, %v3629
        %v3642 = vpack.c.b16 %v3632, %v3631
        %v3643 = vpack.c.b16 %v3634, %v3633
        %v3644 = vpack.c.b16 %v3636, %v3635
        %v3646 = vsel %vm2398, %v3584, 0
        %v3649 = vsel %vm2398, %v3585, 0
        %v3652 = vsel %vm2398, %v3586, 0
        %v3655 = vsel %vm2398, %v3587, 0
        %v3658 = vsel %vm2398, %v3637, 0
        %v3661 = vsel %vm2398, %v3638, 0
        %v3664 = vsel %vm2398, %v3639, 0
        %v3667 = vsel %vm2398, %v3640, 0
        %v3670 = vsel %vm2398, %v3641, 0
        %v3673 = vsel %vm2398, %v3642, 0
        %v3676 = vsel %vm2398, %v3643, 0
        %v3679 = vsel %vm2398, %v3644, 0
        %3681 = vmatpush.bf16.xpose.msra.mxu0 %v3679
        %3682 = vmatpush.bf16.xpose.msra.mxu0 %v3676
        %3683 = vmatpush.bf16.xpose.msra.mxu0 %v3673
        %3684 = vmatpush.bf16.xpose.msra.mxu0 %v3670
        %3685 = vmatpush.bf16.xpose.msra.mxu0 %v3667
        %3686 = vmatpush.bf16.xpose.msra.mxu0 %v3664
        %3687 = vmatpush.bf16.xpose.msra.mxu0 %v3661
        %3688 = vmatpush.bf16.xpose.msra.mxu0 %v3658
        %3689 = vmatmul.bf16.gmra.mxu0 %v3646
        %v3690 = vpop.f32.mrf.mxu0
        %v3691 = vadd.f32 %v2356, %v3690
        %v3692 = vpop.f32.mrf.mxu0
        %v3693 = vadd.f32 %v2356, %v3692
        %3694 = vmatmul.bf16.gmra.mxu0 %v3649
        %v3695 = vpop.f32.mrf.mxu0
        %v3696 = vadd.f32 %v2356, %v3695
        %v3697 = vpop.f32.mrf.mxu0
        %v3698 = vadd.f32 %v2356, %v3697
        %3699 = vmatmul.bf16.gmra.mxu0 %v3652
        %v3700 = vpop.f32.mrf.mxu0
        %v3701 = vadd.f32 %v2356, %v3700
        %v3702 = vpop.f32.mrf.mxu0
        %v3703 = vadd.f32 %v2356, %v3702
        %3704 = vmatmul.bf16.gmra.mxu0 %v3655
        %v3705 = vpop.f32.mrf.mxu0
        %v3706 = vadd.f32 %v2356, %v3705
        %v3707 = vpop.f32.mrf.mxu0
        %v3708 = vadd.f32 %v2356, %v3707
        %3709 = vdwg.mxu0
        %3710 = vmax.xlane.f32.xlu0 %v3691
        %v3711 = vpop.xlane.xlu0 %3710
        %3712 = vmax.xlane.f32.xlu0 %v3693
        %v3713 = vpop.xlane.xlu0 %3712
        %3714 = vmax.xlane.f32.xlu0 %v3696
        %v3715 = vpop.xlane.xlu0 %3714
        %3716 = vmax.xlane.f32.xlu0 %v3698
        %v3717 = vpop.xlane.xlu0 %3716
        %3718 = vmax.xlane.f32.xlu0 %v3701
        %v3719 = vpop.xlane.xlu0 %3718
        %3720 = vmax.xlane.f32.xlu0 %v3703
        %v3721 = vpop.xlane.xlu0 %3720
        %3722 = vmax.xlane.f32.xlu0 %v3706
        %v3723 = vpop.xlane.xlu0 %3722
        %3724 = vmax.xlane.f32.xlu0 %v3708
        %v3725 = vpop.xlane.xlu0 %3724
        %v3726 = vsub.f32 %v3691, %v3711
        %v3727 = vsub.f32 %v3693, %v3713
        %v3728 = vsub.f32 %v3696, %v3715
        %v3729 = vsub.f32 %v3698, %v3717
        %v3730 = vsub.f32 %v3701, %v3719
        %v3731 = vsub.f32 %v3703, %v3721
        %v3732 = vsub.f32 %v3706, %v3723
        %v3733 = vsub.f32 %v3708, %v3725
        %v3734 = vmul.f32 %v3726, 1.442695
        %v3735 = vpow.pop %v3734
        %v3736 = vmul.f32 %v3727, 1.442695
        %v3737 = vpow.pop %v3736
        %v3738 = vmul.f32 %v3728, 1.442695
        %v3739 = vpow.pop %v3738
        %v3740 = vmul.f32 %v3729, 1.442695
        %v3741 = vpow.pop %v3740
        %v3742 = vmul.f32 %v3730, 1.442695
        %v3743 = vpow.pop %v3742
        %v3744 = vmul.f32 %v3731, 1.442695
        %v3745 = vpow.pop %v3744
        %v3746 = vmul.f32 %v3732, 1.442695
        %v3747 = vpow.pop %v3746
        %v3748 = vmul.f32 %v3733, 1.442695
        %v3749 = vpow.pop %v3748
        %3750 = vadd.xlane.f32.xlu0 %v3735
        %v3751 = vpop.xlane.xlu0 %3750
        %3752 = vadd.xlane.f32.xlu0 %v3737
        %v3753 = vpop.xlane.xlu0 %3752
        %3754 = vadd.xlane.f32.xlu0 %v3739
        %v3755 = vpop.xlane.xlu0 %3754
        %3756 = vadd.xlane.f32.xlu0 %v3741
        %v3757 = vpop.xlane.xlu0 %3756
        %3758 = vadd.xlane.f32.xlu0 %v3743
        %v3759 = vpop.xlane.xlu0 %3758
        %3760 = vadd.xlane.f32.xlu0 %v3745
        %v3761 = vpop.xlane.xlu0 %3760
        %3762 = vadd.xlane.f32.xlu0 %v3747
        %v3763 = vpop.xlane.xlu0 %3762
        %3764 = vadd.xlane.f32.xlu0 %v3749
        %v3765 = vpop.xlane.xlu0 %3764
        %v3766 = vrcp.pop %v3751
        %v3767 = vrcp.pop %v3753
        %v3768 = vrcp.pop %v3755
        %v3769 = vrcp.pop %v3757
        %v3770 = vrcp.pop %v3759
        %v3771 = vrcp.pop %v3761
        %v3772 = vrcp.pop %v3763
        %v3773 = vrcp.pop %v3765
        %v3774 = vmul.f32 %v3735, %v3766
        %v3775 = vmul.f32 %v3737, %v3767
        %v3776 = vmul.f32 %v3739, %v3768
        %v3777 = vmul.f32 %v3741, %v3769
        %v3778 = vmul.f32 %v3743, %v3770
        %v3779 = vmul.f32 %v3745, %v3771
        %v3780 = vmul.f32 %v3747, %v3772
        %v3781 = vmul.f32 %v3749, %v3773
        %v3782 = vpack.c.bf16 %v3775, %v3774
        %v3783 = vpack.c.bf16 %v3777, %v3776
        %v3784 = vpack.c.bf16 %v3779, %v3778
        %v3785 = vpack.c.bf16 %v3781, %v3780
        %s3786 = scalar_lea.vmem [#allocation3], 192
        %v3787 = vld [vmem:[%s3786] sm:$0xf]
        %v3788 = vld [vmem:[%s3786 + $0x4] sm:$0xf]
        %v3789 = vld [vmem:[%s3786 + $0x8] sm:$0xf]
        %v3790 = vld [vmem:[%s3786 + $0xc] sm:$0xf]
        %v3791 = vld [vmem:[%s3786 + $0x10] sm:$0xf]
        %v3792 = vld [vmem:[%s3786 + $0x14] sm:$0xf]
        %v3793 = vld [vmem:[%s3786 + $0x18] sm:$0xf]
        %v3794 = vld [vmem:[%s3786 + $0x1c] sm:$0xf]
        %v3795 = vld [vmem:[%s3786 + $0x20] sm:$0xf]
        %v3796 = vld [vmem:[%s3786 + $0x24] sm:$0xf]
        %v3797 = vld [vmem:[%s3786 + $0x28] sm:$0xf]
        %v3798 = vld [vmem:[%s3786 + $0x2c] sm:$0xf]
        %v3799 = vld [vmem:[%s3786 + $0x30] sm:$0xf]
        %v3800 = vld [vmem:[%s3786 + $0x34] sm:$0xf]
        %v3801 = vld [vmem:[%s3786 + $0x38] sm:$0xf]
        %v3802 = vld [vmem:[%s3786 + $0x3c] sm:$0xf]
        %v3819 = vunpack.c.l.b16 %v3787
        %v3820 = vunpack.c.l.b16 %v3788
        %v3821 = vunpack.c.l.b16 %v3789
        %v3822 = vunpack.c.l.b16 %v3790
        %v3823 = vunpack.c.l.b16 %v3791
        %v3824 = vunpack.c.l.b16 %v3792
        %v3825 = vunpack.c.l.b16 %v3793
        %v3826 = vunpack.c.l.b16 %v3794
        %v3827 = vunpack.c.l.b16 %v3795
        %v3828 = vunpack.c.l.b16 %v3796
        %v3829 = vunpack.c.l.b16 %v3797
        %v3830 = vunpack.c.l.b16 %v3798
        %v3831 = vunpack.c.l.b16 %v3799
        %v3832 = vunpack.c.l.b16 %v3800
        %v3833 = vunpack.c.l.b16 %v3801
        %v3834 = vunpack.c.l.b16 %v3802
        %v3835 = vpack.c.b16 %v3820, %v3819
        %v3836 = vpack.c.b16 %v3822, %v3821
        %v3837 = vpack.c.b16 %v3824, %v3823
        %v3838 = vpack.c.b16 %v3826, %v3825
        %v3839 = vpack.c.b16 %v3828, %v3827
        %v3840 = vpack.c.b16 %v3830, %v3829
        %v3841 = vpack.c.b16 %v3832, %v3831
        %v3842 = vpack.c.b16 %v3834, %v3833
        %3851 = vmatpush.bf16.msra.mxu0 %v3842
        %3852 = vmatpush.bf16.msra.mxu0 %v3841
        %3853 = vmatpush.bf16.msra.mxu0 %v3840
        %3854 = vmatpush.bf16.msra.mxu0 %v3839
        %3855 = vmatpush.bf16.msra.mxu0 %v3838
        %3856 = vmatpush.bf16.msra.mxu0 %v3837
        %3857 = vmatpush.bf16.msra.mxu0 %v3836
        %3858 = vmatpush.bf16.msra.mxu0 %v3835
        %3859 = vmatmul.bf16.gmra.mxu0 %v3782
        %v3860 = vpop.f32.mrf.mxu0
        %v3861 = vadd.f32 0.0, %v3860
        %v3862 = vpop.f32.mrf.mxu0
        %v3863 = vadd.f32 0.0, %v3862
        %3864 = vmatmul.bf16.gmra.mxu0 %v3783
        %v3865 = vpop.f32.mrf.mxu0
        %v3866 = vadd.f32 0.0, %v3865
        %v3867 = vpop.f32.mrf.mxu0
        %v3868 = vadd.f32 0.0, %v3867
        %3869 = vmatmul.bf16.gmra.mxu0 %v3784
        %v3870 = vpop.f32.mrf.mxu0
        %v3871 = vadd.f32 0.0, %v3870
        %v3872 = vpop.f32.mrf.mxu0
        %v3873 = vadd.f32 0.0, %v3872
        %3874 = vmatmul.bf16.gmra.mxu0 %v3785
        %v3875 = vpop.f32.mrf.mxu0
        %v3876 = vadd.f32 0.0, %v3875
        %v3877 = vpop.f32.mrf.mxu0
        %v3878 = vadd.f32 0.0, %v3877
        %3879 = vdwg.mxu0
        %v3880 = vpack.c.bf16 %v3863, %v3861
        %v3881 = vpack.c.bf16 %v3868, %v3866
        %v3882 = vpack.c.bf16 %v3873, %v3871
        %v3883 = vpack.c.bf16 %v3878, %v3876
        %v3884 = vld [vmem:[#allocation15 + $0x30] sm:$0xf]
        %v3885 = vld [vmem:[#allocation15 + $0x34] sm:$0xf]
        %v3886 = vld [vmem:[#allocation15 + $0x38] sm:$0xf]
        %v3887 = vld [vmem:[#allocation15 + $0x3c] sm:$0xf]
        %v3892 = vunpack.c.l.b16 %v3884
        %v3893 = vunpack.c.l.b16 %v3885
        %v3894 = vunpack.c.l.b16 %v3886
        %v3895 = vunpack.c.l.b16 %v3887
        %v3896 = vpack.c.b16 %v3893, %v3892
        %v3897 = vpack.c.b16 %v3895, %v3894
        %v3901 = vsel %vm2398, %v3880, 0
        %v3904 = vsel %vm2398, %v3881, 0
        %v3907 = vsel %vm2398, %v3882, 0
        %v3910 = vsel %vm2398, %v3883, 0
        %3912 = vmatpush.bf16.msra.mxu0 0
        %3913 = vmatpush.bf16.msra.mxu0 0
        %3914 = vmatpush.bf16.msra.mxu0 0
        %3915 = vmatpush.bf16.msra.mxu0 0
        %3916 = vmatpush.bf16.msra.mxu0 0
        %3917 = vmatpush.bf16.msra.mxu0 0
        %3918 = vmatpush.bf16.msra.mxu0 %v3897
        %3919 = vmatpush.bf16.msra.mxu0 %v3896
        %3920 = vmatmul.bf16.gmra.mxu0 %v3901
        %v3921 = vpop.f32.mrf.mxu0
        %v3922 = vadd.f32 0.0, %v3921
        %v3923 = vpop.f32.mrf.mxu0
        %v3924 = vadd.f32 0.0, %v3923
        %3925 = vmatmul.bf16.gmra.mxu0 %v3904
        %v3926 = vpop.f32.mrf.mxu0
        %v3927 = vadd.f32 0.0, %v3926
        %v3928 = vpop.f32.mrf.mxu0
        %v3929 = vadd.f32 0.0, %v3928
        %3930 = vmatmul.bf16.gmra.mxu0 %v3907
        %v3931 = vpop.f32.mrf.mxu0
        %v3932 = vadd.f32 0.0, %v3931
        %v3933 = vpop.f32.mrf.mxu0
        %v3934 = vadd.f32 0.0, %v3933
        %3935 = vmatmul.bf16.gmra.mxu0 %v3910
        %v3936 = vpop.f32.mrf.mxu0
        %v3937 = vadd.f32 0.0, %v3936
        %v3938 = vpop.f32.mrf.mxu0
        %v3939 = vadd.f32 0.0, %v3938
        %3940 = vdwg.mxu0
        %v3941 = vadd.f32 %v3520, %v3922
        %v3942 = vadd.f32 %v3521, %v3924
        %v3943 = vadd.f32 %v3522, %v3927
        %v3944 = vadd.f32 %v3523, %v3929
        %v3945 = vadd.f32 %v3524, %v3932
        %v3946 = vadd.f32 %v3525, %v3934
        %v3947 = vadd.f32 %v3526, %v3937
        %v3948 = vadd.f32 %v3527, %v3939
        %v3949 = vld [vmem:[%s10] sm:$0x1]
        %v3951 = vperm.slane %v3949, 0
        %v3953 = vadd.f32 %v3941, %v3951
        %v3954 = vadd.f32 %v3942, %v3951
        %v3955 = vadd.f32 %v3943, %v3951
        %v3956 = vadd.f32 %v3944, %v3951
        %v3957 = vadd.f32 %v3945, %v3951
        %v3958 = vadd.f32 %v3946, %v3951
        %v3959 = vadd.f32 %v3947, %v3951
        %v3960 = vadd.f32 %v3948, %v3951
        %v3961 = vadd.f32 %v2193, %v3953
        %v3962 = vadd.f32 %v2194, %v3954
        %v3963 = vadd.f32 %v2195, %v3955
        %v3964 = vadd.f32 %v2196, %v3956
        %v3965 = vadd.f32 %v2197, %v3957
        %v3966 = vadd.f32 %v2198, %v3958
        %v3967 = vadd.f32 %v2199, %v3959
        %v3968 = vadd.f32 %v2200, %v3960
        %v3969 = vld [vmem:[%s11] sm:$0x1]
        %v3970 = vld [vmem:[%s12] sm:$0x1]
        %3971 = vadd.xlane.f32.xlu0 %v3961
        %v3972 = vpop.xlane.xlu0 %3971
        %3973 = vadd.xlane.f32.xlu0 %v3962
        %v3974 = vpop.xlane.xlu0 %3973
        %3975 = vadd.xlane.f32.xlu0 %v3963
        %v3976 = vpop.xlane.xlu0 %3975
        %3977 = vadd.xlane.f32.xlu0 %v3964
        %v3978 = vpop.xlane.xlu0 %3977
        %3979 = vadd.xlane.f32.xlu0 %v3965
        %v3980 = vpop.xlane.xlu0 %3979
        %3981 = vadd.xlane.f32.xlu0 %v3966
        %v3982 = vpop.xlane.xlu0 %3981
        %3983 = vadd.xlane.f32.xlu0 %v3967
        %v3984 = vpop.xlane.xlu0 %3983
        %3985 = vadd.xlane.f32.xlu0 %v3968
        %v3986 = vpop.xlane.xlu0 %3985
        %v3987 = vrcp.pop 128.0
        %v3988 = vmul.f32 128.0, %v3987
        %v3989 = vsub.f32 1.0, %v3988
        %v3990 = vmul.f32 %v3987, %v3989
        %v3991 = vadd.f32 %v3987, %v3990
        %vm3992 = vweird.f32 %v3987
        %v3993 = vsel %vm3992, %v3987, %v3991
        %v3994 = vmul.f32 %v3972, %v3993
        %v3995 = vmul.f32 %v3974, %v3993
        %v3996 = vmul.f32 %v3976, %v3993
        %v3997 = vmul.f32 %v3978, %v3993
        %v3998 = vmul.f32 %v3980, %v3993
        %v3999 = vmul.f32 %v3982, %v3993
        %v4000 = vmul.f32 %v3984, %v3993
        %v4001 = vmul.f32 %v3986, %v3993
        %v4002 = vsub.f32 %v3961, %v3994
        %v4003 = vsub.f32 %v3962, %v3995
        %v4004 = vsub.f32 %v3963, %v3996
        %v4005 = vsub.f32 %v3964, %v3997
        %v4006 = vsub.f32 %v3965, %v3998
        %v4007 = vsub.f32 %v3966, %v3999
        %v4008 = vsub.f32 %v3967, %v4000
        %v4009 = vsub.f32 %v3968, %v4001
        %v4010 = vmul.f32 %v4002, %v4002
        %v4011 = vmul.f32 %v4003, %v4003
        %v4012 = vmul.f32 %v4004, %v4004
        %v4013 = vmul.f32 %v4005, %v4005
        %v4014 = vmul.f32 %v4006, %v4006
        %v4015 = vmul.f32 %v4007, %v4007
        %v4016 = vmul.f32 %v4008, %v4008
        %v4017 = vmul.f32 %v4009, %v4009
        %4018 = vadd.xlane.f32.xlu0 %v4010
        %v4019 = vpop.xlane.xlu0 %4018
        %4020 = vadd.xlane.f32.xlu0 %v4011
        %v4021 = vpop.xlane.xlu0 %4020
        %4022 = vadd.xlane.f32.xlu0 %v4012
        %v4023 = vpop.xlane.xlu0 %4022
        %4024 = vadd.xlane.f32.xlu0 %v4013
        %v4025 = vpop.xlane.xlu0 %4024
        %4026 = vadd.xlane.f32.xlu0 %v4014
        %v4027 = vpop.xlane.xlu0 %4026
        %4028 = vadd.xlane.f32.xlu0 %v4015
        %v4029 = vpop.xlane.xlu0 %4028
        %4030 = vadd.xlane.f32.xlu0 %v4016
        %v4031 = vpop.xlane.xlu0 %4030
        %4032 = vadd.xlane.f32.xlu0 %v4017
        %v4033 = vpop.xlane.xlu0 %4032
        %v4034 = vmul.f32 %v4019, 0.007874016
        %v4035 = vmul.f32 %v4021, 0.007874016
        %v4036 = vmul.f32 %v4023, 0.007874016
        %v4037 = vmul.f32 %v4025, 0.007874016
        %v4038 = vmul.f32 %v4027, 0.007874016
        %v4039 = vmul.f32 %v4029, 0.007874016
        %v4040 = vmul.f32 %v4031, 0.007874016
        %v4041 = vmul.f32 %v4033, 0.007874016
        %v4042 = vrsqrt.pop %v4034
        %v4043 = vmul.f32 %v4042, %v4034
        %v4044 = vmul.f32 %v4043, %v4042
        %v4045 = vmul.f32 0.5, %v4044
        %v4046 = vsub.f32 1.5, %v4045
        %v4047 = vmul.f32 %v4042, %v4046
        %v4048 = vmul.f32 %v4034, %v4047
        %vm4049 = vcmp.eq.f32.partialorder %v4034, inf
        %v4050 = vsel %vm4049, %v4034, %v4048
        %vm4051 = vcmp.eq.f32.partialorder %v4034, 0.0
        %v4052 = vand.u32 %v4034, 2147483648
        %v4053 = vsel %vm4051, %v4052, %v4050
        %v4054 = vrsqrt.pop %v4035
        %v4055 = vmul.f32 %v4054, %v4035
        %v4056 = vmul.f32 %v4055, %v4054
        %v4057 = vmul.f32 0.5, %v4056
        %v4058 = vsub.f32 1.5, %v4057
        %v4059 = vmul.f32 %v4054, %v4058
        %v4060 = vmul.f32 %v4035, %v4059
        %vm4061 = vcmp.eq.f32.partialorder %v4035, inf
        %v4062 = vsel %vm4061, %v4035, %v4060
        %vm4063 = vcmp.eq.f32.partialorder %v4035, 0.0
        %v4064 = vand.u32 %v4035, 2147483648
        %v4065 = vsel %vm4063, %v4064, %v4062
        %v4066 = vrsqrt.pop %v4036
        %v4067 = vmul.f32 %v4066, %v4036
        %v4068 = vmul.f32 %v4067, %v4066
        %v4069 = vmul.f32 0.5, %v4068
        %v4070 = vsub.f32 1.5, %v4069
        %v4071 = vmul.f32 %v4066, %v4070
        %v4072 = vmul.f32 %v4036, %v4071
        %vm4073 = vcmp.eq.f32.partialorder %v4036, inf
        %v4074 = vsel %vm4073, %v4036, %v4072
        %vm4075 = vcmp.eq.f32.partialorder %v4036, 0.0
        %v4076 = vand.u32 %v4036, 2147483648
        %v4077 = vsel %vm4075, %v4076, %v4074
        %v4078 = vrsqrt.pop %v4037
        %v4079 = vmul.f32 %v4078, %v4037
        %v4080 = vmul.f32 %v4079, %v4078
        %v4081 = vmul.f32 0.5, %v4080
        %v4082 = vsub.f32 1.5, %v4081
        %v4083 = vmul.f32 %v4078, %v4082
        %v4084 = vmul.f32 %v4037, %v4083
        %vm4085 = vcmp.eq.f32.partialorder %v4037, inf
        %v4086 = vsel %vm4085, %v4037, %v4084
        %vm4087 = vcmp.eq.f32.partialorder %v4037, 0.0
        %v4088 = vand.u32 %v4037, 2147483648
        %v4089 = vsel %vm4087, %v4088, %v4086
        %v4090 = vrsqrt.pop %v4038
        %v4091 = vmul.f32 %v4090, %v4038
        %v4092 = vmul.f32 %v4091, %v4090
        %v4093 = vmul.f32 0.5, %v4092
        %v4094 = vsub.f32 1.5, %v4093
        %v4095 = vmul.f32 %v4090, %v4094
        %v4096 = vmul.f32 %v4038, %v4095
        %vm4097 = vcmp.eq.f32.partialorder %v4038, inf
        %v4098 = vsel %vm4097, %v4038, %v4096
        %vm4099 = vcmp.eq.f32.partialorder %v4038, 0.0
        %v4100 = vand.u32 %v4038, 2147483648
        %v4101 = vsel %vm4099, %v4100, %v4098
        %v4102 = vrsqrt.pop %v4039
        %v4103 = vmul.f32 %v4102, %v4039
        %v4104 = vmul.f32 %v4103, %v4102
        %v4105 = vmul.f32 0.5, %v4104
        %v4106 = vsub.f32 1.5, %v4105
        %v4107 = vmul.f32 %v4102, %v4106
        %v4108 = vmul.f32 %v4039, %v4107
        %vm4109 = vcmp.eq.f32.partialorder %v4039, inf
        %v4110 = vsel %vm4109, %v4039, %v4108
        %vm4111 = vcmp.eq.f32.partialorder %v4039, 0.0
        %v4112 = vand.u32 %v4039, 2147483648
        %v4113 = vsel %vm4111, %v4112, %v4110
        %v4114 = vrsqrt.pop %v4040
        %v4115 = vmul.f32 %v4114, %v4040
        %v4116 = vmul.f32 %v4115, %v4114
        %v4117 = vmul.f32 0.5, %v4116
        %v4118 = vsub.f32 1.5, %v4117
        %v4119 = vmul.f32 %v4114, %v4118
        %v4120 = vmul.f32 %v4040, %v4119
        %vm4121 = vcmp.eq.f32.partialorder %v4040, inf
        %v4122 = vsel %vm4121, %v4040, %v4120
        %vm4123 = vcmp.eq.f32.partialorder %v4040, 0.0
        %v4124 = vand.u32 %v4040, 2147483648
        %v4125 = vsel %vm4123, %v4124, %v4122
        %v4126 = vrsqrt.pop %v4041
        %v4127 = vmul.f32 %v4126, %v4041
        %v4128 = vmul.f32 %v4127, %v4126
        %v4129 = vmul.f32 0.5, %v4128
        %v4130 = vsub.f32 1.5, %v4129
        %v4131 = vmul.f32 %v4126, %v4130
        %v4132 = vmul.f32 %v4041, %v4131
        %vm4133 = vcmp.eq.f32.partialorder %v4041, inf
        %v4134 = vsel %vm4133, %v4041, %v4132
        %vm4135 = vcmp.eq.f32.partialorder %v4041, 0.0
        %v4136 = vand.u32 %v4041, 2147483648
        %v4137 = vsel %vm4135, %v4136, %v4134
        %v4139 = vperm.slane %v3969, 0
        %v4141 = vmul.f32 %v4139, %v4002
        %v4142 = vmul.f32 %v4139, %v4003
        %v4143 = vmul.f32 %v4139, %v4004
        %v4144 = vmul.f32 %v4139, %v4005
        %v4145 = vmul.f32 %v4139, %v4006
        %v4146 = vmul.f32 %v4139, %v4007
        %v4147 = vmul.f32 %v4139, %v4008
        %v4148 = vmul.f32 %v4139, %v4009
        %v4149 = vadd.f32 %v4053, 1e-06
        %v4150 = vadd.f32 %v4065, 1e-06
        %v4151 = vadd.f32 %v4077, 1e-06
        %v4152 = vadd.f32 %v4089, 1e-06
        %v4153 = vadd.f32 %v4101, 1e-06
        %v4154 = vadd.f32 %v4113, 1e-06
        %v4155 = vadd.f32 %v4125, 1e-06
        %v4156 = vadd.f32 %v4137, 1e-06
        %v4157 = vrcp.pop %v4149
        %v4158 = vmul.f32 %v4149, %v4157
        %v4159 = vsub.f32 1.0, %v4158
        %v4160 = vmul.f32 %v4157, %v4159
        %v4161 = vadd.f32 %v4157, %v4160
        %vm4162 = vweird.f32 %v4149
        %vm4163 = vweird.f32 %v4157
        %vm4164 = vmor %vm4162, %vm4163
        %v4165 = vsel %vm4164, %v4157, %v4161
        %v4166 = vand.u32 2147483647, %v4149
        %vm4167 = vcmp.eq.f32.partialorder %v4166, 8.507059e+37
        %v4168 = vand.u32 %v4149, 2147483648
        %v4169 = vor.u32 1.1754944e-38, %v4168
        %v4170 = vsel %vm4167, %v4169, %v4165
        %v4171 = vmul.f32 %v4141, %v4170
        %v4172 = vrcp.pop %v4150
        %v4173 = vmul.f32 %v4150, %v4172
        %v4174 = vsub.f32 1.0, %v4173
        %v4175 = vmul.f32 %v4172, %v4174
        %v4176 = vadd.f32 %v4172, %v4175
        %vm4177 = vweird.f32 %v4150
        %vm4178 = vweird.f32 %v4172
        %vm4179 = vmor %vm4177, %vm4178
        %v4180 = vsel %vm4179, %v4172, %v4176
        %v4181 = vand.u32 2147483647, %v4150
        %vm4182 = vcmp.eq.f32.partialorder %v4181, 8.507059e+37
        %v4183 = vand.u32 %v4150, 2147483648
        %v4184 = vor.u32 1.1754944e-38, %v4183
        %v4185 = vsel %vm4182, %v4184, %v4180
        %v4186 = vmul.f32 %v4142, %v4185
        %v4187 = vrcp.pop %v4151
        %v4188 = vmul.f32 %v4151, %v4187
        %v4189 = vsub.f32 1.0, %v4188
        %v4190 = vmul.f32 %v4187, %v4189
        %v4191 = vadd.f32 %v4187, %v4190
        %vm4192 = vweird.f32 %v4151
        %vm4193 = vweird.f32 %v4187
        %vm4194 = vmor %vm4192, %vm4193
        %v4195 = vsel %vm4194, %v4187, %v4191
        %v4196 = vand.u32 2147483647, %v4151
        %vm4197 = vcmp.eq.f32.partialorder %v4196, 8.507059e+37
        %v4198 = vand.u32 %v4151, 2147483648
        %v4199 = vor.u32 1.1754944e-38, %v4198
        %v4200 = vsel %vm4197, %v4199, %v4195
        %v4201 = vmul.f32 %v4143, %v4200
        %v4202 = vrcp.pop %v4152
        %v4203 = vmul.f32 %v4152, %v4202
        %v4204 = vsub.f32 1.0, %v4203
        %v4205 = vmul.f32 %v4202, %v4204
        %v4206 = vadd.f32 %v4202, %v4205
        %vm4207 = vweird.f32 %v4152
        %vm4208 = vweird.f32 %v4202
        %vm4209 = vmor %vm4207, %vm4208
        %v4210 = vsel %vm4209, %v4202, %v4206
        %v4211 = vand.u32 2147483647, %v4152
        %vm4212 = vcmp.eq.f32.partialorder %v4211, 8.507059e+37
        %v4213 = vand.u32 %v4152, 2147483648
        %v4214 = vor.u32 1.1754944e-38, %v4213
        %v4215 = vsel %vm4212, %v4214, %v4210
        %v4216 = vmul.f32 %v4144, %v4215
        %v4217 = vrcp.pop %v4153
        %v4218 = vmul.f32 %v4153, %v4217
        %v4219 = vsub.f32 1.0, %v4218
        %v4220 = vmul.f32 %v4217, %v4219
        %v4221 = vadd.f32 %v4217, %v4220
        %vm4222 = vweird.f32 %v4153
        %vm4223 = vweird.f32 %v4217
        %vm4224 = vmor %vm4222, %vm4223
        %v4225 = vsel %vm4224, %v4217, %v4221
        %v4226 = vand.u32 2147483647, %v4153
        %vm4227 = vcmp.eq.f32.partialorder %v4226, 8.507059e+37
        %v4228 = vand.u32 %v4153, 2147483648
        %v4229 = vor.u32 1.1754944e-38, %v4228
        %v4230 = vsel %vm4227, %v4229, %v4225
        %v4231 = vmul.f32 %v4145, %v4230
        %v4232 = vrcp.pop %v4154
        %v4233 = vmul.f32 %v4154, %v4232
        %v4234 = vsub.f32 1.0, %v4233
        %v4235 = vmul.f32 %v4232, %v4234
        %v4236 = vadd.f32 %v4232, %v4235
        %vm4237 = vweird.f32 %v4154
        %vm4238 = vweird.f32 %v4232
        %vm4239 = vmor %vm4237, %vm4238
        %v4240 = vsel %vm4239, %v4232, %v4236
        %v4241 = vand.u32 2147483647, %v4154
        %vm4242 = vcmp.eq.f32.partialorder %v4241, 8.507059e+37
        %v4243 = vand.u32 %v4154, 2147483648
        %v4244 = vor.u32 1.1754944e-38, %v4243
        %v4245 = vsel %vm4242, %v4244, %v4240
        %v4246 = vmul.f32 %v4146, %v4245
        %v4247 = vrcp.pop %v4155
        %v4248 = vmul.f32 %v4155, %v4247
        %v4249 = vsub.f32 1.0, %v4248
        %v4250 = vmul.f32 %v4247, %v4249
        %v4251 = vadd.f32 %v4247, %v4250
        %vm4252 = vweird.f32 %v4155
        %vm4253 = vweird.f32 %v4247
        %vm4254 = vmor %vm4252, %vm4253
        %v4255 = vsel %vm4254, %v4247, %v4251
        %v4256 = vand.u32 2147483647, %v4155
        %vm4257 = vcmp.eq.f32.partialorder %v4256, 8.507059e+37
        %v4258 = vand.u32 %v4155, 2147483648
        %v4259 = vor.u32 1.1754944e-38, %v4258
        %v4260 = vsel %vm4257, %v4259, %v4255
        %v4261 = vmul.f32 %v4147, %v4260
        %v4262 = vrcp.pop %v4156
        %v4263 = vmul.f32 %v4156, %v4262
        %v4264 = vsub.f32 1.0, %v4263
        %v4265 = vmul.f32 %v4262, %v4264
        %v4266 = vadd.f32 %v4262, %v4265
        %vm4267 = vweird.f32 %v4156
        %vm4268 = vweird.f32 %v4262
        %vm4269 = vmor %vm4267, %vm4268
        %v4270 = vsel %vm4269, %v4262, %v4266
        %v4271 = vand.u32 2147483647, %v4156
        %vm4272 = vcmp.eq.f32.partialorder %v4271, 8.507059e+37
        %v4273 = vand.u32 %v4156, 2147483648
        %v4274 = vor.u32 1.1754944e-38, %v4273
        %v4275 = vsel %vm4272, %v4274, %v4270
        %v4276 = vmul.f32 %v4148, %v4275
        %v4278 = vperm.slane %v3970, 0
        %v4280 = vadd.f32 %v4171, %v4278
        %v4281 = vadd.f32 %v4186, %v4278
        %v4282 = vadd.f32 %v4201, %v4278
        %v4283 = vadd.f32 %v4216, %v4278
        %v4284 = vadd.f32 %v4231, %v4278
        %v4285 = vadd.f32 %v4246, %v4278
        %v4286 = vadd.f32 %v4261, %v4278
        %v4287 = vadd.f32 %v4276, %v4278
        %v4288 = vpack.c.bf16 %v4281, %v4280
        %v4289 = vpack.c.bf16 %v4283, %v4282
        %v4290 = vpack.c.bf16 %v4285, %v4284
        %v4291 = vpack.c.bf16 %v4287, %v4286
        %v4292 = vld [vmem:[#allocation16] sm:$0xf]
        %v4293 = vld [vmem:[#allocation16 + $0x8] sm:$0xf]
        %v4294 = vld [vmem:[#allocation16 + $0x10] sm:$0xf]
        %v4295 = vld [vmem:[#allocation16 + $0x18] sm:$0xf]
        %v4296 = vld [vmem:[#allocation16 + $0x20] sm:$0xf]
        %v4297 = vld [vmem:[#allocation16 + $0x28] sm:$0xf]
        %v4298 = vld [vmem:[#allocation16 + $0x30] sm:$0xf]
        %v4299 = vld [vmem:[#allocation16 + $0x38] sm:$0xf]
        %v4300 = vld [vmem:[#allocation16 + $0x40] sm:$0xf]
        %v4301 = vld [vmem:[#allocation16 + $0x48] sm:$0xf]
        %v4302 = vld [vmem:[#allocation16 + $0x50] sm:$0xf]
        %v4303 = vld [vmem:[#allocation16 + $0x58] sm:$0xf]
        %v4304 = vld [vmem:[#allocation16 + $0x60] sm:$0xf]
        %v4305 = vld [vmem:[#allocation16 + $0x68] sm:$0xf]
        %v4306 = vld [vmem:[#allocation16 + $0x70] sm:$0xf]
        %v4307 = vld [vmem:[#allocation16 + $0x78] sm:$0xf]
        %v4308 = vld [vmem:[%s16] sm:$0x1]
        %v4310 = vperm.slane %v4308, 0
        %v4328 = vunpack.c.l.b16 %v4292
        %v4329 = vunpack.c.l.b16 %v4293
        %v4330 = vunpack.c.l.b16 %v4294
        %v4331 = vunpack.c.l.b16 %v4295
        %v4332 = vunpack.c.l.b16 %v4296
        %v4333 = vunpack.c.l.b16 %v4297
        %v4334 = vunpack.c.l.b16 %v4298
        %v4335 = vunpack.c.l.b16 %v4299
        %v4336 = vunpack.c.l.b16 %v4300
        %v4337 = vunpack.c.l.b16 %v4301
        %v4338 = vunpack.c.l.b16 %v4302
        %v4339 = vunpack.c.l.b16 %v4303
        %v4340 = vunpack.c.l.b16 %v4304
        %v4341 = vunpack.c.l.b16 %v4305
        %v4342 = vunpack.c.l.b16 %v4306
        %v4343 = vunpack.c.l.b16 %v4307
        %v4344 = vpack.c.b16 %v4329, %v4328
        %v4345 = vpack.c.b16 %v4331, %v4330
        %v4346 = vpack.c.b16 %v4333, %v4332
        %v4347 = vpack.c.b16 %v4335, %v4334
        %v4348 = vpack.c.b16 %v4337, %v4336
        %v4349 = vpack.c.b16 %v4339, %v4338
        %v4350 = vpack.c.b16 %v4341, %v4340
        %v4351 = vpack.c.b16 %v4343, %v4342
        %4360 = vmatpush.bf16.msra.mxu0 %v4351
        %4361 = vmatpush.bf16.msra.mxu0 %v4350
        %4362 = vmatpush.bf16.msra.mxu0 %v4349
        %4363 = vmatpush.bf16.msra.mxu0 %v4348
        %4364 = vmatpush.bf16.msra.mxu0 %v4347
        %4365 = vmatpush.bf16.msra.mxu0 %v4346
        %4366 = vmatpush.bf16.msra.mxu0 %v4345
        %4367 = vmatpush.bf16.msra.mxu0 %v4344
        %4368 = vmatmul.bf16.gmra.mxu0 %v4288
        %v4369 = vpop.f32.mrf.mxu0
        %v4370 = vadd.f32 %v4310, %v4369
        %v4371 = vpop.f32.mrf.mxu0
        %v4372 = vadd.f32 %v4310, %v4371
        %4373 = vmatmul.bf16.gmra.mxu0 %v4289
        %v4374 = vpop.f32.mrf.mxu0
        %v4375 = vadd.f32 %v4310, %v4374
        %v4376 = vpop.f32.mrf.mxu0
        %v4377 = vadd.f32 %v4310, %v4376
        %4378 = vmatmul.bf16.gmra.mxu0 %v4290
        %v4379 = vpop.f32.mrf.mxu0
        %v4380 = vadd.f32 %v4310, %v4379
        %v4381 = vpop.f32.mrf.mxu0
        %v4382 = vadd.f32 %v4310, %v4381
        %4383 = vmatmul.bf16.gmra.mxu0 %v4291
        %v4384 = vpop.f32.mrf.mxu0
        %v4385 = vadd.f32 %v4310, %v4384
        %v4386 = vpop.f32.mrf.mxu0
        %v4387 = vadd.f32 %v4310, %v4386
        %4388 = vdwg.mxu0
        %v4389 = vmax.f32 %v4370, 0.0
        %v4390 = vmax.f32 %v4372, 0.0
        %v4391 = vmax.f32 %v4375, 0.0
        %v4392 = vmax.f32 %v4377, 0.0
        %v4393 = vmax.f32 %v4380, 0.0
        %v4394 = vmax.f32 %v4382, 0.0
        %v4395 = vmax.f32 %v4385, 0.0
        %v4396 = vmax.f32 %v4387, 0.0
        %v4397 = vpack.c.bf16 %v4390, %v4389
        %v4398 = vpack.c.bf16 %v4392, %v4391
        %v4399 = vpack.c.bf16 %v4394, %v4393
        %v4400 = vpack.c.bf16 %v4396, %v4395
        %v4401 = vld [vmem:[#allocation18] sm:$0xf]
        %v4402 = vld [vmem:[#allocation18 + $0x4] sm:$0xf]
        %v4403 = vld [vmem:[#allocation18 + $0x8] sm:$0xf]
        %v4404 = vld [vmem:[#allocation18 + $0xc] sm:$0xf]
        %v4405 = vld [vmem:[#allocation18 + $0x10] sm:$0xf]
        %v4406 = vld [vmem:[#allocation18 + $0x14] sm:$0xf]
        %v4407 = vld [vmem:[#allocation18 + $0x18] sm:$0xf]
        %v4408 = vld [vmem:[#allocation18 + $0x1c] sm:$0xf]
        %v4409 = vld [vmem:[#allocation18 + $0x20] sm:$0xf]
        %v4410 = vld [vmem:[#allocation18 + $0x24] sm:$0xf]
        %v4411 = vld [vmem:[#allocation18 + $0x28] sm:$0xf]
        %v4412 = vld [vmem:[#allocation18 + $0x2c] sm:$0xf]
        %v4413 = vld [vmem:[#allocation18 + $0x30] sm:$0xf]
        %v4414 = vld [vmem:[#allocation18 + $0x34] sm:$0xf]
        %v4415 = vld [vmem:[#allocation18 + $0x38] sm:$0xf]
        %v4416 = vld [vmem:[#allocation18 + $0x3c] sm:$0xf]
        %s4417 = scalar_lea.vmem [#allocation16], 4
        %v4418 = vld [vmem:[%s4417] sm:$0xf]
        %v4419 = vld [vmem:[%s4417 + $0x8] sm:$0xf]
        %v4420 = vld [vmem:[%s4417 + $0x10] sm:$0xf]
        %v4421 = vld [vmem:[%s4417 + $0x18] sm:$0xf]
        %v4422 = vld [vmem:[%s4417 + $0x20] sm:$0xf]
        %v4423 = vld [vmem:[%s4417 + $0x28] sm:$0xf]
        %v4424 = vld [vmem:[%s4417 + $0x30] sm:$0xf]
        %v4425 = vld [vmem:[%s4417 + $0x38] sm:$0xf]
        %v4426 = vld [vmem:[%s4417 + $0x40] sm:$0xf]
        %v4427 = vld [vmem:[%s4417 + $0x48] sm:$0xf]
        %v4428 = vld [vmem:[%s4417 + $0x50] sm:$0xf]
        %v4429 = vld [vmem:[%s4417 + $0x58] sm:$0xf]
        %v4430 = vld [vmem:[%s4417 + $0x60] sm:$0xf]
        %v4431 = vld [vmem:[%s4417 + $0x68] sm:$0xf]
        %v4432 = vld [vmem:[%s4417 + $0x70] sm:$0xf]
        %v4433 = vld [vmem:[%s4417 + $0x78] sm:$0xf]
        %s4434 = scalar_lea.vmem %s16, 1
        %v4435 = vld [vmem:[%s4434] sm:$0x1]
        %v4437 = vperm.slane %v4435, 0
        %v4455 = vunpack.c.l.b16 %v4418
        %v4456 = vunpack.c.l.b16 %v4419
        %v4457 = vunpack.c.l.b16 %v4420
        %v4458 = vunpack.c.l.b16 %v4421
        %v4459 = vunpack.c.l.b16 %v4422
        %v4460 = vunpack.c.l.b16 %v4423
        %v4461 = vunpack.c.l.b16 %v4424
        %v4462 = vunpack.c.l.b16 %v4425
        %v4463 = vunpack.c.l.b16 %v4426
        %v4464 = vunpack.c.l.b16 %v4427
        %v4465 = vunpack.c.l.b16 %v4428
        %v4466 = vunpack.c.l.b16 %v4429
        %v4467 = vunpack.c.l.b16 %v4430
        %v4468 = vunpack.c.l.b16 %v4431
        %v4469 = vunpack.c.l.b16 %v4432
        %v4470 = vunpack.c.l.b16 %v4433
        %v4471 = vpack.c.b16 %v4456, %v4455
        %v4472 = vpack.c.b16 %v4458, %v4457
        %v4473 = vpack.c.b16 %v4460, %v4459
        %v4474 = vpack.c.b16 %v4462, %v4461
        %v4475 = vpack.c.b16 %v4464, %v4463
        %v4476 = vpack.c.b16 %v4466, %v4465
        %v4477 = vpack.c.b16 %v4468, %v4467
        %v4478 = vpack.c.b16 %v4470, %v4469
        %4487 = vmatpush.bf16.msra.mxu0 %v4478
        %4488 = vmatpush.bf16.msra.mxu0 %v4477
        %4489 = vmatpush.bf16.msra.mxu0 %v4476
        %4490 = vmatpush.bf16.msra.mxu0 %v4475
        %4491 = vmatpush.bf16.msra.mxu0 %v4474
        %4492 = vmatpush.bf16.msra.mxu0 %v4473
        %4493 = vmatpush.bf16.msra.mxu0 %v4472
        %4494 = vmatpush.bf16.msra.mxu0 %v4471
        %4495 = vmatmul.bf16.gmra.mxu0 %v4288
        %v4496 = vpop.f32.mrf.mxu0
        %v4497 = vadd.f32 %v4437, %v4496
        %v4498 = vpop.f32.mrf.mxu0
        %v4499 = vadd.f32 %v4437, %v4498
        %4500 = vmatmul.bf16.gmra.mxu0 %v4289
        %v4501 = vpop.f32.mrf.mxu0
        %v4502 = vadd.f32 %v4437, %v4501
        %v4503 = vpop.f32.mrf.mxu0
        %v4504 = vadd.f32 %v4437, %v4503
        %4505 = vmatmul.bf16.gmra.mxu0 %v4290
        %v4506 = vpop.f32.mrf.mxu0
        %v4507 = vadd.f32 %v4437, %v4506
        %v4508 = vpop.f32.mrf.mxu0
        %v4509 = vadd.f32 %v4437, %v4508
        %4510 = vmatmul.bf16.gmra.mxu0 %v4291
        %v4511 = vpop.f32.mrf.mxu0
        %v4512 = vadd.f32 %v4437, %v4511
        %v4513 = vpop.f32.mrf.mxu0
        %v4514 = vadd.f32 %v4437, %v4513
        %4515 = vdwg.mxu0
        %v4516 = vmax.f32 %v4497, 0.0
        %v4517 = vmax.f32 %v4499, 0.0
        %v4518 = vmax.f32 %v4502, 0.0
        %v4519 = vmax.f32 %v4504, 0.0
        %v4520 = vmax.f32 %v4507, 0.0
        %v4521 = vmax.f32 %v4509, 0.0
        %v4522 = vmax.f32 %v4512, 0.0
        %v4523 = vmax.f32 %v4514, 0.0
        %v4524 = vpack.c.bf16 %v4517, %v4516
        %v4525 = vpack.c.bf16 %v4519, %v4518
        %v4526 = vpack.c.bf16 %v4521, %v4520
        %v4527 = vpack.c.bf16 %v4523, %v4522
        %s4528 = scalar_lea.vmem [#allocation18], 64
        %v4529 = vld [vmem:[%s4528] sm:$0xf]
        %v4530 = vld [vmem:[%s4528 + $0x4] sm:$0xf]
        %v4531 = vld [vmem:[%s4528 + $0x8] sm:$0xf]
        %v4532 = vld [vmem:[%s4528 + $0xc] sm:$0xf]
        %v4533 = vld [vmem:[%s4528 + $0x10] sm:$0xf]
        %v4534 = vld [vmem:[%s4528 + $0x14] sm:$0xf]
        %v4535 = vld [vmem:[%s4528 + $0x18] sm:$0xf]
        %v4536 = vld [vmem:[%s4528 + $0x1c] sm:$0xf]
        %v4537 = vld [vmem:[%s4528 + $0x20] sm:$0xf]
        %v4538 = vld [vmem:[%s4528 + $0x24] sm:$0xf]
        %v4539 = vld [vmem:[%s4528 + $0x28] sm:$0xf]
        %v4540 = vld [vmem:[%s4528 + $0x2c] sm:$0xf]
        %v4541 = vld [vmem:[%s4528 + $0x30] sm:$0xf]
        %v4542 = vld [vmem:[%s4528 + $0x34] sm:$0xf]
        %v4543 = vld [vmem:[%s4528 + $0x38] sm:$0xf]
        %v4544 = vld [vmem:[%s4528 + $0x3c] sm:$0xf]
        %v4561 = vunpack.c.l.b16 %v4529
        %v4562 = vunpack.c.l.b16 %v4530
        %v4563 = vunpack.c.l.b16 %v4531
        %v4564 = vunpack.c.l.b16 %v4532
        %v4565 = vunpack.c.l.b16 %v4533
        %v4566 = vunpack.c.l.b16 %v4534
        %v4567 = vunpack.c.l.b16 %v4535
        %v4568 = vunpack.c.l.b16 %v4536
        %v4569 = vunpack.c.l.b16 %v4537
        %v4570 = vunpack.c.l.b16 %v4538
        %v4571 = vunpack.c.l.b16 %v4539
        %v4572 = vunpack.c.l.b16 %v4540
        %v4573 = vunpack.c.l.b16 %v4541
        %v4574 = vunpack.c.l.b16 %v4542
        %v4575 = vunpack.c.l.b16 %v4543
        %v4576 = vunpack.c.l.b16 %v4544
        %v4577 = vpack.c.b16 %v4562, %v4561
        %v4578 = vpack.c.b16 %v4564, %v4563
        %v4579 = vpack.c.b16 %v4566, %v4565
        %v4580 = vpack.c.b16 %v4568, %v4567
        %v4581 = vpack.c.b16 %v4570, %v4569
        %v4582 = vpack.c.b16 %v4572, %v4571
        %v4583 = vpack.c.b16 %v4574, %v4573
        %v4584 = vpack.c.b16 %v4576, %v4575
        %4593 = vmatpush.bf16.msra.mxu0 %v4584
        %4594 = vmatpush.bf16.msra.mxu0 %v4583
        %4595 = vmatpush.bf16.msra.mxu0 %v4582
        %4596 = vmatpush.bf16.msra.mxu0 %v4581
        %4597 = vmatpush.bf16.msra.mxu0 %v4580
        %4598 = vmatpush.bf16.msra.mxu0 %v4579
        %4599 = vmatpush.bf16.msra.mxu0 %v4578
        %4600 = vmatpush.bf16.msra.mxu0 %v4577
        %4601 = vmatmul.bf16.gmra.mxu0 %v4524
        %v4602 = vpop.f32.mrf.mxu0
        %v4603 = vadd.f32 0.0, %v4602
        %v4604 = vpop.f32.mrf.mxu0
        %v4605 = vadd.f32 0.0, %v4604
        %4606 = vmatmul.bf16.gmra.mxu0 %v4525
        %v4607 = vpop.f32.mrf.mxu0
        %v4608 = vadd.f32 0.0, %v4607
        %v4609 = vpop.f32.mrf.mxu0
        %v4610 = vadd.f32 0.0, %v4609
        %4611 = vmatmul.bf16.gmra.mxu0 %v4526
        %v4612 = vpop.f32.mrf.mxu0
        %v4613 = vadd.f32 0.0, %v4612
        %v4614 = vpop.f32.mrf.mxu0
        %v4615 = vadd.f32 0.0, %v4614
        %4616 = vmatmul.bf16.gmra.mxu0 %v4527
        %v4617 = vpop.f32.mrf.mxu0
        %v4618 = vadd.f32 0.0, %v4617
        %v4619 = vpop.f32.mrf.mxu0
        %v4620 = vadd.f32 0.0, %v4619
        %4621 = vdwg.mxu0
        %v4638 = vunpack.c.l.b16 %v4401
        %v4639 = vunpack.c.l.b16 %v4402
        %v4640 = vunpack.c.l.b16 %v4403
        %v4641 = vunpack.c.l.b16 %v4404
        %v4642 = vunpack.c.l.b16 %v4405
        %v4643 = vunpack.c.l.b16 %v4406
        %v4644 = vunpack.c.l.b16 %v4407
        %v4645 = vunpack.c.l.b16 %v4408
        %v4646 = vunpack.c.l.b16 %v4409
        %v4647 = vunpack.c.l.b16 %v4410
        %v4648 = vunpack.c.l.b16 %v4411
        %v4649 = vunpack.c.l.b16 %v4412
        %v4650 = vunpack.c.l.b16 %v4413
        %v4651 = vunpack.c.l.b16 %v4414
        %v4652 = vunpack.c.l.b16 %v4415
        %v4653 = vunpack.c.l.b16 %v4416
        %v4654 = vpack.c.b16 %v4639, %v4638
        %v4655 = vpack.c.b16 %v4641, %v4640
        %v4656 = vpack.c.b16 %v4643, %v4642
        %v4657 = vpack.c.b16 %v4645, %v4644
        %v4658 = vpack.c.b16 %v4647, %v4646
        %v4659 = vpack.c.b16 %v4649, %v4648
        %v4660 = vpack.c.b16 %v4651, %v4650
        %v4661 = vpack.c.b16 %v4653, %v4652
        %4670 = vmatpush.bf16.msra.mxu0 %v4661
        %4671 = vmatpush.bf16.msra.mxu0 %v4660
        %4672 = vmatpush.bf16.msra.mxu0 %v4659
        %4673 = vmatpush.bf16.msra.mxu0 %v4658
        %4674 = vmatpush.bf16.msra.mxu0 %v4657
        %4675 = vmatpush.bf16.msra.mxu0 %v4656
        %4676 = vmatpush.bf16.msra.mxu0 %v4655
        %4677 = vmatpush.bf16.msra.mxu0 %v4654
        %4678 = vmatmul.bf16.gmra.mxu0 %v4397
        %v4679 = vpop.f32.mrf.mxu0
        %v4680 = vadd.f32 %v4603, %v4679
        %v4681 = vpop.f32.mrf.mxu0
        %v4682 = vadd.f32 %v4605, %v4681
        %4683 = vmatmul.bf16.gmra.mxu0 %v4398
        %v4684 = vpop.f32.mrf.mxu0
        %v4685 = vadd.f32 %v4608, %v4684
        %v4686 = vpop.f32.mrf.mxu0
        %v4687 = vadd.f32 %v4610, %v4686
        %4688 = vmatmul.bf16.gmra.mxu0 %v4399
        %v4689 = vpop.f32.mrf.mxu0
        %v4690 = vadd.f32 %v4613, %v4689
        %v4691 = vpop.f32.mrf.mxu0
        %v4692 = vadd.f32 %v4615, %v4691
        %4693 = vmatmul.bf16.gmra.mxu0 %v4400
        %v4694 = vpop.f32.mrf.mxu0
        %v4695 = vadd.f32 %v4618, %v4694
        %v4696 = vpop.f32.mrf.mxu0
        %v4697 = vadd.f32 %v4620, %v4696
        %4698 = vdwg.mxu0
        %v4699 = vld [vmem:[%s18] sm:$0x1]
        %v4701 = vperm.slane %v4699, 0
        %v4703 = vadd.f32 %v4680, %v4701
        %v4704 = vadd.f32 %v4682, %v4701
        %v4705 = vadd.f32 %v4685, %v4701
        %v4706 = vadd.f32 %v4687, %v4701
        %v4707 = vadd.f32 %v4690, %v4701
        %v4708 = vadd.f32 %v4692, %v4701
        %v4709 = vadd.f32 %v4695, %v4701
        %v4710 = vadd.f32 %v4697, %v4701
        %v4711 = vadd.f32 %v4280, %v4703
        %v4712 = vadd.f32 %v4281, %v4704
        %v4713 = vadd.f32 %v4282, %v4705
        %v4714 = vadd.f32 %v4283, %v4706
        %v4715 = vadd.f32 %v4284, %v4707
        %v4716 = vadd.f32 %v4285, %v4708
        %v4717 = vadd.f32 %v4286, %v4709
        %v4718 = vadd.f32 %v4287, %v4710
        %v4719 = vld [vmem:[%s13] sm:$0x1]
        %v4720 = vld [vmem:[%s14] sm:$0x1]
        %4721 = vadd.xlane.f32.xlu0 %v4711
        %v4722 = vpop.xlane.xlu0 %4721
        %4723 = vadd.xlane.f32.xlu0 %v4712
        %v4724 = vpop.xlane.xlu0 %4723
        %4725 = vadd.xlane.f32.xlu0 %v4713
        %v4726 = vpop.xlane.xlu0 %4725
        %4727 = vadd.xlane.f32.xlu0 %v4714
        %v4728 = vpop.xlane.xlu0 %4727
        %4729 = vadd.xlane.f32.xlu0 %v4715
        %v4730 = vpop.xlane.xlu0 %4729
        %4731 = vadd.xlane.f32.xlu0 %v4716
        %v4732 = vpop.xlane.xlu0 %4731
        %4733 = vadd.xlane.f32.xlu0 %v4717
        %v4734 = vpop.xlane.xlu0 %4733
        %4735 = vadd.xlane.f32.xlu0 %v4718
        %v4736 = vpop.xlane.xlu0 %4735
        %v4737 = vmul.f32 %v4722, %v3993
        %v4738 = vmul.f32 %v4724, %v3993
        %v4739 = vmul.f32 %v4726, %v3993
        %v4740 = vmul.f32 %v4728, %v3993
        %v4741 = vmul.f32 %v4730, %v3993
        %v4742 = vmul.f32 %v4732, %v3993
        %v4743 = vmul.f32 %v4734, %v3993
        %v4744 = vmul.f32 %v4736, %v3993
        %v4745 = vsub.f32 %v4711, %v4737
        %v4746 = vsub.f32 %v4712, %v4738
        %v4747 = vsub.f32 %v4713, %v4739
        %v4748 = vsub.f32 %v4714, %v4740
        %v4749 = vsub.f32 %v4715, %v4741
        %v4750 = vsub.f32 %v4716, %v4742
        %v4751 = vsub.f32 %v4717, %v4743
        %v4752 = vsub.f32 %v4718, %v4744
        %v4753 = vmul.f32 %v4745, %v4745
        %v4754 = vmul.f32 %v4746, %v4746
        %v4755 = vmul.f32 %v4747, %v4747
        %v4756 = vmul.f32 %v4748, %v4748
        %v4757 = vmul.f32 %v4749, %v4749
        %v4758 = vmul.f32 %v4750, %v4750
        %v4759 = vmul.f32 %v4751, %v4751
        %v4760 = vmul.f32 %v4752, %v4752
        %4761 = vadd.xlane.f32.xlu0 %v4753
        %v4762 = vpop.xlane.xlu0 %4761
        %4763 = vadd.xlane.f32.xlu0 %v4754
        %v4764 = vpop.xlane.xlu0 %4763
        %4765 = vadd.xlane.f32.xlu0 %v4755
        %v4766 = vpop.xlane.xlu0 %4765
        %4767 = vadd.xlane.f32.xlu0 %v4756
        %v4768 = vpop.xlane.xlu0 %4767
        %4769 = vadd.xlane.f32.xlu0 %v4757
        %v4770 = vpop.xlane.xlu0 %4769
        %4771 = vadd.xlane.f32.xlu0 %v4758
        %v4772 = vpop.xlane.xlu0 %4771
        %4773 = vadd.xlane.f32.xlu0 %v4759
        %v4774 = vpop.xlane.xlu0 %4773
        %4775 = vadd.xlane.f32.xlu0 %v4760
        %v4776 = vpop.xlane.xlu0 %4775
        %v4777 = vmul.f32 %v4762, 0.007874016
        %v4778 = vmul.f32 %v4764, 0.007874016
        %v4779 = vmul.f32 %v4766, 0.007874016
        %v4780 = vmul.f32 %v4768, 0.007874016
        %v4781 = vmul.f32 %v4770, 0.007874016
        %v4782 = vmul.f32 %v4772, 0.007874016
        %v4783 = vmul.f32 %v4774, 0.007874016
        %v4784 = vmul.f32 %v4776, 0.007874016
        %v4785 = vrsqrt.pop %v4777
        %v4786 = vmul.f32 %v4785, %v4777
        %v4787 = vmul.f32 %v4786, %v4785
        %v4788 = vmul.f32 0.5, %v4787
        %v4789 = vsub.f32 1.5, %v4788
        %v4790 = vmul.f32 %v4785, %v4789
        %v4791 = vmul.f32 %v4777, %v4790
        %vm4792 = vcmp.eq.f32.partialorder %v4777, inf
        %v4793 = vsel %vm4792, %v4777, %v4791
        %vm4794 = vcmp.eq.f32.partialorder %v4777, 0.0
        %v4795 = vand.u32 %v4777, 2147483648
        %v4796 = vsel %vm4794, %v4795, %v4793
        %v4797 = vrsqrt.pop %v4778
        %v4798 = vmul.f32 %v4797, %v4778
        %v4799 = vmul.f32 %v4798, %v4797
        %v4800 = vmul.f32 0.5, %v4799
        %v4801 = vsub.f32 1.5, %v4800
        %v4802 = vmul.f32 %v4797, %v4801
        %v4803 = vmul.f32 %v4778, %v4802
        %vm4804 = vcmp.eq.f32.partialorder %v4778, inf
        %v4805 = vsel %vm4804, %v4778, %v4803
        %vm4806 = vcmp.eq.f32.partialorder %v4778, 0.0
        %v4807 = vand.u32 %v4778, 2147483648
        %v4808 = vsel %vm4806, %v4807, %v4805
        %v4809 = vrsqrt.pop %v4779
        %v4810 = vmul.f32 %v4809, %v4779
        %v4811 = vmul.f32 %v4810, %v4809
        %v4812 = vmul.f32 0.5, %v4811
        %v4813 = vsub.f32 1.5, %v4812
        %v4814 = vmul.f32 %v4809, %v4813
        %v4815 = vmul.f32 %v4779, %v4814
        %vm4816 = vcmp.eq.f32.partialorder %v4779, inf
        %v4817 = vsel %vm4816, %v4779, %v4815
        %vm4818 = vcmp.eq.f32.partialorder %v4779, 0.0
        %v4819 = vand.u32 %v4779, 2147483648
        %v4820 = vsel %vm4818, %v4819, %v4817
        %v4821 = vrsqrt.pop %v4780
        %v4822 = vmul.f32 %v4821, %v4780
        %v4823 = vmul.f32 %v4822, %v4821
        %v4824 = vmul.f32 0.5, %v4823
        %v4825 = vsub.f32 1.5, %v4824
        %v4826 = vmul.f32 %v4821, %v4825
        %v4827 = vmul.f32 %v4780, %v4826
        %vm4828 = vcmp.eq.f32.partialorder %v4780, inf
        %v4829 = vsel %vm4828, %v4780, %v4827
        %vm4830 = vcmp.eq.f32.partialorder %v4780, 0.0
        %v4831 = vand.u32 %v4780, 2147483648
        %v4832 = vsel %vm4830, %v4831, %v4829
        %v4833 = vrsqrt.pop %v4781
        %v4834 = vmul.f32 %v4833, %v4781
        %v4835 = vmul.f32 %v4834, %v4833
        %v4836 = vmul.f32 0.5, %v4835
        %v4837 = vsub.f32 1.5, %v4836
        %v4838 = vmul.f32 %v4833, %v4837
        %v4839 = vmul.f32 %v4781, %v4838
        %vm4840 = vcmp.eq.f32.partialorder %v4781, inf
        %v4841 = vsel %vm4840, %v4781, %v4839
        %vm4842 = vcmp.eq.f32.partialorder %v4781, 0.0
        %v4843 = vand.u32 %v4781, 2147483648
        %v4844 = vsel %vm4842, %v4843, %v4841
        %v4845 = vrsqrt.pop %v4782
        %v4846 = vmul.f32 %v4845, %v4782
        %v4847 = vmul.f32 %v4846, %v4845
        %v4848 = vmul.f32 0.5, %v4847
        %v4849 = vsub.f32 1.5, %v4848
        %v4850 = vmul.f32 %v4845, %v4849
        %v4851 = vmul.f32 %v4782, %v4850
        %vm4852 = vcmp.eq.f32.partialorder %v4782, inf
        %v4853 = vsel %vm4852, %v4782, %v4851
        %vm4854 = vcmp.eq.f32.partialorder %v4782, 0.0
        %v4855 = vand.u32 %v4782, 2147483648
        %v4856 = vsel %vm4854, %v4855, %v4853
        %v4857 = vrsqrt.pop %v4783
        %v4858 = vmul.f32 %v4857, %v4783
        %v4859 = vmul.f32 %v4858, %v4857
        %v4860 = vmul.f32 0.5, %v4859
        %v4861 = vsub.f32 1.5, %v4860
        %v4862 = vmul.f32 %v4857, %v4861
        %v4863 = vmul.f32 %v4783, %v4862
        %vm4864 = vcmp.eq.f32.partialorder %v4783, inf
        %v4865 = vsel %vm4864, %v4783, %v4863
        %vm4866 = vcmp.eq.f32.partialorder %v4783, 0.0
        %v4867 = vand.u32 %v4783, 2147483648
        %v4868 = vsel %vm4866, %v4867, %v4865
        %v4869 = vrsqrt.pop %v4784
        %v4870 = vmul.f32 %v4869, %v4784
        %v4871 = vmul.f32 %v4870, %v4869
        %v4872 = vmul.f32 0.5, %v4871
        %v4873 = vsub.f32 1.5, %v4872
        %v4874 = vmul.f32 %v4869, %v4873
        %v4875 = vmul.f32 %v4784, %v4874
        %vm4876 = vcmp.eq.f32.partialorder %v4784, inf
        %v4877 = vsel %vm4876, %v4784, %v4875
        %vm4878 = vcmp.eq.f32.partialorder %v4784, 0.0
        %v4879 = vand.u32 %v4784, 2147483648
        %v4880 = vsel %vm4878, %v4879, %v4877
        %v4882 = vperm.slane %v4719, 0
        %v4884 = vmul.f32 %v4882, %v4745
        %v4885 = vmul.f32 %v4882, %v4746
        %v4886 = vmul.f32 %v4882, %v4747
        %v4887 = vmul.f32 %v4882, %v4748
        %v4888 = vmul.f32 %v4882, %v4749
        %v4889 = vmul.f32 %v4882, %v4750
        %v4890 = vmul.f32 %v4882, %v4751
        %v4891 = vmul.f32 %v4882, %v4752
        %v4892 = vadd.f32 %v4796, 1e-06
        %v4893 = vadd.f32 %v4808, 1e-06
        %v4894 = vadd.f32 %v4820, 1e-06
        %v4895 = vadd.f32 %v4832, 1e-06
        %v4896 = vadd.f32 %v4844, 1e-06
        %v4897 = vadd.f32 %v4856, 1e-06
        %v4898 = vadd.f32 %v4868, 1e-06
        %v4899 = vadd.f32 %v4880, 1e-06
        %v4900 = vrcp.pop %v4892
        %v4901 = vmul.f32 %v4892, %v4900
        %v4902 = vsub.f32 1.0, %v4901
        %v4903 = vmul.f32 %v4900, %v4902
        %v4904 = vadd.f32 %v4900, %v4903
        %vm4905 = vweird.f32 %v4892
        %vm4906 = vweird.f32 %v4900
        %vm4907 = vmor %vm4905, %vm4906
        %v4908 = vsel %vm4907, %v4900, %v4904
        %v4909 = vand.u32 2147483647, %v4892
        %vm4910 = vcmp.eq.f32.partialorder %v4909, 8.507059e+37
        %v4911 = vand.u32 %v4892, 2147483648
        %v4912 = vor.u32 1.1754944e-38, %v4911
        %v4913 = vsel %vm4910, %v4912, %v4908
        %v4914 = vmul.f32 %v4884, %v4913
        %v4915 = vrcp.pop %v4893
        %v4916 = vmul.f32 %v4893, %v4915
        %v4917 = vsub.f32 1.0, %v4916
        %v4918 = vmul.f32 %v4915, %v4917
        %v4919 = vadd.f32 %v4915, %v4918
        %vm4920 = vweird.f32 %v4893
        %vm4921 = vweird.f32 %v4915
        %vm4922 = vmor %vm4920, %vm4921
        %v4923 = vsel %vm4922, %v4915, %v4919
        %v4924 = vand.u32 2147483647, %v4893
        %vm4925 = vcmp.eq.f32.partialorder %v4924, 8.507059e+37
        %v4926 = vand.u32 %v4893, 2147483648
        %v4927 = vor.u32 1.1754944e-38, %v4926
        %v4928 = vsel %vm4925, %v4927, %v4923
        %v4929 = vmul.f32 %v4885, %v4928
        %v4930 = vrcp.pop %v4894
        %v4931 = vmul.f32 %v4894, %v4930
        %v4932 = vsub.f32 1.0, %v4931
        %v4933 = vmul.f32 %v4930, %v4932
        %v4934 = vadd.f32 %v4930, %v4933
        %vm4935 = vweird.f32 %v4894
        %vm4936 = vweird.f32 %v4930
        %vm4937 = vmor %vm4935, %vm4936
        %v4938 = vsel %vm4937, %v4930, %v4934
        %v4939 = vand.u32 2147483647, %v4894
        %vm4940 = vcmp.eq.f32.partialorder %v4939, 8.507059e+37
        %v4941 = vand.u32 %v4894, 2147483648
        %v4942 = vor.u32 1.1754944e-38, %v4941
        %v4943 = vsel %vm4940, %v4942, %v4938
        %v4944 = vmul.f32 %v4886, %v4943
        %v4945 = vrcp.pop %v4895
        %v4946 = vmul.f32 %v4895, %v4945
        %v4947 = vsub.f32 1.0, %v4946
        %v4948 = vmul.f32 %v4945, %v4947
        %v4949 = vadd.f32 %v4945, %v4948
        %vm4950 = vweird.f32 %v4895
        %vm4951 = vweird.f32 %v4945
        %vm4952 = vmor %vm4950, %vm4951
        %v4953 = vsel %vm4952, %v4945, %v4949
        %v4954 = vand.u32 2147483647, %v4895
        %vm4955 = vcmp.eq.f32.partialorder %v4954, 8.507059e+37
        %v4956 = vand.u32 %v4895, 2147483648
        %v4957 = vor.u32 1.1754944e-38, %v4956
        %v4958 = vsel %vm4955, %v4957, %v4953
        %v4959 = vmul.f32 %v4887, %v4958
        %v4960 = vrcp.pop %v4896
        %v4961 = vmul.f32 %v4896, %v4960
        %v4962 = vsub.f32 1.0, %v4961
        %v4963 = vmul.f32 %v4960, %v4962
        %v4964 = vadd.f32 %v4960, %v4963
        %vm4965 = vweird.f32 %v4896
        %vm4966 = vweird.f32 %v4960
        %vm4967 = vmor %vm4965, %vm4966
        %v4968 = vsel %vm4967, %v4960, %v4964
        %v4969 = vand.u32 2147483647, %v4896
        %vm4970 = vcmp.eq.f32.partialorder %v4969, 8.507059e+37
        %v4971 = vand.u32 %v4896, 2147483648
        %v4972 = vor.u32 1.1754944e-38, %v4971
        %v4973 = vsel %vm4970, %v4972, %v4968
        %v4974 = vmul.f32 %v4888, %v4973
        %v4975 = vrcp.pop %v4897
        %v4976 = vmul.f32 %v4897, %v4975
        %v4977 = vsub.f32 1.0, %v4976
        %v4978 = vmul.f32 %v4975, %v4977
        %v4979 = vadd.f32 %v4975, %v4978
        %vm4980 = vweird.f32 %v4897
        %vm4981 = vweird.f32 %v4975
        %vm4982 = vmor %vm4980, %vm4981
        %v4983 = vsel %vm4982, %v4975, %v4979
        %v4984 = vand.u32 2147483647, %v4897
        %vm4985 = vcmp.eq.f32.partialorder %v4984, 8.507059e+37
        %v4986 = vand.u32 %v4897, 2147483648
        %v4987 = vor.u32 1.1754944e-38, %v4986
        %v4988 = vsel %vm4985, %v4987, %v4983
        %v4989 = vmul.f32 %v4889, %v4988
        %v4990 = vrcp.pop %v4898
        %v4991 = vmul.f32 %v4898, %v4990
        %v4992 = vsub.f32 1.0, %v4991
        %v4993 = vmul.f32 %v4990, %v4992
        %v4994 = vadd.f32 %v4990, %v4993
        %vm4995 = vweird.f32 %v4898
        %vm4996 = vweird.f32 %v4990
        %vm4997 = vmor %vm4995, %vm4996
        %v4998 = vsel %vm4997, %v4990, %v4994
        %v4999 = vand.u32 2147483647, %v4898
        %vm5000 = vcmp.eq.f32.partialorder %v4999, 8.507059e+37
        %v5001 = vand.u32 %v4898, 2147483648
        %v5002 = vor.u32 1.1754944e-38, %v5001
        %v5003 = vsel %vm5000, %v5002, %v4998
        %v5004 = vmul.f32 %v4890, %v5003
        %v5005 = vrcp.pop %v4899
        %v5006 = vmul.f32 %v4899, %v5005
        %v5007 = vsub.f32 1.0, %v5006
        %v5008 = vmul.f32 %v5005, %v5007
        %v5009 = vadd.f32 %v5005, %v5008
        %vm5010 = vweird.f32 %v4899
        %vm5011 = vweird.f32 %v5005
        %vm5012 = vmor %vm5010, %vm5011
        %v5013 = vsel %vm5012, %v5005, %v5009
        %v5014 = vand.u32 2147483647, %v4899
        %vm5015 = vcmp.eq.f32.partialorder %v5014, 8.507059e+37
        %v5016 = vand.u32 %v4899, 2147483648
        %v5017 = vor.u32 1.1754944e-38, %v5016
        %v5018 = vsel %vm5015, %v5017, %v5013
        %v5019 = vmul.f32 %v4891, %v5018
        %v5021 = vperm.slane %v4720, 0
        %v5023 = vadd.f32 %v4914, %v5021
        %v5024 = vadd.f32 %v4929, %v5021
        %v5025 = vadd.f32 %v4944, %v5021
        %v5026 = vadd.f32 %v4959, %v5021
        %v5027 = vadd.f32 %v4974, %v5021
        %v5028 = vadd.f32 %v4989, %v5021
        %v5029 = vadd.f32 %v5004, %v5021
        %v5030 = vadd.f32 %v5019, %v5021
        %5031 = vst [vmem:[%s813] sm:$0xff] %v5023
        %5032 = vst [vmem:[%s813 + $0x8] sm:$0xff] %v5024
        %5033 = vst [vmem:[%s813 + $0x10] sm:$0xff] %v5025
        %5034 = vst [vmem:[%s813 + $0x18] sm:$0xff] %v5026
        %5035 = vst [vmem:[%s813 + $0x20] sm:$0xff] %v5027
        %5036 = vst [vmem:[%s813 + $0x28] sm:$0xff] %v5028
        %5037 = vst [vmem:[%s813 + $0x30] sm:$0xff] %v5029
        %5038 = vst [vmem:[%s813 + $0x38] sm:$0xff] %v5030
        %s5039 = sand.u32 %s480, 1
        %s5040 = scalar_lea.sflag [#allocation6], %s5039
        %s5041 = sand.u32 %s480, 1
        %s5042 = smul.addr %s5041, 64
        %s5043 = scalar_lea.vmem [#allocation19], %s5042
        // Predicated region
        $region137: #{tpu_custom_call.1} parent=95 // pred_check
          %p5044 = pneg %p490
        $region138: #{tpu_custom_call.1} parent=95 // pred_check_branch
          %5046 = sbr.rel (%p5044) target = $region140
        $region139: #{tpu_custom_call.1} parent=95 // pred_region
          %s5047 = smul.u32 8, %s47
          %5049 = vsyncadd %s5040, 0
          %s5050 = smul.addr %s46, 16
          %s5051 = sadd.s32 %s5047, %s5050
          %s5052 = smul.addr %s5051, 8
          %s5053 = scalar_lea.hbm %s19, %s5052
          %s5054 = sshll.u32 %s5043, 4
          %s5055 = int_to_ptr.vmem [resolvable:$true] %s5054
          %s5056 = sshll.u32 %s5053, 4
          %s5057 = int_to_ptr.hbm [resolvable:$true] %s5056
          %5062 = dma.vmem_to_hbm [thread:$0]  %s5055, 1024, %s5057, %s5040, 128, 128, 8
        $region140: #{tpu_custom_call.1} parent=95 // pred_fallthru
          _
      $region96: #{tpu_custom_call.1} parent=5 // pred_fallthru
        _
      %p5063 = scmp.le.s32.totalorder 2, %s37
      // Predicated region
      $region141: #{tpu_custom_call.1} parent=5 // pred_check
        %p5064 = pneg %p5063
      $region142: #{tpu_custom_call.1} parent=5 // pred_check_branch
        %5066 = sbr.rel (%p5064) target = $region144
      $region143: #{tpu_custom_call.1} parent=5 // pred_region
        %s5067 = ssub.s32 %s37, 2
        // Predicated region
        $region145: #{tpu_custom_call.1} parent=143 // pred_check
          %p5068 = pneg %p496
        $region146: #{tpu_custom_call.1} parent=143 // pred_check_branch
          %5070 = sbr.rel (%p5068) target = $region148
        $region147: #{tpu_custom_call.1} parent=143 // pred_region
          %s5071 = sand.u32 %s481, 1
          %s5072 = scalar_lea.sflag [#allocation6], %s5071
          %s5073 = sand.u32 %s481, 1
          %s5074 = smul.addr %s5073, 64
          %s5075 = scalar_lea.vmem [#allocation19], %s5074
          %5077 = dma.done %s5072, 1024
        $region148: #{tpu_custom_call.1} parent=143 // pred_fallthru
          _
      $region144: #{tpu_custom_call.1} parent=5 // pred_fallthru
        _
    $region6: #{tpu_custom_call.1} parent=1 // loop_footer
      %s41 = sadd.s32 1, %s37
    $region7: #{tpu_custom_call.1} parent=1 // loop_footer_branch
      %36 = sbr.rel target = $region3
    $region8: #{tpu_custom_call.1} parent=1 // loop_exit
      _
    %5078 = vsyncpa [#allocation5], 1
    %s5079 = scalar_lea.sflag [#allocation5], 1
    %5080 = vsyncpa %s5079, 1
    %5081 = vsyncpa [#allocation8], 1
    %s5082 = scalar_lea.sflag [#allocation8], 1
    %5083 = vsyncpa %s5082, 1
    %5084 = vsyncpa [#allocation11], 1
    %5085 = vsyncpa [#allocation14], 1
    %5086 = vsyncpa [#allocation17], 1
    %5087 = vsyncpa [#allocation6], 1
    %s5088 = scalar_lea.sflag [#allocation6], 1
    %5089 = vsyncpa %s5088, 1

</llo_original>
